<compile_context>
chip_gen: v5e
topology: v5e:2x2
jax: 0.10.0
libtpu: 0.0.40
codegen_flags: <defaults>
</compile_context>

<pallas_src>
import functools

import jax
import jax.numpy as jnp
from jax import lax
from jax.experimental import pallas as pl
from jax.experimental.pallas import tpu as pltpu

_HI = lax.Precision.HIGHEST


# ----------------------------------------------------------------------------
# VMEM budget / tiling helpers (generation aware: v7x = 64 MiB physical VMEM,
# v5e / v6e = 128 MiB).
# ----------------------------------------------------------------------------
def _vmem_limit_bytes():
    cap = 128 * 2**20
    try:
        info = pltpu.get_tpu_info()
        cap = int(getattr(info, "vmem_capacity_bytes", cap))
    except Exception:  # interpret mode / no TPU context
        pass
    return int(max(32 * 2**20, min(0.8 * cap, 100 * 2**20)))


def _pick_tile(total, max_tile, min_blocks=1):
    """Largest multiple-of-128 divisor of `total` that is <= max_tile and
    leaves at least `min_blocks` blocks.  Falls back to the full extent
    (correct but masked stores) when `total` is not 128-aligned."""
    if total % 128 != 0:
        return total
    divs = [t for t in range(128, total + 1, 128) if total % t == 0]
    cands = [t for t in divs if total // t >= min_blocks]
    if not cands:
        return total
    fits = [t for t in cands if t <= max_tile]
    return max(fits) if fits else min(cands)


def _pick_ci_chunk(ci, h, w, out_bytes, budget_bytes=8 * 2**20):
    """Chunk the intermediate-channel axis of the resize kernel so the output
    block stays a few MiB (bounds VMEM on v7x, keeps the static H-resize loop
    short) while respecting the (8, 128) block constraint."""
    if ci <= 8 or ci % 8 != 0:
        return ci
    divs = [c for c in range(8, ci + 1, 8) if ci % c == 0]
    fits = [c for c in divs if 2 * c * h * w * out_bytes <= budget_bytes]
    return max(fits) if fits else min(divs)


def _default_tile_hw(cx, ci, in_bytes, out_bytes, vmem_limit):
    """Lane-tile target so the double-buffered (x, g1, out) blocks use roughly
    half the VMEM budget: big tiles amortize per-step overhead and keep DMAs
    long (>=512 lanes needed for ~85% of HBM roofline)."""
    per_col = 2 * ((cx + ci) * in_bytes + cx * out_bytes)
    t = (vmem_limit // 2) // max(per_col, 1)
    return int(max(512, min(t, 16384)))


# ----------------------------------------------------------------------------
# Pallas kernel 1a: BN-folded 1x1 conv channel mix of the gating tensor g
# (bias deferred), computed at low resolution as a single MXU matmul per
# (batch, low-res spatial tile): (Ci, Cg) x (Cg, S_tile).
# ----------------------------------------------------------------------------
def _channel_mix_kernel(g_ref, w_ref, o_ref):
    # g_ref: (1, Cg, St)   w_ref: (Ci, Cg)   o_ref: (1, Ci, St)
    o_ref[0] = jnp.dot(w_ref[...], g_ref[0],
                       preferred_element_type=jnp.float32,
                       precision=_HI).astype(o_ref.dtype)


def _channel_mix_pallas(g2d, w_g, out_dtype, vmem_limit):
    n, cg, s = g2d.shape
    ci = w_g.shape[0]
    st = _pick_tile(s, 4096)
    return pl.pallas_call(
        _channel_mix_kernel,
        out_shape=jax.ShapeDtypeStruct((n, ci, s), out_dtype),
        grid=(n, s // st),
        in_specs=[
            pl.BlockSpec((1, cg, st), lambda b, k: (b, 0, k)),
            pl.BlockSpec((ci, cg), lambda b, k: (0, 0)),
        ],
        out_specs=pl.BlockSpec((1, ci, st), lambda b, k: (b, 0, k)),
        compiler_params=pltpu.CompilerParams(
            dimension_semantics=("parallel", "parallel"),
            vmem_limit_bytes=vmem_limit,
        ),
    )(g2d, w_g)


# ----------------------------------------------------------------------------
# Pallas kernel 1b: separable bilinear upsample of the channel-mixed gating
# tensor.  The wrapper reshapes the 1a output from (N, Ci, Hg*Wg) to
# (N, Ci*Hg, Wg) for free in HBM, so the W-direction resize is one big MXU
# matmul with no in-kernel relayout; the H-direction resize is a short static
# loop over the (chunked) Ci channels, each a lane-dense (H,Hg)x(Hg,W) matmul.
# ----------------------------------------------------------------------------
def _g_resize_kernel(cm_ref, ry_ref, rxt_ref, o_ref):
    # cm_ref : (1, ci_t*Hg, Wg)   ry_ref: (H, Hg)   rxt_ref: (Wg, W)
    # o_ref  : (1, ci_t, H, W)
    ci_t = o_ref.shape[1]
    hg = ry_ref.shape[1]
    cm = cm_ref[0].astype(jnp.float32)
    gw = jnp.dot(cm, rxt_ref[...], preferred_element_type=jnp.float32,
                 precision=_HI)                                   # (ci_t*Hg, W)
    ry = ry_ref[...]
    for i in range(ci_t):   # static; ci_t kept <= 8 by Ci chunking
        o_ref[0, i] = jnp.dot(ry, gw[i * hg:(i + 1) * hg, :],
                              preferred_element_type=jnp.float32,
                              precision=_HI).astype(o_ref.dtype)


def _g_resize_pallas(cm2, ry, rxt, ci, out_dtype, vmem_limit):
    n = cm2.shape[0]
    h, hg = ry.shape
    wg, w = rxt.shape
    out_bytes = jnp.dtype(out_dtype).itemsize
    ci_t = _pick_ci_chunk(ci, h, w, out_bytes)
    return pl.pallas_call(
        _g_resize_kernel,
        out_shape=jax.ShapeDtypeStruct((n, ci, h, w), out_dtype),
        grid=(n, ci // ci_t),
        in_specs=[
            pl.BlockSpec((1, ci_t * hg, wg), lambda b, c: (b, c, 0)),
            pl.BlockSpec((h, hg), lambda b, c: (0, 0)),
            pl.BlockSpec((wg, w), lambda b, c: (0, 0)),
        ],
        out_specs=pl.BlockSpec((1, ci_t, h, w), lambda b, c: (b, c, 0, 0)),
        compiler_params=pltpu.CompilerParams(
            dimension_semantics=("parallel", "parallel"),
            vmem_limit_bytes=vmem_limit,
        ),
    )(cm2, ry, rxt)


# ----------------------------------------------------------------------------
# Pallas kernel 2: fused attention gate on the flattened NCHW layout.
# One (Cx, T) tile per grid step, grid = (batch, HW tiles), both "parallel".
# Lane (last) dim is spatial; psi is a VPU multiply + cross-sublane reduce;
# the outer BatchNorm + residual + ReLU of AttentionGate2 are fused in.
# ----------------------------------------------------------------------------
def _attention_gate_kernel(x_ref, g1_ref, wx_ref, cst_ref, o_ref):
    # x_ref  : (1, Cx, T)   stream-dtype input tile (flattened NCHW)
    # g1_ref : (1, Ci, T)   upsampled, channel-mixed g-branch (bias deferred)
    # wx_ref : (Ci, Cx)     folded Wx conv weight (stream dtype)
    # cst_ref: (Cmax, 8)    packed f32 constants:
    #          [:Ci,0]=bx+bg  [:Ci,1]=w_psi  [:Cx,2]=bn_scale  [:Cx,3]=bn_bias
    #          [0,4]=b_psi
    # o_ref  : (1, Cx, T)   relu(x + bn(att * x))
    ci, cx = wx_ref.shape
    cst = cst_ref[...]
    bxg = cst[:ci, 0:1]
    wpsi = cst[:ci, 1:2]
    bns = cst[:cx, 2:3]
    bnb = cst[:cx, 3:4]
    bpsi = cst[0:1, 4:5]

    x_raw = x_ref[0]                                        # (Cx, T) stream dtype
    x = x_raw.astype(jnp.float32)
    # 1x1 conv (channel mix) on the MXU; bf16 operands in streaming mode.
    x1 = jnp.dot(wx_ref[...], x_raw, preferred_element_type=jnp.float32,
                 precision=_HI)                             # (Ci, T)
    s = jnp.maximum(x1 + g1_ref[0].astype(jnp.float32) + bxg, 0.0)
    # psi: width-1 conv as a VPU multiply + cross-sublane reduce.
    logit = jnp.sum(s * wpsi, axis=0, keepdims=True) + bpsi
    att = jax.nn.sigmoid(logit)                             # (1, T)
    out = jnp.maximum(x + bns * (att * x) + bnb, 0.0)       # residual + BN + ReLU
    o_ref[0] = out.astype(o_ref.dtype)


def _attention_gate_pallas(x_flat, g1_flat, wx, cst, max_tile_hw, vmem_limit):
    n, cx, hw = x_flat.shape
    ci = wx.shape[0]
    cmax = cst.shape[0]
    in_b = x_flat.dtype.itemsize
    if max_tile_hw is None:
        max_tile_hw = _default_tile_hw(cx, ci, in_b, in_b, vmem_limit)
    # v7x megacore: guarantee at least two grid steps when batch == 1.
    min_blocks = 2 if n == 1 else 1
    t = _pick_tile(hw, max_tile_hw, min_blocks=min_blocks)
    return pl.pallas_call(
        _attention_gate_kernel,
        out_shape=jax.ShapeDtypeStruct((n, cx, hw), x_flat.dtype),
        grid=(n, hw // t),
        in_specs=[
            pl.BlockSpec((1, cx, t), lambda b, s: (b, 0, s)),
            pl.BlockSpec((1, ci, t), lambda b, s: (b, 0, s)),
            pl.BlockSpec((ci, cx), lambda b, s: (0, 0)),
            pl.BlockSpec((cmax, 8), lambda b, s: (0, 0)),
        ],
        out_specs=pl.BlockSpec((1, cx, t), lambda b, s: (b, 0, s)),
        compiler_params=pltpu.CompilerParams(
            dimension_semantics=("parallel", "parallel"),
            vmem_limit_bytes=vmem_limit,
        ),
    )(x_flat, g1_flat, wx, cst)


# ----------------------------------------------------------------------------
# Glue: BN folding, bilinear interpolation matrices, layer wrappers.
# ----------------------------------------------------------------------------
def _bn_scale_bias(gamma, beta, mean, var, eps=1e-5):
    scale = gamma / jnp.sqrt(var + eps)
    return scale, beta - mean * scale


def _fold_conv_bn(w, b, gamma, beta, mean, var, eps=1e-5):
    """Fold Conv2d + BatchNorm2d (eval mode) into conv weight / bias."""
    scale, bias = _bn_scale_bias(gamma, beta, mean, var, eps)
    return w * scale[:, None, None, None], b * scale + bias


def _interp_matrix_1d(out_size, in_size):
    """PyTorch F.interpolate bilinear, align_corners=False, one axis."""
    scale = in_size / out_size
    dst = jnp.arange(out_size, dtype=jnp.float32)
    src = jnp.maximum((dst + 0.5) * scale - 0.5, 0.0)
    i0 = jnp.minimum(jnp.floor(src).astype(jnp.int32), in_size - 1)
    i1 = jnp.minimum(i0 + 1, in_size - 1)
    lam1 = src - i0.astype(jnp.float32)
    lam0 = 1.0 - lam1
    return (lam0[:, None] * jax.nn.one_hot(i0, in_size, dtype=jnp.float32)
            + lam1[:, None] * jax.nn.one_hot(i1, in_size, dtype=jnp.float32))


def _conv3x3_bn_relu(x, conv_bn, stride):
    w, b = _fold_conv_bn(*conv_bn)
    y = lax.conv_general_dilated(
        x, w, window_strides=(stride, stride), padding=[(1, 1), (1, 1)],
        dimension_numbers=("NCHW", "OIHW", "NCHW"))
    return jnp.maximum(y + b[None, :, None, None], 0.0)


# TODO(synk): the DownsampleLayer 3x3 Conv+BN+ReLU stacks run through XLA's
#             conv op rather than a custom Pallas kernel.
def downsample_layer(x, p):
    x = _conv3x3_bn_relu(x, p["c1"], 1)
    x = _conv3x3_bn_relu(x, p["c2"], 1)
    x = _conv3x3_bn_relu(x, p["c3"], 2)
    return x


def fused_attention_gate(x, g, att_p, outer_bn, *, stream_dtype=jnp.bfloat16,
                         max_tile_hw=None):
    """relu(x + BN_outer(AttentionBlock(x, g)))  -- gating core in Pallas."""
    n, cx, h, w = x.shape
    _, cg, hg, wg = g.shape
    vmem_limit = _vmem_limit_bytes()

    wxf, bxf = _fold_conv_bn(*att_p["Wx"])                 # (Ci,Cx,1,1), (Ci,)
    wgf, bgf = _fold_conv_bn(*att_p["Wg"])                 # (Ci,Cg,1,1), (Ci,)
    wpf, bpf = _fold_conv_bn(*att_p["psi"])                # (1,Ci,1,1),  (1,)
    ci = wxf.shape[0]
    wx_mat = wxf[:, :, 0, 0].astype(stream_dtype)          # (Ci, Cx)
    wg_mat = wgf[:, :, 0, 0].astype(stream_dtype)          # (Ci, Cg)
    sc, bi = _bn_scale_bias(*outer_bn)

    # Packed per-channel constants: one small f32 block instead of five DMAs.
    cmax = max(ci, cx)
    cst = jnp.zeros((cmax, 8), jnp.float32)
    cst = cst.at[:ci, 0].set((bxf + bgf).astype(jnp.float32))  # deferred biases
    cst = cst.at[:ci, 1].set(wpf[0, :, 0, 0].astype(jnp.float32))
    cst = cst.at[:cx, 2].set(sc.astype(jnp.float32))
    cst = cst.at[:cx, 3].set(bi.astype(jnp.float32))
    cst = cst.at[0, 4].set(bpf[0].astype(jnp.float32))

    ry = _interp_matrix_1d(h, hg)                          # (H, Hg)  f32
    rxt = _interp_matrix_1d(w, wg).T                       # (Wg, W)  f32

    # g-branch: channel mix (kernel 1a), free HBM reshape, separable bilinear
    # resize (kernel 1b).  The Wg conv bias is deferred to the gating kernel
    # (bilinear resize preserves constants).
    g2d = g.reshape(n, cg, hg * wg).astype(stream_dtype)
    cm = _channel_mix_pallas(g2d, wg_mat, stream_dtype, vmem_limit)  # (N,Ci,Hg*Wg)
    cm2 = cm.reshape(n, ci * hg, wg)                       # free reshape in HBM
    g1 = _g_resize_pallas(cm2, ry, rxt, ci, stream_dtype, vmem_limit)  # (N,Ci,H,W)

    # Main fused gating kernel on the flattened NCHW layout (free reshapes).
    x_flat = x.reshape(n, cx, h * w).astype(stream_dtype)
    g1_flat = g1.reshape(n, ci, h * w)
    out_flat = _attention_gate_pallas(x_flat, g1_flat, wx_mat, cst,
                                      max_tile_hw, vmem_limit)
    return out_flat.reshape(n, cx, h, w)


def attention_gate2(x, params, *, stream_dtype=jnp.bfloat16, max_tile_hw=None):
    """Full AttentionGate2 forward (NCHW), matching the PyTorch module."""
    x1 = downsample_layer(x, params["down1"])
    x2 = downsample_layer(x1, params["down2"])
    g1 = fused_attention_gate(x1, x2, params["attention2"], params["bn2"],
                              stream_dtype=stream_dtype, max_tile_hw=max_tile_hw)
    g2 = fused_attention_gate(x, g1, params["attention1"], params["bn1"],
                              stream_dtype=stream_dtype, max_tile_hw=max_tile_hw)
    return g2.astype(x.dtype)


# ----------------------------------------------------------------------------
# Pure-JAX reference (same math, no Pallas) for a correctness check.
# ----------------------------------------------------------------------------
def _fused_attention_gate_reference(x, g, att_p, outer_bn):
    _, _, h, w = x.shape
    _, _, hg, wg = g.shape
    wxf, bxf = _fold_conv_bn(*att_p["Wx"])
    wgf, bgf = _fold_conv_bn(*att_p["Wg"])
    wpf, bpf = _fold_conv_bn(*att_p["psi"])
    wx_mat = wxf[:, :, 0, 0]
    wg_mat = wgf[:, :, 0, 0]
    wp_mat = wpf[:, :, 0, 0]
    ry = _interp_matrix_1d(h, hg)
    rx = _interp_matrix_1d(w, wg)
    x1 = jnp.einsum("ic,nchw->nihw", wx_mat, x, precision=_HI) + bxf[None, :, None, None]
    gpre = jnp.einsum("ic,nchw->nihw", wg_mat, g, precision=_HI) + bgf[None, :, None, None]
    g1 = jnp.einsum("Hh,Ww,nihw->niHW", ry, rx, gpre, precision=_HI)
    s = jnp.maximum(x1 + g1, 0.0)
    att = jax.nn.sigmoid(jnp.einsum("oi,nihw->nohw", wp_mat, s, precision=_HI)
                         + bpf[None, :, None, None])
    sc, bi = _bn_scale_bias(*outer_bn)
    return jnp.maximum(x + sc[None, :, None, None] * (att * x)
                       + bi[None, :, None, None], 0.0)


def attention_gate2_reference(x, params):
    x1 = downsample_layer(x, params["down1"])
    x2 = downsample_layer(x1, params["down2"])
    g1 = _fused_attention_gate_reference(x1, x2, params["attention2"], params["bn2"])
    g2 = _fused_attention_gate_reference(x, g1, params["attention1"], params["bn1"])
    return g2


# ----------------------------------------------------------------------------
# Deterministic parameter construction + smoke test.
# ----------------------------------------------------------------------------
def _conv_bn_params(key, cout, cin, k):
    k1, k2, k3, k4, k5, k6 = jax.random.split(key, 6)
    w = jax.random.normal(k1, (cout, cin, k, k), jnp.float32) / jnp.sqrt(cin * k * k)
    b = 0.1 * jax.random.normal(k2, (cout,), jnp.float32)
    gamma = 1.0 + 0.1 * jax.random.normal(k3, (cout,), jnp.float32)
    beta = 0.05 * jax.random.normal(k4, (cout,), jnp.float32)
    mean = 0.1 * jax.random.normal(k5, (cout,), jnp.float32)
    var = 0.5 + jax.random.uniform(k6, (cout,), jnp.float32)
    return (w, b, gamma, beta, mean, var)


def _bn_params(key, c):
    k1, k2, k3, k4 = jax.random.split(key, 4)
    gamma = 1.0 + 0.1 * jax.random.normal(k1, (c,), jnp.float32)
    beta = 0.05 * jax.random.normal(k2, (c,), jnp.float32)
    mean = 0.1 * jax.random.normal(k3, (c,), jnp.float32)
    var = 0.5 + jax.random.uniform(k4, (c,), jnp.float32)
    return (gamma, beta, mean, var)


def make_attention_gate2_params(key, in_channels, ratio=0.5):
    c = in_channels
    ci1 = int(c * ratio)
    ci2 = int(2 * c * ratio)
    keys = jax.random.split(key, 14)
    return {
        "down1": {"c1": _conv_bn_params(keys[0], 2 * c, c, 3),
                  "c2": _conv_bn_params(keys[1], 2 * c, 2 * c, 3),
                  "c3": _conv_bn_params(keys[2], 2 * c, 2 * c, 3)},
        "down2": {"c1": _conv_bn_params(keys[3], 4 * c, 2 * c, 3),
                  "c2": _conv_bn_params(keys[4], 4 * c, 4 * c, 3),
                  "c3": _conv_bn_params(keys[5], 4 * c, 4 * c, 3)},
        "attention1": {"Wx": _conv_bn_params(keys[6], ci1, c, 1),
                       "Wg": _conv_bn_params(keys[7], ci1, 2 * c, 1),
                       "psi": _conv_bn_params(keys[8], 1, ci1, 1)},
        "attention2": {"Wx": _conv_bn_params(keys[9], ci2, 2 * c, 1),
                       "Wg": _conv_bn_params(keys[10], ci2, 4 * c, 1),
                       "psi": _conv_bn_params(keys[11], 1, ci2, 1)},
        "bn1": _bn_params(keys[12], c),
        "bn2": _bn_params(keys[13], 2 * c),
    }


if __name__ == "__main__":
    N, C, H, W = 2, 4, 16, 16
    key = jax.random.PRNGKey(0)
    kx, kp = jax.random.split(key)
    x = jax.random.normal(kx, (N, C, H, W), jnp.float32)
    params = make_attention_gate2_params(kp, C, ratio=0.5)

    ref = attention_gate2_reference(x, params)

    # f32 streaming: tight correctness check against the pure-JAX reference.
    # max_tile_hw=128 forces the multi-tile grid path at H*W=256.
    fwd32 = jax.jit(functools.partial(attention_gate2, params=params,
                                      stream_dtype=jnp.float32,
                                      max_tile_hw=128))
    out32 = jax.block_until_ready(fwd32(x))
    assert out32.shape == (N, C, H, W)
    err32 = float(jnp.max(jnp.abs(out32 - ref)))
    assert jnp.allclose(out32, ref, atol=1e-3, rtol=1e-3), err32

    # bf16 streaming (default performance configuration): loose sanity check
    # that the halved-HBM-traffic path compiles and stays close to reference.
    fwd16 = jax.jit(functools.partial(attention_gate2, params=params))
    out16 = jax.block_until_ready(fwd16(x))
    assert out16.shape == (N, C, H, W) and out16.dtype == x.dtype
    err16 = float(jnp.max(jnp.abs(out16 - ref)))
    assert err16 < 0.3, err16

    print("KERNEL_OK")
</pallas_src>

<mosaic_0001>
module attributes {stable_mosaic.version = 11 : i64} {
  func.func @_channel_mix_kernel(%arg0: i32, %arg1: i32, %arg2: memref<1x16x16xf32, #tpu.memory_space<vmem>>, %arg3: memref<4x16xf32, #tpu.memory_space<vmem>>, %arg4: memref<1x4x16xf32, #tpu.memory_space<vmem>>) attributes {dimension_semantics = [#tpu.dimension_semantics<parallel>, #tpu.dimension_semantics<parallel>], iteration_bounds = array<i64: 2, 1>, scalar_prefetch = 0 : i64, scratch_operands = 0 : i64, tpu.core_type = #tpu.core_type<tc>, window_params = [{transform_indices = @transform_0, window_bounds = array<i64: 1, 16, 16>}, {pipeline_mode = #tpu.pipeline_mode<synchronous>, transform_indices = @transform_1, window_bounds = array<i64: 4, 16>}, {transform_indices = @transform_2, window_bounds = array<i64: 1, 4, 16>}]} {
    %c0 = arith.constant 0 : index
    %c0_0 = arith.constant 0 : index
    %0 = vector.load %arg3[%c0, %c0_0] : memref<4x16xf32, #tpu.memory_space<vmem>>, vector<4x16xf32>
    %c0_1 = arith.constant 0 : index
    %c0_2 = arith.constant 0 : index
    %c0_3 = arith.constant 0 : index
    %1 = vector.load %arg2[%c0_1, %c0_2, %c0_3] : memref<1x16x16xf32, #tpu.memory_space<vmem>>, vector<1x16x16xf32>
    %2 = vector.shape_cast %1 : vector<1x16x16xf32> to vector<16x16xf32>
    %cst = arith.constant dense<0.000000e+00> : vector<4x16xf32>
    %3 = tpu.matmul %0, %2, %cst {dimension_numbers = #tpu.dot_dimension_numbers<[1], [0], [0], [1], [0, 0, 1, 1], [], []>, precision = #tpu.contract_precision<fp32>} : vector<4x16xf32>, vector<16x16xf32>, vector<4x16xf32> -> vector<4x16xf32>
    %c0_4 = arith.constant 0 : index
    %c0_5 = arith.constant 0 : index
    %c0_6 = arith.constant 0 : index
    %4 = vector.load %arg4[%c0_4, %c0_5, %c0_6] : memref<1x4x16xf32, #tpu.memory_space<vmem>>, vector<1x4x16xf32>
    %5 = vector.shape_cast %4 : vector<1x4x16xf32> to vector<4x16xf32>
    %6 = vector.shape_cast %3 : vector<4x16xf32> to vector<1x4x16xf32>
    tpu.vector_store %arg4[%c0_4, %c0_5, %c0_6], %6 {strides = array<i32>} : memref<1x4x16xf32, #tpu.memory_space<vmem>>, vector<1x4x16xf32>,
    return
  }
  func.func @transform_0(%arg0: i32, %arg1: i32) -> (i32, i32, i32) {
    %c0_i32 = arith.constant 0 : i32
    %c0_i32_0 = arith.constant 0 : i32
    return %arg0, %c0_i32, %arg1 : i32, i32, i32
  }
  func.func @transform_1(%arg0: i32, %arg1: i32) -> (i32, i32) {
    %c0_i32 = arith.constant 0 : i32
    %c0_i32_0 = arith.constant 0 : i32
    %c0_i32_1 = arith.constant 0 : i32
    return %c0_i32, %c0_i32_0 : i32, i32
  }
  func.func @transform_2(%arg0: i32, %arg1: i32) -> (i32, i32, i32) {
    %c0_i32 = arith.constant 0 : i32
    %c0_i32_0 = arith.constant 0 : i32
    return %arg0, %c0_i32, %arg1 : i32, i32, i32
  }
}

module attributes {stable_mosaic.version = 11 : i64} {
  func.func @_g_resize_kernel(%arg0: i32, %arg1: i32, %arg2: memref<1x16x4xf32, #tpu.memory_space<vmem>>, %arg3: memref<8x4xf32, #tpu.memory_space<vmem>>, %arg4: memref<4x8xf32, #tpu.memory_space<vmem>>, %arg5: memref<1x4x8x8xf32, #tpu.memory_space<vmem>>) attributes {dimension_semantics = [#tpu.dimension_semantics<parallel>, #tpu.dimension_semantics<parallel>], iteration_bounds = array<i64: 2, 1>, scalar_prefetch = 0 : i64, scratch_operands = 0 : i64, tpu.core_type = #tpu.core_type<tc>, window_params = [{transform_indices = @transform_0, window_bounds = array<i64: 1, 16, 4>}, {pipeline_mode = #tpu.pipeline_mode<synchronous>, transform_indices = @transform_1, window_bounds = array<i64: 8, 4>}, {pipeline_mode = #tpu.pipeline_mode<synchronous>, transform_indices = @transform_2, window_bounds = array<i64: 4, 8>}, {transform_indices = @transform_3, window_bounds = array<i64: 1, 4, 8, 8>}]} {
    %c0 = arith.constant 0 : index
    %c0_0 = arith.constant 0 : index
    %c0_1 = arith.constant 0 : index
    %0 = vector.load %arg2[%c0, %c0_0, %c0_1] : memref<1x16x4xf32, #tpu.memory_space<vmem>>, vector<1x16x4xf32>
    %1 = vector.shape_cast %0 : vector<1x16x4xf32> to vector<16x4xf32>
    %c0_2 = arith.constant 0 : index
    %c0_3 = arith.constant 0 : index
    %2 = vector.load %arg4[%c0_2, %c0_3] : memref<4x8xf32, #tpu.memory_space<vmem>>, vector<4x8xf32>
    %cst = arith.constant dense<0.000000e+00> : vector<16x8xf32>
    %3 = tpu.matmul %1, %2, %cst {dimension_numbers = #tpu.dot_dimension_numbers<[1], [0], [0], [1], [0, 0, 1, 1], [], []>, precision = #tpu.contract_precision<fp32>} : vector<16x4xf32>, vector<4x8xf32>, vector<16x8xf32> -> vector<16x8xf32>
    %c0_4 = arith.constant 0 : index
    %c0_5 = arith.constant 0 : index
    %4 = vector.load %arg3[%c0_4, %c0_5] : memref<8x4xf32, #tpu.memory_space<vmem>>, vector<8x4xf32>
    %5 = vector.extract_strided_slice %3 {offsets = [0, 0], sizes = [4, 8], strides = [1, 1]} : vector<16x8xf32> to vector<4x8xf32>
    %cst_6 = arith.constant dense<0.000000e+00> : vector<8x8xf32>
    %6 = tpu.matmul %4, %5, %cst_6 {dimension_numbers = #tpu.dot_dimension_numbers<[1], [0], [0], [1], [0, 0, 1, 1], [], []>, precision = #tpu.contract_precision<fp32>} : vector<8x4xf32>, vector<4x8xf32>, vector<8x8xf32> -> vector<8x8xf32>
    %c0_7 = arith.constant 0 : index
    %c0_8 = arith.constant 0 : index
    %c0_9 = arith.constant 0 : index
    %c0_10 = arith.constant 0 : index
    %7 = vector.load %arg5[%c0_7, %c0_8, %c0_9, %c0_10] : memref<1x4x8x8xf32, #tpu.memory_space<vmem>>, vector<1x1x8x8xf32>
    %8 = vector.shape_cast %7 : vector<1x1x8x8xf32> to vector<8x8xf32>
    %9 = vector.shape_cast %6 : vector<8x8xf32> to vector<1x1x8x8xf32>
    tpu.vector_store %arg5[%c0_7, %c0_8, %c0_9, %c0_10], %9 {strides = array<i32>} : memref<1x4x8x8xf32, #tpu.memory_space<vmem>>, vector<1x1x8x8xf32>,
    %10 = vector.extract_strided_slice %3 {offsets = [4, 0], sizes = [4, 8], strides = [1, 1]} : vector<16x8xf32> to vector<4x8xf32>
    %cst_11 = arith.constant dense<0.000000e+00> : vector<8x8xf32>
    %11 = tpu.matmul %4, %10, %cst_11 {dimension_numbers = #tpu.dot_dimension_numbers<[1], [0], [0], [1], [0, 0, 1, 1], [], []>, precision = #tpu.contract_precision<fp32>} : vector<8x4xf32>, vector<4x8xf32>, vector<8x8xf32> -> vector<8x8xf32>
    %c0_12 = arith.constant 0 : index
    %c1 = arith.constant 1 : index
    %c0_13 = arith.constant 0 : index
    %c0_14 = arith.constant 0 : index
    %12 = vector.load %arg5[%c0_12, %c1, %c0_13, %c0_14] : memref<1x4x8x8xf32, #tpu.memory_space<vmem>>, vector<1x1x8x8xf32>
    %13 = vector.shape_cast %12 : vector<1x1x8x8xf32> to vector<8x8xf32>
    %14 = vector.shape_cast %11 : vector<8x8xf32> to vector<1x1x8x8xf32>
    tpu.vector_store %arg5[%c0_12, %c1, %c0_13, %c0_14], %14 {strides = array<i32>} : memref<1x4x8x8xf32, #tpu.memory_space<vmem>>, vector<1x1x8x8xf32>,
    %15 = vector.extract_strided_slice %3 {offsets = [8, 0], sizes = [4, 8], strides = [1, 1]} : vector<16x8xf32> to vector<4x8xf32>
    %cst_15 = arith.constant dense<0.000000e+00> : vector<8x8xf32>
    %16 = tpu.matmul %4, %15, %cst_15 {dimension_numbers = #tpu.dot_dimension_numbers<[1], [0], [0], [1], [0, 0, 1, 1], [], []>, precision = #tpu.contract_precision<fp32>} : vector<8x4xf32>, vector<4x8xf32>, vector<8x8xf32> -> vector<8x8xf32>
    %c0_16 = arith.constant 0 : index
    %c2 = arith.constant 2 : index
    %c0_17 = arith.constant 0 : index
    %c0_18 = arith.constant 0 : index
    %17 = vector.load %arg5[%c0_16, %c2, %c0_17, %c0_18] : memref<1x4x8x8xf32, #tpu.memory_space<vmem>>, vector<1x1x8x8xf32>
    %18 = vector.shape_cast %17 : vector<1x1x8x8xf32> to vector<8x8xf32>
    %19 = vector.shape_cast %16 : vector<8x8xf32> to vector<1x1x8x8xf32>
    tpu.vector_store %arg5[%c0_16, %c2, %c0_17, %c0_18], %19 {strides = array<i32>} : memref<1x4x8x8xf32, #tpu.memory_space<vmem>>, vector<1x1x8x8xf32>,
    %20 = vector.extract_strided_slice %3 {offsets = [12, 0], sizes = [4, 8], strides = [1, 1]} : vector<16x8xf32> to vector<4x8xf32>
    %cst_19 = arith.constant dense<0.000000e+00> : vector<8x8xf32>
    %21 = tpu.matmul %4, %20, %cst_19 {dimension_numbers = #tpu.dot_dimension_numbers<[1], [0], [0], [1], [0, 0, 1, 1], [], []>, precision = #tpu.contract_precision<fp32>} : vector<8x4xf32>, vector<4x8xf32>, vector<8x8xf32> -> vector<8x8xf32>
    %c0_20 = arith.constant 0 : index
    %c3 = arith.constant 3 : index
    %c0_21 = arith.constant 0 : index
    %c0_22 = arith.constant 0 : index
    %22 = vector.load %arg5[%c0_20, %c3, %c0_21, %c0_22] : memref<1x4x8x8xf32, #tpu.memory_space<vmem>>, vector<1x1x8x8xf32>
    %23 = vector.shape_cast %22 : vector<1x1x8x8xf32> to vector<8x8xf32>
    %24 = vector.shape_cast %21 : vector<8x8xf32> to vector<1x1x8x8xf32>
    tpu.vector_store %arg5[%c0_20, %c3, %c0_21, %c0_22], %24 {strides = array<i32>} : memref<1x4x8x8xf32, #tpu.memory_space<vmem>>, vector<1x1x8x8xf32>,
    return
  }
  func.func @transform_0(%arg0: i32, %arg1: i32) -> (i32, i32, i32) {
    %c0_i32 = arith.constant 0 : i32
    %c0_i32_0 = arith.constant 0 : i32
    return %arg0, %arg1, %c0_i32 : i32, i32, i32
  }
  func.func @transform_1(%arg0: i32, %arg1: i32) -> (i32, i32) {
    %c0_i32 = arith.constant 0 : i32
    %c0_i32_0 = arith.constant 0 : i32
    %c0_i32_1 = arith.constant 0 : i32
    return %c0_i32, %c0_i32_0 : i32, i32
  }
  func.func @transform_2(%arg0: i32, %arg1: i32) -> (i32, i32) {
    %c0_i32 = arith.constant 0 : i32
    %c0_i32_0 = arith.constant 0 : i32
    %c0_i32_1 = arith.constant 0 : i32
    return %c0_i32, %c0_i32_0 : i32, i32
  }
  func.func @transform_3(%arg0: i32, %arg1: i32) -> (i32, i32, i32, i32) {
    %c0_i32 = arith.constant 0 : i32
    %c0_i32_0 = arith.constant 0 : i32
    %c0_i32_1 = arith.constant 0 : i32
    return %arg0, %arg1, %c0_i32, %c0_i32_0 : i32, i32, i32, i32
  }
}

module attributes {stable_mosaic.version = 11 : i64} {
  func.func @_attention_gate_kernel(%arg0: i32, %arg1: i32, %arg2: memref<1x8x64xf32, #tpu.memory_space<vmem>>, %arg3: memref<1x4x64xf32, #tpu.memory_space<vmem>>, %arg4: memref<4x8xf32, #tpu.memory_space<vmem>>, %arg5: memref<8x8xf32, #tpu.memory_space<vmem>>, %arg6: memref<1x8x64xf32, #tpu.memory_space<vmem>>) attributes {dimension_semantics = [#tpu.dimension_semantics<parallel>, #tpu.dimension_semantics<parallel>], iteration_bounds = array<i64: 2, 1>, scalar_prefetch = 0 : i64, scratch_operands = 0 : i64, tpu.core_type = #tpu.core_type<tc>, window_params = [{transform_indices = @transform_0, window_bounds = array<i64: 1, 8, 64>}, {transform_indices = @transform_1, window_bounds = array<i64: 1, 4, 64>}, {pipeline_mode = #tpu.pipeline_mode<synchronous>, transform_indices = @transform_2, window_bounds = array<i64: 4, 8>}, {pipeline_mode = #tpu.pipeline_mode<synchronous>, transform_indices = @transform_3, window_bounds = array<i64: 8, 8>}, {transform_indices = @transform_4, window_bounds = array<i64: 1, 8, 64>}]} {
    %c0 = arith.constant 0 : index
    %c0_0 = arith.constant 0 : index
    %0 = vector.load %arg5[%c0, %c0_0] : memref<8x8xf32, #tpu.memory_space<vmem>>, vector<8x8xf32>
    %1 = vector.extract_strided_slice %0 {offsets = [0, 0], sizes = [4, 1], strides = [1, 1]} : vector<8x8xf32> to vector<4x1xf32>
    %2 = vector.extract_strided_slice %0 {offsets = [0, 1], sizes = [4, 1], strides = [1, 1]} : vector<8x8xf32> to vector<4x1xf32>
    %3 = vector.extract_strided_slice %0 {offsets = [0, 2], sizes = [8, 1], strides = [1, 1]} : vector<8x8xf32> to vector<8x1xf32>
    %4 = vector.extract_strided_slice %0 {offsets = [0, 3], sizes = [8, 1], strides = [1, 1]} : vector<8x8xf32> to vector<8x1xf32>
    %5 = vector.extract_strided_slice %0 {offsets = [0, 4], sizes = [1, 1], strides = [1, 1]} : vector<8x8xf32> to vector<1x1xf32>
    %c0_1 = arith.constant 0 : index
    %c0_2 = arith.constant 0 : index
    %c0_3 = arith.constant 0 : index
    %6 = vector.load %arg2[%c0_1, %c0_2, %c0_3] : memref<1x8x64xf32, #tpu.memory_space<vmem>>, vector<1x8x64xf32>
    %7 = vector.shape_cast %6 : vector<1x8x64xf32> to vector<8x64xf32>
    %c0_4 = arith.constant 0 : index
    %c0_5 = arith.constant 0 : index
    %8 = vector.load %arg4[%c0_4, %c0_5] : memref<4x8xf32, #tpu.memory_space<vmem>>, vector<4x8xf32>
    %cst = arith.constant dense<0.000000e+00> : vector<4x64xf32>
    %9 = tpu.matmul %8, %7, %cst {dimension_numbers = #tpu.dot_dimension_numbers<[1], [0], [0], [1], [0, 0, 1, 1], [], []>, precision = #tpu.contract_precision<fp32>} : vector<4x8xf32>, vector<8x64xf32>, vector<4x64xf32> -> vector<4x64xf32>
    %c0_6 = arith.constant 0 : index
    %c0_7 = arith.constant 0 : index
    %c0_8 = arith.constant 0 : index
    %10 = vector.load %arg3[%c0_6, %c0_7, %c0_8] : memref<1x4x64xf32, #tpu.memory_space<vmem>>, vector<1x4x64xf32>
    %11 = vector.shape_cast %10 : vector<1x4x64xf32> to vector<4x64xf32>
    %12 = arith.addf %9, %11 : vector<4x64xf32>
    %13 = vector.broadcast %1 : vector<4x1xf32> to vector<4x64xf32>
    %14 = arith.addf %12, %13 : vector<4x64xf32>
    %cst_9 = arith.constant 0.000000e+00 : f32
    %15 = vector.broadcast %cst_9 : f32 to vector<4x64xf32>
    %16 = arith.maximumf %14, %15 : vector<4x64xf32>
    %17 = vector.broadcast %2 : vector<4x1xf32> to vector<4x64xf32>
    %18 = arith.mulf %16, %17 : vector<4x64xf32>
    %cst_10 = arith.constant dense<0.000000e+00> : vector<64xf32>
    %19 = vector.multi_reduction <add>, %18, %cst_10 [0] : vector<4x64xf32> to vector<64xf32>
    %20 = vector.shape_cast %19 : vector<64xf32> to vector<1x64xf32>
    %21 = vector.broadcast %5 : vector<1x1xf32> to vector<1x64xf32>
    %22 = arith.addf %20, %21 : vector<1x64xf32>
    %23 = arith.negf %22 : vector<1x64xf32>
    %24 = math.exp %23 : vector<1x64xf32>
    %cst_11 = arith.constant 1.000000e+00 : f32
    %25 = vector.broadcast %cst_11 : f32 to vector<1x64xf32>
    %26 = arith.addf %25, %24 : vector<1x64xf32>
    %27 = arith.divf %25, %26 : vector<1x64xf32>
    %28 = vector.broadcast %27 : vector<1x64xf32> to vector<8x64xf32>
    %29 = arith.mulf %28, %7 : vector<8x64xf32>
    %30 = vector.broadcast %3 : vector<8x1xf32> to vector<8x64xf32>
    %31 = arith.mulf %30, %29 : vector<8x64xf32>
    %32 = arith.addf %7, %31 : vector<8x64xf32>
    %33 = vector.broadcast %4 : vector<8x1xf32> to vector<8x64xf32>
    %34 = arith.addf %32, %33 : vector<8x64xf32>
    %cst_12 = arith.constant 0.000000e+00 : f32
    %35 = vector.broadcast %cst_12 : f32 to vector<8x64xf32>
    %36 = arith.maximumf %34, %35 : vector<8x64xf32>
    %c0_13 = arith.constant 0 : index
    %c0_14 = arith.constant 0 : index
    %c0_15 = arith.constant 0 : index
    %37 = vector.load %arg6[%c0_13, %c0_14, %c0_15] : memref<1x8x64xf32, #tpu.memory_space<vmem>>, vector<1x8x64xf32>
    %38 = vector.shape_cast %37 : vector<1x8x64xf32> to vector<8x64xf32>
    %39 = vector.shape_cast %36 : vector<8x64xf32> to vector<1x8x64xf32>
    tpu.vector_store %arg6[%c0_13, %c0_14, %c0_15], %39 {strides = array<i32>} : memref<1x8x64xf32, #tpu.memory_space<vmem>>, vector<1x8x64xf32>,
    return
  }
  func.func @transform_0(%arg0: i32, %arg1: i32) -> (i32, i32, i32) {
    %c0_i32 = arith.constant 0 : i32
    %c0_i32_0 = arith.constant 0 : i32
    return %arg0, %c0_i32, %arg1 : i32, i32, i32
  }
  func.func @transform_1(%arg0: i32, %arg1: i32) -> (i32, i32, i32) {
    %c0_i32 = arith.constant 0 : i32
    %c0_i32_0 = arith.constant 0 : i32
    return %arg0, %c0_i32, %arg1 : i32, i32, i32
  }
  func.func @transform_2(%arg0: i32, %arg1: i32) -> (i32, i32) {
    %c0_i32 = arith.constant 0 : i32
    %c0_i32_0 = arith.constant 0 : i32
    %c0_i32_1 = arith.constant 0 : i32
    return %c0_i32, %c0_i32_0 : i32, i32
  }
  func.func @transform_3(%arg0: i32, %arg1: i32) -> (i32, i32) {
    %c0_i32 = arith.constant 0 : i32
    %c0_i32_0 = arith.constant 0 : i32
    %c0_i32_1 = arith.constant 0 : i32
    return %c0_i32, %c0_i32_0 : i32, i32
  }
  func.func @transform_4(%arg0: i32, %arg1: i32) -> (i32, i32, i32) {
    %c0_i32 = arith.constant 0 : i32
    %c0_i32_0 = arith.constant 0 : i32
    return %arg0, %c0_i32, %arg1 : i32, i32, i32
  }
}

module attributes {stable_mosaic.version = 11 : i64} {
  func.func @_channel_mix_kernel(%arg0: i32, %arg1: i32, %arg2: memref<1x8x64xf32, #tpu.memory_space<vmem>>, %arg3: memref<2x8xf32, #tpu.memory_space<vmem>>, %arg4: memref<1x2x64xf32, #tpu.memory_space<vmem>>) attributes {dimension_semantics = [#tpu.dimension_semantics<parallel>, #tpu.dimension_semantics<parallel>], iteration_bounds = array<i64: 2, 1>, scalar_prefetch = 0 : i64, scratch_operands = 0 : i64, tpu.core_type = #tpu.core_type<tc>, window_params = [{transform_indices = @transform_0, window_bounds = array<i64: 1, 8, 64>}, {pipeline_mode = #tpu.pipeline_mode<synchronous>, transform_indices = @transform_1, window_bounds = array<i64: 2, 8>}, {transform_indices = @transform_2, window_bounds = array<i64: 1, 2, 64>}]} {
    %c0 = arith.constant 0 : index
    %c0_0 = arith.constant 0 : index
    %0 = vector.load %arg3[%c0, %c0_0] : memref<2x8xf32, #tpu.memory_space<vmem>>, vector<2x8xf32>
    %c0_1 = arith.constant 0 : index
    %c0_2 = arith.constant 0 : index
    %c0_3 = arith.constant 0 : index
    %1 = vector.load %arg2[%c0_1, %c0_2, %c0_3] : memref<1x8x64xf32, #tpu.memory_space<vmem>>, vector<1x8x64xf32>
    %2 = vector.shape_cast %1 : vector<1x8x64xf32> to vector<8x64xf32>
    %cst = arith.constant dense<0.000000e+00> : vector<2x64xf32>
    %3 = tpu.matmul %0, %2, %cst {dimension_numbers = #tpu.dot_dimension_numbers<[1], [0], [0], [1], [0, 0, 1, 1], [], []>, precision = #tpu.contract_precision<fp32>} : vector<2x8xf32>, vector<8x64xf32>, vector<2x64xf32> -> vector<2x64xf32>
    %c0_4 = arith.constant 0 : index
    %c0_5 = arith.constant 0 : index
    %c0_6 = arith.constant 0 : index
    %4 = vector.load %arg4[%c0_4, %c0_5, %c0_6] : memref<1x2x64xf32, #tpu.memory_space<vmem>>, vector<1x2x64xf32>
    %5 = vector.shape_cast %4 : vector<1x2x64xf32> to vector<2x64xf32>
    %6 = vector.shape_cast %3 : vector<2x64xf32> to vector<1x2x64xf32>
    tpu.vector_store %arg4[%c0_4, %c0_5, %c0_6], %6 {strides = array<i32>} : memref<1x2x64xf32, #tpu.memory_space<vmem>>, vector<1x2x64xf32>,
    return
  }
  func.func @transform_0(%arg0: i32, %arg1: i32) -> (i32, i32, i32) {
    %c0_i32 = arith.constant 0 : i32
    %c0_i32_0 = arith.constant 0 : i32
    return %arg0, %c0_i32, %arg1 : i32, i32, i32
  }
  func.func @transform_1(%arg0: i32, %arg1: i32) -> (i32, i32) {
    %c0_i32 = arith.constant 0 : i32
    %c0_i32_0 = arith.constant 0 : i32
    %c0_i32_1 = arith.constant 0 : i32
    return %c0_i32, %c0_i32_0 : i32, i32
  }
  func.func @transform_2(%arg0: i32, %arg1: i32) -> (i32, i32, i32) {
    %c0_i32 = arith.constant 0 : i32
    %c0_i32_0 = arith.constant 0 : i32
    return %arg0, %c0_i32, %arg1 : i32, i32, i32
  }
}

module attributes {stable_mosaic.version = 11 : i64} {
  func.func @_g_resize_kernel(%arg0: i32, %arg1: i32, %arg2: memref<1x16x8xf32, #tpu.memory_space<vmem>>, %arg3: memref<16x8xf32, #tpu.memory_space<vmem>>, %arg4: memref<8x16xf32, #tpu.memory_space<vmem>>, %arg5: memref<1x2x16x16xf32, #tpu.memory_space<vmem>>) attributes {dimension_semantics = [#tpu.dimension_semantics<parallel>, #tpu.dimension_semantics<parallel>], iteration_bounds = array<i64: 2, 1>, scalar_prefetch = 0 : i64, scratch_operands = 0 : i64, tpu.core_type = #tpu.core_type<tc>, window_params = [{transform_indices = @transform_0, window_bounds = array<i64: 1, 16, 8>}, {pipeline_mode = #tpu.pipeline_mode<synchronous>, transform_indices = @transform_1, window_bounds = array<i64: 16, 8>}, {pipeline_mode = #tpu.pipeline_mode<synchronous>, transform_indices = @transform_2, window_bounds = array<i64: 8, 16>}, {transform_indices = @transform_3, window_bounds = array<i64: 1, 2, 16, 16>}]} {
    %c0 = arith.constant 0 : index
    %c0_0 = arith.constant 0 : index
    %c0_1 = arith.constant 0 : index
    %0 = vector.load %arg2[%c0, %c0_0, %c0_1] : memref<1x16x8xf32, #tpu.memory_space<vmem>>, vector<1x16x8xf32>
    %1 = vector.shape_cast %0 : vector<1x16x8xf32> to vector<16x8xf32>
    %c0_2 = arith.constant 0 : index
    %c0_3 = arith.constant 0 : index
    %2 = vector.load %arg4[%c0_2, %c0_3] : memref<8x16xf32, #tpu.memory_space<vmem>>, vector<8x16xf32>
    %cst = arith.constant dense<0.000000e+00> : vector<16x16xf32>
    %3 = tpu.matmul %1, %2, %cst {dimension_numbers = #tpu.dot_dimension_numbers<[1], [0], [0], [1], [0, 0, 1, 1], [], []>, precision = #tpu.contract_precision<fp32>} : vector<16x8xf32>, vector<8x16xf32>, vector<16x16xf32> -> vector<16x16xf32>
    %c0_4 = arith.constant 0 : index
    %c0_5 = arith.constant 0 : index
    %4 = vector.load %arg3[%c0_4, %c0_5] : memref<16x8xf32, #tpu.memory_space<vmem>>, vector<16x8xf32>
    %5 = vector.extract_strided_slice %3 {offsets = [0, 0], sizes = [8, 16], strides = [1, 1]} : vector<16x16xf32> to vector<8x16xf32>
    %cst_6 = arith.constant dense<0.000000e+00> : vector<16x16xf32>
    %6 = tpu.matmul %4, %5, %cst_6 {dimension_numbers = #tpu.dot_dimension_numbers<[1], [0], [0], [1], [0, 0, 1, 1], [], []>, precision = #tpu.contract_precision<fp32>} : vector<16x8xf32>, vector<8x16xf32>, vector<16x16xf32> -> vector<16x16xf32>
    %c0_7 = arith.constant 0 : index
    %c0_8 = arith.constant 0 : index
    %c0_9 = arith.constant 0 : index
    %c0_10 = arith.constant 0 : index
    %7 = vector.load %arg5[%c0_7, %c0_8, %c0_9, %c0_10] : memref<1x2x16x16xf32, #tpu.memory_space<vmem>>, vector<1x1x16x16xf32>
    %8 = vector.shape_cast %7 : vector<1x1x16x16xf32> to vector<16x16xf32>
    %9 = vector.shape_cast %6 : vector<16x16xf32> to vector<1x1x16x16xf32>
    tpu.vector_store %arg5[%c0_7, %c0_8, %c0_9, %c0_10], %9 {strides = array<i32>} : memref<1x2x16x16xf32, #tpu.memory_space<vmem>>, vector<1x1x16x16xf32>,
    %10 = vector.extract_strided_slice %3 {offsets = [8, 0], sizes = [8, 16], strides = [1, 1]} : vector<16x16xf32> to vector<8x16xf32>
    %cst_11 = arith.constant dense<0.000000e+00> : vector<16x16xf32>
    %11 = tpu.matmul %4, %10, %cst_11 {dimension_numbers = #tpu.dot_dimension_numbers<[1], [0], [0], [1], [0, 0, 1, 1], [], []>, precision = #tpu.contract_precision<fp32>} : vector<16x8xf32>, vector<8x16xf32>, vector<16x16xf32> -> vector<16x16xf32>
    %c0_12 = arith.constant 0 : index
    %c1 = arith.constant 1 : index
    %c0_13 = arith.constant 0 : index
    %c0_14 = arith.constant 0 : index
    %12 = vector.load %arg5[%c0_12, %c1, %c0_13, %c0_14] : memref<1x2x16x16xf32, #tpu.memory_space<vmem>>, vector<1x1x16x16xf32>
    %13 = vector.shape_cast %12 : vector<1x1x16x16xf32> to vector<16x16xf32>
    %14 = vector.shape_cast %11 : vector<16x16xf32> to vector<1x1x16x16xf32>
    tpu.vector_store %arg5[%c0_12, %c1, %c0_13, %c0_14], %14 {strides = array<i32>} : memref<1x2x16x16xf32, #tpu.memory_space<vmem>>, vector<1x1x16x16xf32>,
    return
  }
  func.func @transform_0(%arg0: i32, %arg1: i32) -> (i32, i32, i32) {
    %c0_i32 = arith.constant 0 : i32
    %c0_i32_0 = arith.constant 0 : i32
    return %arg0, %arg1, %c0_i32 : i32, i32, i32
  }
  func.func @transform_1(%arg0: i32, %arg1: i32) -> (i32, i32) {
    %c0_i32 = arith.constant 0 : i32
    %c0_i32_0 = arith.constant 0 : i32
    %c0_i32_1 = arith.constant 0 : i32
    return %c0_i32, %c0_i32_0 : i32, i32
  }
  func.func @transform_2(%arg0: i32, %arg1: i32) -> (i32, i32) {
    %c0_i32 = arith.constant 0 : i32
    %c0_i32_0 = arith.constant 0 : i32
    %c0_i32_1 = arith.constant 0 : i32
    return %c0_i32, %c0_i32_0 : i32, i32
  }
  func.func @transform_3(%arg0: i32, %arg1: i32) -> (i32, i32, i32, i32) {
    %c0_i32 = arith.constant 0 : i32
    %c0_i32_0 = arith.constant 0 : i32
    %c0_i32_1 = arith.constant 0 : i32
    return %arg0, %arg1, %c0_i32, %c0_i32_0 : i32, i32, i32, i32
  }
}

module attributes {stable_mosaic.version = 11 : i64} {
  func.func @_attention_gate_kernel(%arg0: i32, %arg1: i32, %arg2: memref<1x4x128xf32, #tpu.memory_space<vmem>>, %arg3: memref<1x2x128xf32, #tpu.memory_space<vmem>>, %arg4: memref<2x4xf32, #tpu.memory_space<vmem>>, %arg5: memref<4x8xf32, #tpu.memory_space<vmem>>, %arg6: memref<1x4x128xf32, #tpu.memory_space<vmem>>) attributes {dimension_semantics = [#tpu.dimension_semantics<parallel>, #tpu.dimension_semantics<parallel>], iteration_bounds = array<i64: 2, 2>, scalar_prefetch = 0 : i64, scratch_operands = 0 : i64, tpu.core_type = #tpu.core_type<tc>, window_params = [{transform_indices = @transform_0, window_bounds = array<i64: 1, 4, 128>}, {transform_indices = @transform_1, window_bounds = array<i64: 1, 2, 128>}, {pipeline_mode = #tpu.pipeline_mode<synchronous>, transform_indices = @transform_2, window_bounds = array<i64: 2, 4>}, {pipeline_mode = #tpu.pipeline_mode<synchronous>, transform_indices = @transform_3, window_bounds = array<i64: 4, 8>}, {transform_indices = @transform_4, window_bounds = array<i64: 1, 4, 128>}]} {
    %c0 = arith.constant 0 : index
    %c0_0 = arith.constant 0 : index
    %0 = vector.load %arg5[%c0, %c0_0] : memref<4x8xf32, #tpu.memory_space<vmem>>, vector<4x8xf32>
    %1 = vector.extract_strided_slice %0 {offsets = [0, 0], sizes = [2, 1], strides = [1, 1]} : vector<4x8xf32> to vector<2x1xf32>
    %2 = vector.extract_strided_slice %0 {offsets = [0, 1], sizes = [2, 1], strides = [1, 1]} : vector<4x8xf32> to vector<2x1xf32>
    %3 = vector.extract_strided_slice %0 {offsets = [0, 2], sizes = [4, 1], strides = [1, 1]} : vector<4x8xf32> to vector<4x1xf32>
    %4 = vector.extract_strided_slice %0 {offsets = [0, 3], sizes = [4, 1], strides = [1, 1]} : vector<4x8xf32> to vector<4x1xf32>
    %5 = vector.extract_strided_slice %0 {offsets = [0, 4], sizes = [1, 1], strides = [1, 1]} : vector<4x8xf32> to vector<1x1xf32>
    %c0_1 = arith.constant 0 : index
    %c0_2 = arith.constant 0 : index
    %c0_3 = arith.constant 0 : index
    %6 = vector.load %arg2[%c0_1, %c0_2, %c0_3] : memref<1x4x128xf32, #tpu.memory_space<vmem>>, vector<1x4x128xf32>
    %7 = vector.shape_cast %6 : vector<1x4x128xf32> to vector<4x128xf32>
    %c0_4 = arith.constant 0 : index
    %c0_5 = arith.constant 0 : index
    %8 = vector.load %arg4[%c0_4, %c0_5] : memref<2x4xf32, #tpu.memory_space<vmem>>, vector<2x4xf32>
    %cst = arith.constant dense<0.000000e+00> : vector<2x128xf32>
    %9 = tpu.matmul %8, %7, %cst {dimension_numbers = #tpu.dot_dimension_numbers<[1], [0], [0], [1], [0, 0, 1, 1], [], []>, precision = #tpu.contract_precision<fp32>} : vector<2x4xf32>, vector<4x128xf32>, vector<2x128xf32> -> vector<2x128xf32>
    %c0_6 = arith.constant 0 : index
    %c0_7 = arith.constant 0 : index
    %c0_8 = arith.constant 0 : index
    %10 = vector.load %arg3[%c0_6, %c0_7, %c0_8] : memref<1x2x128xf32, #tpu.memory_space<vmem>>, vector<1x2x128xf32>
    %11 = vector.shape_cast %10 : vector<1x2x128xf32> to vector<2x128xf32>
    %12 = arith.addf %9, %11 : vector<2x128xf32>
    %13 = vector.broadcast %1 : vector<2x1xf32> to vector<2x128xf32>
    %14 = arith.addf %12, %13 : vector<2x128xf32>
    %cst_9 = arith.constant 0.000000e+00 : f32
    %15 = vector.broadcast %cst_9 : f32 to vector<2x128xf32>
    %16 = arith.maximumf %14, %15 : vector<2x128xf32>
    %17 = vector.broadcast %2 : vector<2x1xf32> to vector<2x128xf32>
    %18 = arith.mulf %16, %17 : vector<2x128xf32>
    %cst_10 = arith.constant dense<0.000000e+00> : vector<128xf32>
    %19 = vector.multi_reduction <add>, %18, %cst_10 [0] : vector<2x128xf32> to vector<128xf32>
    %20 = vector.shape_cast %19 : vector<128xf32> to vector<1x128xf32>
    %21 = vector.broadcast %5 : vector<1x1xf32> to vector<1x128xf32>
    %22 = arith.addf %20, %21 : vector<1x128xf32>
    %23 = arith.negf %22 : vector<1x128xf32>
    %24 = math.exp %23 : vector<1x128xf32>
    %cst_11 = arith.constant 1.000000e+00 : f32
    %25 = vector.broadcast %cst_11 : f32 to vector<1x128xf32>
    %26 = arith.addf %25, %24 : vector<1x128xf32>
    %27 = arith.divf %25, %26 : vector<1x128xf32>
    %28 = vector.broadcast %27 : vector<1x128xf32> to vector<4x128xf32>
    %29 = arith.mulf %28, %7 : vector<4x128xf32>
    %30 = vector.broadcast %3 : vector<4x1xf32> to vector<4x128xf32>
    %31 = arith.mulf %30, %29 : vector<4x128xf32>
    %32 = arith.addf %7, %31 : vector<4x128xf32>
    %33 = vector.broadcast %4 : vector<4x1xf32> to vector<4x128xf32>
    %34 = arith.addf %32, %33 : vector<4x128xf32>
    %cst_12 = arith.constant 0.000000e+00 : f32
    %35 = vector.broadcast %cst_12 : f32 to vector<4x128xf32>
    %36 = arith.maximumf %34, %35 : vector<4x128xf32>
    %c0_13 = arith.constant 0 : index
    %c0_14 = arith.constant 0 : index
    %c0_15 = arith.constant 0 : index
    %37 = vector.load %arg6[%c0_13, %c0_14, %c0_15] : memref<1x4x128xf32, #tpu.memory_space<vmem>>, vector<1x4x128xf32>
    %38 = vector.shape_cast %37 : vector<1x4x128xf32> to vector<4x128xf32>
    %39 = vector.shape_cast %36 : vector<4x128xf32> to vector<1x4x128xf32>
    tpu.vector_store %arg6[%c0_13, %c0_14, %c0_15], %39 {strides = array<i32>} : memref<1x4x128xf32, #tpu.memory_space<vmem>>, vector<1x4x128xf32>,
    return
  }
  func.func @transform_0(%arg0: i32, %arg1: i32) -> (i32, i32, i32) {
    %c0_i32 = arith.constant 0 : i32
    %c0_i32_0 = arith.constant 0 : i32
    return %arg0, %c0_i32, %arg1 : i32, i32, i32
  }
  func.func @transform_1(%arg0: i32, %arg1: i32) -> (i32, i32, i32) {
    %c0_i32 = arith.constant 0 : i32
    %c0_i32_0 = arith.constant 0 : i32
    return %arg0, %c0_i32, %arg1 : i32, i32, i32
  }
  func.func @transform_2(%arg0: i32, %arg1: i32) -> (i32, i32) {
    %c0_i32 = arith.constant 0 : i32
    %c0_i32_0 = arith.constant 0 : i32
    %c0_i32_1 = arith.constant 0 : i32
    return %c0_i32, %c0_i32_0 : i32, i32
  }
  func.func @transform_3(%arg0: i32, %arg1: i32) -> (i32, i32) {
    %c0_i32 = arith.constant 0 : i32
    %c0_i32_0 = arith.constant 0 : i32
    %c0_i32_1 = arith.constant 0 : i32
    return %c0_i32, %c0_i32_0 : i32, i32
  }
  func.func @transform_4(%arg0: i32, %arg1: i32) -> (i32, i32, i32) {
    %c0_i32 = arith.constant 0 : i32
    %c0_i32_0 = arith.constant 0 : i32
    return %arg0, %c0_i32, %arg1 : i32, i32, i32
  }
}

</mosaic_0001>

<llo_original>
// kernel: attention_gate2.6
$region0: #{attention_gate2.6}
  #allocation0 [shape = 'u32[]', space=smem, size = 0x4, offset = 0x4, fixed_abs, tag = 'smem constant byte address 0x4 - core index']
  #allocation1 [shape = 'u32[72,128]{1,0:T(1,128)}', space=vmem, size = 0x9000, scoped, tag = 'internal scratch']
  %s0 = inlined_call_operand.vmem [shape: f32[2,16,16], index: 0, kind: input, shape index: {}]
  %s1 = inlined_call_operand.vmem [shape: f32[4,16], index: 1, kind: input, shape index: {}]
  %s2 = inlined_call_operand.vmem [shape: f32[2,4,16], index: 2, kind: output, shape index: {}]
  %s3 = sld [smem:[#allocation0]]
  $region41: #{attention_gate2.6} parent=0
    _
  %s5 = ssub.s32 1, %s3
  %s6 = scalar_select 0, %s5, %s3
  loop: start=0, step=1, limit=4
  $region2: #{attention_gate2.6} parent=0 // loop_pre_header
    _
  $region3: #{attention_gate2.6} parent=0 // loop_header
    %s8 = sphi 0, %s12
    %p9 = scmp.ge.s32.totalorder %s8, 4
    %s15 = sphi 0, %s27
    %s16 = sphi 0, %s23
    %s17 = sphi 0, %s15
    %s18 = sphi 0, %s16
    %s19 = sphi 0, %s17
    %s20 = sphi 0, %s18
    %s32 = sphi 0, %s34
    %s35 = sphi 0, %s32
    %s36 = sphi 0, %s35
    %s52 = sphi 0, %s36
    %s56 = sphi 0, %s56
    %s58 = sphi 0, %s56
    %s59 = sphi 0, %s58
    %s73 = sphi 0, %s59
    %s81 = sphi 0, %s83
    %s84 = sphi 0, %s81
    %s85 = sphi 0, %s84
    %s101 = sphi 0, %s85
  $region4: #{attention_gate2.6} parent=0 // loop_header_branch
    %11 = sbr.rel (%p9) target = $region8
  $region5: #{attention_gate2.6} parent=0 // loop_body
    %s13 = ssub.s32 %s8, 1
    %s14 = ssub.s32 %s8, 2
    %s21 = sadd.s32 1, %s16
    %p22 = scmp.ge.s32.totalorder %s21, 1
    %s23 = scalar_select %p22, 0, %s21
    %s24 = sadd.s32 1, %s15
    %s25 = scalar_select %p22, %s24, %s15
    %p26 = scmp.ge.s32.totalorder %s25, 2
    %s27 = scalar_select %p26, 0, %s25
    %s28 = ssub.s32 %s15, %s27
    %s29 = ssub.s32 %s16, %s23
    %s30 = sor.u32 %s28, %s29
    %p31 = scmp.eq.s32.totalorder %s30, 0
    %s33 = sadd.s32 %s32, 1
    %s34 = scalar_select %p31, %s32, %s33
    %p37 = pneg %p31
    %p38 = scmp.eq.s32.totalorder %s8, 1
    %p39 = por %p37, %p38
    %p40 = scmp.ne.s32.totalorder %s32, %s35
    %p41 = scmp.eq.s32.totalorder %s8, 0
    %p42 = por %p40, %p41
    %p43 = scmp.ne.s32.totalorder %s32, %s35
    %p44 = scmp.eq.s32.totalorder %s13, 1
    %p45 = por %p43, %p44
    %p46 = scmp.ne.s32.totalorder %s35, %s36
    %p47 = scmp.eq.s32.totalorder %s13, 0
    %p48 = por %p46, %p47
    %p49 = scmp.ne.s32.totalorder %s35, %s36
    %p50 = scmp.eq.s32.totalorder %s14, 1
    %p51 = por %p49, %p50
    %p53 = scmp.ne.s32.totalorder %s36, %s52
    %p54 = scmp.eq.s32.totalorder %s14, 0
    %p55 = por %p53, %p54
    %s57 = sadd.s32 %s56, 1
    %p60 = scmp.eq.s32.totalorder %s8, 1
    %p61 = scmp.ne.s32.totalorder %s56, %s58
    %p62 = scmp.eq.s32.totalorder %s8, 0
    %p63 = por %p61, %p62
    %p64 = scmp.ne.s32.totalorder %s56, %s58
    %p65 = scmp.eq.s32.totalorder %s13, 1
    %p66 = por %p64, %p65
    %p67 = scmp.ne.s32.totalorder %s58, %s59
    %p68 = scmp.eq.s32.totalorder %s13, 0
    %p69 = por %p67, %p68
    %p70 = scmp.ne.s32.totalorder %s58, %s59
    %p71 = scmp.eq.s32.totalorder %s14, 1
    %p72 = por %p70, %p71
    %p74 = scmp.ne.s32.totalorder %s59, %s73
    %p75 = scmp.eq.s32.totalorder %s14, 0
    %p76 = por %p74, %p75
    %s77 = ssub.s32 %s15, %s27
    %s78 = ssub.s32 %s16, %s23
    %s79 = sor.u32 %s77, %s78
    %p80 = scmp.eq.s32.totalorder %s79, 0
    %s82 = sadd.s32 %s81, 1
    %s83 = scalar_select %p80, %s81, %s82
    %p86 = pneg %p80
    %p87 = scmp.eq.s32.totalorder %s8, 1
    %p88 = por %p86, %p87
    %p89 = scmp.ne.s32.totalorder %s81, %s84
    %p90 = scmp.eq.s32.totalorder %s8, 0
    %p91 = por %p89, %p90
    %p92 = scmp.ne.s32.totalorder %s81, %s84
    %p93 = scmp.eq.s32.totalorder %s13, 1
    %p94 = por %p92, %p93
    %p95 = scmp.ne.s32.totalorder %s84, %s85
    %p96 = scmp.eq.s32.totalorder %s13, 0
    %p97 = por %p95, %p96
    %p98 = scmp.ne.s32.totalorder %s84, %s85
    %p99 = scmp.eq.s32.totalorder %s14, 1
    %p100 = por %p98, %p99
    %p102 = scmp.ne.s32.totalorder %s85, %s101
    %p103 = scmp.eq.s32.totalorder %s14, 0
    %p104 = por %p102, %p103
    %p105 = scmp.le.s32.totalorder 1, %s8
    %p106 = scmp.lt.s32.totalorder %s8, 3
    %p107 = pnand %p105, %p106
    %p108 = pneg %p107
    // Predicated region
    $region9: #{attention_gate2.6} parent=5 // pred_check
      _
    $region10: #{attention_gate2.6} parent=5 // pred_check_branch
      %110 = sbr.rel (%p107) target = $region12
    $region11: #{attention_gate2.6} parent=5 // pred_region
      %s111 = ssub.s32 %s8, 1
      // Predicated region
      $region13: #{attention_gate2.6} parent=11 // pred_check
        %p112 = pneg %p69
      $region14: #{attention_gate2.6} parent=11 // pred_check_branch
        %114 = sbr.rel (%p112) target = $region16
      $region15: #{attention_gate2.6} parent=11 // pred_region
        _
      $region16: #{attention_gate2.6} parent=11 // pred_fallthru
        _
    $region12: #{attention_gate2.6} parent=5 // pred_fallthru
      _
    %p115 = scmp.lt.s32.totalorder %s8, 2
    // Predicated region
    $region17: #{attention_gate2.6} parent=5 // pred_check
      %p116 = pneg %p115
    $region18: #{attention_gate2.6} parent=5 // pred_check_branch
      %118 = sbr.rel (%p116) target = $region20
    $region19: #{attention_gate2.6} parent=5 // pred_region
      // Predicated region
      $region21: #{attention_gate2.6} parent=19 // pred_check
        %p119 = pneg %p42
      $region22: #{attention_gate2.6} parent=19 // pred_check_branch
        %121 = sbr.rel (%p119) target = $region24
      $region23: #{attention_gate2.6} parent=19 // pred_region
        %p122 = scmp.lt.s32.totalorder %s15, 1
        %s123 = scalar_select %p122, %s15, 1
        %p124 = scmp.lt.s32.totalorder %s16, 0
        %s125 = scalar_select %p124, %s16, 0
        %s126 = smul.addr %s123, 2
        %s127 = sadd.s32 %s125, %s126
        %s128 = smul.addr %s127, 8
        %s129 = scalar_lea.vmem %s0, %s128
      $region24: #{attention_gate2.6} parent=19 // pred_fallthru
        _
    $region20: #{attention_gate2.6} parent=5 // pred_fallthru
      _
    %p130 = scmp.le.s32.totalorder 1, %s8
    %p131 = scmp.lt.s32.totalorder %s8, 3
    %p132 = pnand %p130, %p131
    %p133 = pneg %p132
    // Predicated region
    $region25: #{attention_gate2.6} parent=5 // pred_check
      _
    $region26: #{attention_gate2.6} parent=5 // pred_check_branch
      %135 = sbr.rel (%p132) target = $region28
    $region27: #{attention_gate2.6} parent=5 // pred_region
      %s136 = ssub.s32 %s8, 1
      %p137 = scmp.lt.s32.totalorder %s17, 1
      %s138 = scalar_select %p137, %s17, 1
      %p139 = scmp.lt.s32.totalorder %s18, 0
      %s140 = scalar_select %p139, %s18, 0
      %s141 = smul.addr %s138, 2
      %s142 = sadd.s32 %s140, %s141
      %s143 = smul.addr %s142, 8
      %s144 = scalar_lea.vmem %s0, %s143
      %p145 = pneg %p48
      %p146 = pneg %p45
      %p147 = pneg %p69
      %p148 = pneg %p66
      %p149 = pneg %p97
      %p150 = pneg %p94
      %p151 = scmp.lt.s32.totalorder %s17, 1
      %s152 = scalar_select %p151, %s17, 1
      %p153 = scmp.lt.s32.totalorder %s18, 0
      %s154 = scalar_select %p153, %s18, 0
      %s155 = sadd.s32 %s154, %s152
      %s156 = smul.addr %s155, 4
      %s157 = scalar_lea.vmem %s2, %s156
      %p158 = scmp.lt.s32.totalorder %s17, 1
      %s159 = scalar_select %p158, %s17, 1
      %p160 = scmp.lt.s32.totalorder %s18, 0
      %s161 = scalar_select %p160, %s18, 0
      %s162 = smul.addr %s159, 2
      %s163 = sadd.s32 %s161, %s162
      %s164 = smul.addr %s163, 8
      %s165 = scalar_lea.vmem %s0, %s164
      %p166 = scmp.lt.s32.totalorder %s17, 1
      %s167 = scalar_select %p166, %s17, 1
      %p168 = scmp.lt.s32.totalorder %s18, 0
      %s169 = scalar_select %p168, %s18, 0
      %s170 = sadd.s32 %s169, %s167
      %s171 = smul.addr %s170, 4
      %s172 = scalar_lea.vmem %s2, %s171
      %v173 = vld [vmem:[%s1] sm:$0xf]
      %v174 = vld [vmem:[%s165] sm:$0xff]
      %v175 = vld [vmem:[%s165 + $0x8] sm:$0xff]
      %vm176 = vcmask 130048
      %v178 = vsel %vm176, %v173, 0
      %180 = vmatpush.msra.mxu0 0.0
      %181 = vmatpush.msra.mxu0 0.0
      %182 = vmatpush.msra.mxu0 0.0
      %183 = vmatpush.msra.mxu0 0.0
      %184 = vmatpush.msra.mxu0 0.0
      %185 = vmatpush.msra.mxu0 0.0
      %186 = vmatpush.msra.mxu0 0.0
      %187 = vmatpush.msra.mxu0 0.0
      %188 = vmatpush.msra.mxu0 0.0
      %189 = vmatpush.msra.mxu0 0.0
      %190 = vmatpush.msra.mxu0 0.0
      %191 = vmatpush.msra.mxu0 0.0
      %192 = vmatpush.msra.mxu0 0.0
      %193 = vmatpush.msra.mxu0 0.0
      %v194 = vand.u32 %v175, 4294901760
      %195 = vmatpush.msra.mxu0 %v194
      %v196 = vand.u32 %v174, 4294901760
      %197 = vmatpush.msra.mxu0 %v196
      %v198 = vand.u32 %v178, 4294901760
      %v199 = vsub.f32 %v178, %v198
      %v200 = vand.u32 %v199, 4294901760
      %v201 = vsub.f32 %v199, %v200
      %v202 = vand.u32 %v201, 4294901760
      %203 = vmatmul.f32.gmra.mxu0 %v202
      %v204 = vpop.f32.mrf.mxu0
      %v205 = vadd.f32 0.0, %v204
      %206 = vdwg.mxu0
      %207 = vmatpush.msra.mxu0 0.0
      %208 = vmatpush.msra.mxu0 0.0
      %209 = vmatpush.msra.mxu0 0.0
      %210 = vmatpush.msra.mxu0 0.0
      %211 = vmatpush.msra.mxu0 0.0
      %212 = vmatpush.msra.mxu0 0.0
      %213 = vmatpush.msra.mxu0 0.0
      %214 = vmatpush.msra.mxu0 0.0
      %215 = vmatpush.msra.mxu0 0.0
      %216 = vmatpush.msra.mxu0 0.0
      %217 = vmatpush.msra.mxu0 0.0
      %218 = vmatpush.msra.mxu0 0.0
      %219 = vmatpush.msra.mxu0 0.0
      %220 = vmatpush.msra.mxu0 0.0
      %v221 = vand.u32 %v175, 4294901760
      %v222 = vsub.f32 %v175, %v221
      %v223 = vand.u32 %v222, 4294901760
      %v224 = vsub.f32 %v222, %v223
      %v225 = vand.u32 %v224, 4294901760
      %226 = vmatpush.msra.mxu0 %v225
      %v227 = vand.u32 %v174, 4294901760
      %v228 = vsub.f32 %v174, %v227
      %v229 = vand.u32 %v228, 4294901760
      %v230 = vsub.f32 %v228, %v229
      %v231 = vand.u32 %v230, 4294901760
      %232 = vmatpush.msra.mxu0 %v231
      %v233 = vand.u32 %v178, 4294901760
      %234 = vmatmul.f32.gmra.mxu0 %v233
      %v235 = vpop.f32.mrf.mxu0
      %v236 = vadd.f32 %v205, %v235
      %237 = vdwg.mxu0
      %238 = vmatpush.msra.mxu0 0.0
      %239 = vmatpush.msra.mxu0 0.0
      %240 = vmatpush.msra.mxu0 0.0
      %241 = vmatpush.msra.mxu0 0.0
      %242 = vmatpush.msra.mxu0 0.0
      %243 = vmatpush.msra.mxu0 0.0
      %244 = vmatpush.msra.mxu0 0.0
      %245 = vmatpush.msra.mxu0 0.0
      %246 = vmatpush.msra.mxu0 0.0
      %247 = vmatpush.msra.mxu0 0.0
      %248 = vmatpush.msra.mxu0 0.0
      %249 = vmatpush.msra.mxu0 0.0
      %250 = vmatpush.msra.mxu0 0.0
      %251 = vmatpush.msra.mxu0 0.0
      %v252 = vand.u32 %v175, 4294901760
      %v253 = vsub.f32 %v175, %v252
      %254 = vmatpush.msra.mxu0 %v253
      %v255 = vand.u32 %v174, 4294901760
      %v256 = vsub.f32 %v174, %v255
      %257 = vmatpush.msra.mxu0 %v256
      %v258 = vand.u32 %v178, 4294901760
      %v259 = vsub.f32 %v178, %v258
      %260 = vmatmul.f32.gmra.mxu0 %v259
      %v261 = vpop.f32.mrf.mxu0
      %v262 = vadd.f32 %v236, %v261
      %263 = vdwg.mxu0
      %264 = vmatpush.msra.mxu0 0.0
      %265 = vmatpush.msra.mxu0 0.0
      %266 = vmatpush.msra.mxu0 0.0
      %267 = vmatpush.msra.mxu0 0.0
      %268 = vmatpush.msra.mxu0 0.0
      %269 = vmatpush.msra.mxu0 0.0
      %270 = vmatpush.msra.mxu0 0.0
      %271 = vmatpush.msra.mxu0 0.0
      %272 = vmatpush.msra.mxu0 0.0
      %273 = vmatpush.msra.mxu0 0.0
      %274 = vmatpush.msra.mxu0 0.0
      %275 = vmatpush.msra.mxu0 0.0
      %276 = vmatpush.msra.mxu0 0.0
      %277 = vmatpush.msra.mxu0 0.0
      %v278 = vand.u32 %v175, 4294901760
      %279 = vmatpush.msra.mxu0 %v278
      %v280 = vand.u32 %v174, 4294901760
      %281 = vmatpush.msra.mxu0 %v280
      %v282 = vand.u32 %v178, 4294901760
      %v283 = vsub.f32 %v178, %v282
      %v284 = vand.u32 %v283, 4294901760
      %285 = vmatmul.f32.gmra.mxu0 %v284
      %v286 = vpop.f32.mrf.mxu0
      %v287 = vadd.f32 %v262, %v286
      %288 = vdwg.mxu0
      %289 = vmatpush.msra.mxu0 0.0
      %290 = vmatpush.msra.mxu0 0.0
      %291 = vmatpush.msra.mxu0 0.0
      %292 = vmatpush.msra.mxu0 0.0
      %293 = vmatpush.msra.mxu0 0.0
      %294 = vmatpush.msra.mxu0 0.0
      %295 = vmatpush.msra.mxu0 0.0
      %296 = vmatpush.msra.mxu0 0.0
      %297 = vmatpush.msra.mxu0 0.0
      %298 = vmatpush.msra.mxu0 0.0
      %299 = vmatpush.msra.mxu0 0.0
      %300 = vmatpush.msra.mxu0 0.0
      %301 = vmatpush.msra.mxu0 0.0
      %302 = vmatpush.msra.mxu0 0.0
      %v303 = vand.u32 %v175, 4294901760
      %v304 = vsub.f32 %v175, %v303
      %v305 = vand.u32 %v304, 4294901760
      %306 = vmatpush.msra.mxu0 %v305
      %v307 = vand.u32 %v174, 4294901760
      %v308 = vsub.f32 %v174, %v307
      %v309 = vand.u32 %v308, 4294901760
      %310 = vmatpush.msra.mxu0 %v309
      %v311 = vand.u32 %v178, 4294901760
      %312 = vmatmul.f32.gmra.mxu0 %v311
      %v313 = vpop.f32.mrf.mxu0
      %v314 = vadd.f32 %v287, %v313
      %315 = vdwg.mxu0
      %316 = vmatpush.msra.mxu0 0.0
      %317 = vmatpush.msra.mxu0 0.0
      %318 = vmatpush.msra.mxu0 0.0
      %319 = vmatpush.msra.mxu0 0.0
      %320 = vmatpush.msra.mxu0 0.0
      %321 = vmatpush.msra.mxu0 0.0
      %322 = vmatpush.msra.mxu0 0.0
      %323 = vmatpush.msra.mxu0 0.0
      %324 = vmatpush.msra.mxu0 0.0
      %325 = vmatpush.msra.mxu0 0.0
      %326 = vmatpush.msra.mxu0 0.0
      %327 = vmatpush.msra.mxu0 0.0
      %328 = vmatpush.msra.mxu0 0.0
      %329 = vmatpush.msra.mxu0 0.0
      %v330 = vand.u32 %v175, 4294901760
      %331 = vmatpush.msra.mxu0 %v330
      %v332 = vand.u32 %v174, 4294901760
      %333 = vmatpush.msra.mxu0 %v332
      %v334 = vand.u32 %v178, 4294901760
      %335 = vmatmul.f32.gmra.mxu0 %v334
      %v336 = vpop.f32.mrf.mxu0
      %v337 = vadd.f32 %v314, %v336
      %338 = vdwg.mxu0
      %vm339 = vcmask 125952
      %340 = vst.msk [vmem:[%s172] sm:$0xf] %vm339, %v337
      %p341 = scmp.lt.s32.totalorder %s17, 1
      %s342 = scalar_select %p341, %s17, 1
      %p343 = scmp.lt.s32.totalorder %s18, 0
      %s344 = scalar_select %p343, %s18, 0
      %s345 = sadd.s32 %s344, %s342
      %s346 = smul.addr %s345, 4
      %s347 = scalar_lea.vmem %s2, %s346
      // Predicated region
      $region29: #{attention_gate2.6} parent=27 // pred_check
        %p348 = pneg %p94
      $region30: #{attention_gate2.6} parent=27 // pred_check_branch
        %350 = sbr.rel (%p348) target = $region32
      $region31: #{attention_gate2.6} parent=27 // pred_region
        _
      $region32: #{attention_gate2.6} parent=27 // pred_fallthru
        _
    $region28: #{attention_gate2.6} parent=5 // pred_fallthru
      _
    %p351 = scmp.le.s32.totalorder 2, %s8
    // Predicated region
    $region33: #{attention_gate2.6} parent=5 // pred_check
      %p352 = pneg %p351
    $region34: #{attention_gate2.6} parent=5 // pred_check_branch
      %354 = sbr.rel (%p352) target = $region36
    $region35: #{attention_gate2.6} parent=5 // pred_region
      %s355 = ssub.s32 %s8, 2
      // Predicated region
      $region37: #{attention_gate2.6} parent=35 // pred_check
        %p356 = pneg %p100
      $region38: #{attention_gate2.6} parent=35 // pred_check_branch
        %358 = sbr.rel (%p356) target = $region40
      $region39: #{attention_gate2.6} parent=35 // pred_region
        %p359 = scmp.lt.s32.totalorder %s19, 1
        %s360 = scalar_select %p359, %s19, 1
        %p361 = scmp.lt.s32.totalorder %s20, 0
        %s362 = scalar_select %p361, %s20, 0
        %s363 = sadd.s32 %s362, %s360
        %s364 = smul.addr %s363, 4
        %s365 = scalar_lea.vmem %s2, %s364
      $region40: #{attention_gate2.6} parent=35 // pred_fallthru
        _
    $region36: #{attention_gate2.6} parent=5 // pred_fallthru
      _
  $region6: #{attention_gate2.6} parent=0 // loop_footer
    %s12 = sadd.s32 1, %s8
  $region7: #{attention_gate2.6} parent=0 // loop_footer_branch
    %7 = sbr.rel target = $region3
  $region8: #{attention_gate2.6} parent=0 // loop_exit
    _

// kernel: attention_gate2.7
$region0: #{attention_gate2.7}
  #allocation0 [shape = 'u32[]', space=smem, size = 0x4, offset = 0x4, fixed_abs, tag = 'smem constant byte address 0x4 - core index']
  #allocation1 [shape = 'u32[72,128]{1,0:T(1,128)}', space=vmem, size = 0x9000, scoped, tag = 'internal scratch']
  %s0 = inlined_call_operand.vmem [shape: f32[2,16,4], index: 0, kind: input, shape index: {}]
  %s1 = inlined_call_operand.vmem [shape: f32[8,4], index: 1, kind: input, shape index: {}]
  %s2 = inlined_call_operand.vmem [shape: f32[4,8], index: 2, kind: input, shape index: {}]
  %s3 = inlined_call_operand.vmem [shape: f32[2,4,8,8], index: 3, kind: output, shape index: {}]
  %s4 = sld [smem:[#allocation0]]
  $region45: #{attention_gate2.7} parent=0
    _
  %s6 = ssub.s32 1, %s4
  %s7 = scalar_select 0, %s6, %s4
  loop: start=0, step=1, limit=4
  $region2: #{attention_gate2.7} parent=0 // loop_pre_header
    _
  $region3: #{attention_gate2.7} parent=0 // loop_header
    %s9 = sphi 0, %s13
    %p10 = scmp.ge.s32.totalorder %s9, 4
    %s16 = sphi 0, %s28
    %s17 = sphi 0, %s24
    %s18 = sphi 0, %s16
    %s19 = sphi 0, %s17
    %s20 = sphi 0, %s18
    %s21 = sphi 0, %s19
    %s33 = sphi 0, %s35
    %s36 = sphi 0, %s33
    %s37 = sphi 0, %s36
    %s53 = sphi 0, %s37
    %s57 = sphi 0, %s57
    %s59 = sphi 0, %s57
    %s60 = sphi 0, %s59
    %s74 = sphi 0, %s60
    %s78 = sphi 0, %s78
    %s80 = sphi 0, %s78
    %s81 = sphi 0, %s80
    %s95 = sphi 0, %s81
    %s103 = sphi 0, %s105
    %s106 = sphi 0, %s103
    %s107 = sphi 0, %s106
    %s123 = sphi 0, %s107
  $region4: #{attention_gate2.7} parent=0 // loop_header_branch
    %12 = sbr.rel (%p10) target = $region8
  $region5: #{attention_gate2.7} parent=0 // loop_body
    %s14 = ssub.s32 %s9, 1
    %s15 = ssub.s32 %s9, 2
    %s22 = sadd.s32 1, %s17
    %p23 = scmp.ge.s32.totalorder %s22, 1
    %s24 = scalar_select %p23, 0, %s22
    %s25 = sadd.s32 1, %s16
    %s26 = scalar_select %p23, %s25, %s16
    %p27 = scmp.ge.s32.totalorder %s26, 2
    %s28 = scalar_select %p27, 0, %s26
    %s29 = ssub.s32 %s16, %s28
    %s30 = ssub.s32 %s17, %s24
    %s31 = sor.u32 %s29, %s30
    %p32 = scmp.eq.s32.totalorder %s31, 0
    %s34 = sadd.s32 %s33, 1
    %s35 = scalar_select %p32, %s33, %s34
    %p38 = pneg %p32
    %p39 = scmp.eq.s32.totalorder %s9, 1
    %p40 = por %p38, %p39
    %p41 = scmp.ne.s32.totalorder %s33, %s36
    %p42 = scmp.eq.s32.totalorder %s9, 0
    %p43 = por %p41, %p42
    %p44 = scmp.ne.s32.totalorder %s33, %s36
    %p45 = scmp.eq.s32.totalorder %s14, 1
    %p46 = por %p44, %p45
    %p47 = scmp.ne.s32.totalorder %s36, %s37
    %p48 = scmp.eq.s32.totalorder %s14, 0
    %p49 = por %p47, %p48
    %p50 = scmp.ne.s32.totalorder %s36, %s37
    %p51 = scmp.eq.s32.totalorder %s15, 1
    %p52 = por %p50, %p51
    %p54 = scmp.ne.s32.totalorder %s37, %s53
    %p55 = scmp.eq.s32.totalorder %s15, 0
    %p56 = por %p54, %p55
    %s58 = sadd.s32 %s57, 1
    %p61 = scmp.eq.s32.totalorder %s9, 1
    %p62 = scmp.ne.s32.totalorder %s57, %s59
    %p63 = scmp.eq.s32.totalorder %s9, 0
    %p64 = por %p62, %p63
    %p65 = scmp.ne.s32.totalorder %s57, %s59
    %p66 = scmp.eq.s32.totalorder %s14, 1
    %p67 = por %p65, %p66
    %p68 = scmp.ne.s32.totalorder %s59, %s60
    %p69 = scmp.eq.s32.totalorder %s14, 0
    %p70 = por %p68, %p69
    %p71 = scmp.ne.s32.totalorder %s59, %s60
    %p72 = scmp.eq.s32.totalorder %s15, 1
    %p73 = por %p71, %p72
    %p75 = scmp.ne.s32.totalorder %s60, %s74
    %p76 = scmp.eq.s32.totalorder %s15, 0
    %p77 = por %p75, %p76
    %s79 = sadd.s32 %s78, 1
    %p82 = scmp.eq.s32.totalorder %s9, 1
    %p83 = scmp.ne.s32.totalorder %s78, %s80
    %p84 = scmp.eq.s32.totalorder %s9, 0
    %p85 = por %p83, %p84
    %p86 = scmp.ne.s32.totalorder %s78, %s80
    %p87 = scmp.eq.s32.totalorder %s14, 1
    %p88 = por %p86, %p87
    %p89 = scmp.ne.s32.totalorder %s80, %s81
    %p90 = scmp.eq.s32.totalorder %s14, 0
    %p91 = por %p89, %p90
    %p92 = scmp.ne.s32.totalorder %s80, %s81
    %p93 = scmp.eq.s32.totalorder %s15, 1
    %p94 = por %p92, %p93
    %p96 = scmp.ne.s32.totalorder %s81, %s95
    %p97 = scmp.eq.s32.totalorder %s15, 0
    %p98 = por %p96, %p97
    %s99 = ssub.s32 %s16, %s28
    %s100 = ssub.s32 %s17, %s24
    %s101 = sor.u32 %s99, %s100
    %p102 = scmp.eq.s32.totalorder %s101, 0
    %s104 = sadd.s32 %s103, 1
    %s105 = scalar_select %p102, %s103, %s104
    %p108 = pneg %p102
    %p109 = scmp.eq.s32.totalorder %s9, 1
    %p110 = por %p108, %p109
    %p111 = scmp.ne.s32.totalorder %s103, %s106
    %p112 = scmp.eq.s32.totalorder %s9, 0
    %p113 = por %p111, %p112
    %p114 = scmp.ne.s32.totalorder %s103, %s106
    %p115 = scmp.eq.s32.totalorder %s14, 1
    %p116 = por %p114, %p115
    %p117 = scmp.ne.s32.totalorder %s106, %s107
    %p118 = scmp.eq.s32.totalorder %s14, 0
    %p119 = por %p117, %p118
    %p120 = scmp.ne.s32.totalorder %s106, %s107
    %p121 = scmp.eq.s32.totalorder %s15, 1
    %p122 = por %p120, %p121
    %p124 = scmp.ne.s32.totalorder %s107, %s123
    %p125 = scmp.eq.s32.totalorder %s15, 0
    %p126 = por %p124, %p125
    %p127 = scmp.le.s32.totalorder 1, %s9
    %p128 = scmp.lt.s32.totalorder %s9, 3
    %p129 = pnand %p127, %p128
    %p130 = pneg %p129
    // Predicated region
    $region9: #{attention_gate2.7} parent=5 // pred_check
      _
    $region10: #{attention_gate2.7} parent=5 // pred_check_branch
      %132 = sbr.rel (%p129) target = $region12
    $region11: #{attention_gate2.7} parent=5 // pred_region
      %s133 = ssub.s32 %s9, 1
      // Predicated region
      $region13: #{attention_gate2.7} parent=11 // pred_check
        %p134 = pneg %p70
      $region14: #{attention_gate2.7} parent=11 // pred_check_branch
        %136 = sbr.rel (%p134) target = $region16
      $region15: #{attention_gate2.7} parent=11 // pred_region
        _
      $region16: #{attention_gate2.7} parent=11 // pred_fallthru
        _
      // Predicated region
      $region17: #{attention_gate2.7} parent=11 // pred_check
        %p137 = pneg %p91
      $region18: #{attention_gate2.7} parent=11 // pred_check_branch
        %139 = sbr.rel (%p137) target = $region20
      $region19: #{attention_gate2.7} parent=11 // pred_region
        _
      $region20: #{attention_gate2.7} parent=11 // pred_fallthru
        _
    $region12: #{attention_gate2.7} parent=5 // pred_fallthru
      _
    %p140 = scmp.lt.s32.totalorder %s9, 2
    // Predicated region
    $region21: #{attention_gate2.7} parent=5 // pred_check
      %p141 = pneg %p140
    $region22: #{attention_gate2.7} parent=5 // pred_check_branch
      %143 = sbr.rel (%p141) target = $region24
    $region23: #{attention_gate2.7} parent=5 // pred_region
      // Predicated region
      $region25: #{attention_gate2.7} parent=23 // pred_check
        %p144 = pneg %p43
      $region26: #{attention_gate2.7} parent=23 // pred_check_branch
        %146 = sbr.rel (%p144) target = $region28
      $region27: #{attention_gate2.7} parent=23 // pred_region
        %s147 = smul.u32 2, %s17
        %p148 = scmp.lt.s32.totalorder %s16, 1
        %s149 = scalar_select %p148, %s16, 1
        %p150 = scmp.lt.s32.totalorder %s147, 1
        %s151 = scalar_select %p150, %s147, 1
        %s152 = smul.addr %s149, 2
        %s153 = sadd.s32 %s151, %s152
        %s154 = smul.addr %s153, 8
        %s155 = scalar_lea.vmem %s0, %s154
        %s156 = smul.u32 2, %s17
      $region28: #{attention_gate2.7} parent=23 // pred_fallthru
        _
    $region24: #{attention_gate2.7} parent=5 // pred_fallthru
      _
    %p157 = scmp.le.s32.totalorder 1, %s9
    %p158 = scmp.lt.s32.totalorder %s9, 3
    %p159 = pnand %p157, %p158
    %p160 = pneg %p159
    // Predicated region
    $region29: #{attention_gate2.7} parent=5 // pred_check
      _
    $region30: #{attention_gate2.7} parent=5 // pred_check_branch
      %162 = sbr.rel (%p159) target = $region32
    $region31: #{attention_gate2.7} parent=5 // pred_region
      %s163 = ssub.s32 %s9, 1
      %s164 = smul.u32 2, %s19
      %p165 = scmp.lt.s32.totalorder %s18, 1
      %s166 = scalar_select %p165, %s18, 1
      %p167 = scmp.lt.s32.totalorder %s164, 1
      %s168 = scalar_select %p167, %s164, 1
      %s169 = smul.addr %s166, 2
      %s170 = sadd.s32 %s168, %s169
      %s171 = smul.addr %s170, 8
      %s172 = scalar_lea.vmem %s0, %s171
      %p173 = pneg %p49
      %p174 = pneg %p46
      %p175 = pneg %p70
      %p176 = pneg %p67
      %p177 = pneg %p91
      %p178 = pneg %p88
      %p179 = pneg %p119
      %p180 = pneg %p116
      %s181 = smul.u32 4, %s19
      %p182 = scmp.lt.s32.totalorder %s18, 1
      %s183 = scalar_select %p182, %s18, 1
      %p184 = scmp.lt.s32.totalorder %s181, 3
      %s185 = scalar_select %p184, %s181, 3
      %s186 = smul.addr %s183, 4
      %s187 = sadd.s32 %s185, %s186
      %s188 = smul.addr %s187, 8
      %s189 = scalar_lea.vmem %s3, %s188
      %s190 = smul.u32 2, %s19
      %p191 = scmp.lt.s32.totalorder %s18, 1
      %s192 = scalar_select %p191, %s18, 1
      %p193 = scmp.lt.s32.totalorder %s190, 1
      %s194 = scalar_select %p193, %s190, 1
      %s195 = smul.addr %s192, 2
      %s196 = sadd.s32 %s194, %s195
      %s197 = smul.addr %s196, 8
      %s198 = scalar_lea.vmem %s0, %s197
      %s199 = smul.u32 2, %s19
      %s200 = smul.u32 4, %s19
      %p201 = scmp.lt.s32.totalorder %s18, 1
      %s202 = scalar_select %p201, %s18, 1
      %p203 = scmp.lt.s32.totalorder %s200, 3
      %s204 = scalar_select %p203, %s200, 3
      %s205 = smul.addr %s202, 4
      %s206 = sadd.s32 %s204, %s205
      %s207 = smul.addr %s206, 8
      %s208 = scalar_lea.vmem %s3, %s207
      %s209 = smul.u32 4, %s19
      %v210 = vld [vmem:[%s198] sm:$0xff]
      %v211 = vld [vmem:[%s198 + $0x8] sm:$0xff]
      %v212 = vld [vmem:[%s2] sm:$0xf]
      %vm213 = vcmask 31744
      %v215 = vsel %vm213, %v210, 0
      %v218 = vsel %vm213, %v211, 0
      %vm220 = vcmask 1043456
      %v222 = vsel %vm220, %v212, 0
      %224 = vmatpush.msra.mxu0 0.0
      %225 = vmatpush.msra.mxu0 0.0
      %226 = vmatpush.msra.mxu0 0.0
      %227 = vmatpush.msra.mxu0 0.0
      %228 = vmatpush.msra.mxu0 0.0
      %229 = vmatpush.msra.mxu0 0.0
      %230 = vmatpush.msra.mxu0 0.0
      %231 = vmatpush.msra.mxu0 0.0
      %232 = vmatpush.msra.mxu0 0.0
      %233 = vmatpush.msra.mxu0 0.0
      %234 = vmatpush.msra.mxu0 0.0
      %235 = vmatpush.msra.mxu0 0.0
      %236 = vmatpush.msra.mxu0 0.0
      %237 = vmatpush.msra.mxu0 0.0
      %238 = vmatpush.msra.mxu0 0.0
      %v239 = vand.u32 %v222, 4294901760
      %240 = vmatpush.msra.mxu0 %v239
      %v241 = vand.u32 %v215, 4294901760
      %v242 = vsub.f32 %v215, %v241
      %v243 = vand.u32 %v242, 4294901760
      %v244 = vsub.f32 %v242, %v243
      %v245 = vand.u32 %v244, 4294901760
      %246 = vmatmul.f32.gmra.mxu0 %v245
      %v247 = vpop.f32.mrf.mxu0
      %v248 = vadd.f32 0.0, %v247
      %v249 = vand.u32 %v218, 4294901760
      %v250 = vsub.f32 %v218, %v249
      %v251 = vand.u32 %v250, 4294901760
      %v252 = vsub.f32 %v250, %v251
      %v253 = vand.u32 %v252, 4294901760
      %254 = vmatmul.f32.gmra.mxu0 %v253
      %v255 = vpop.f32.mrf.mxu0
      %v256 = vadd.f32 0.0, %v255
      %257 = vdwg.mxu0
      %258 = vmatpush.msra.mxu0 0.0
      %259 = vmatpush.msra.mxu0 0.0
      %260 = vmatpush.msra.mxu0 0.0
      %261 = vmatpush.msra.mxu0 0.0
      %262 = vmatpush.msra.mxu0 0.0
      %263 = vmatpush.msra.mxu0 0.0
      %264 = vmatpush.msra.mxu0 0.0
      %265 = vmatpush.msra.mxu0 0.0
      %266 = vmatpush.msra.mxu0 0.0
      %267 = vmatpush.msra.mxu0 0.0
      %268 = vmatpush.msra.mxu0 0.0
      %269 = vmatpush.msra.mxu0 0.0
      %270 = vmatpush.msra.mxu0 0.0
      %271 = vmatpush.msra.mxu0 0.0
      %272 = vmatpush.msra.mxu0 0.0
      %v273 = vand.u32 %v222, 4294901760
      %v274 = vsub.f32 %v222, %v273
      %v275 = vand.u32 %v274, 4294901760
      %v276 = vsub.f32 %v274, %v275
      %v277 = vand.u32 %v276, 4294901760
      %278 = vmatpush.msra.mxu0 %v277
      %v279 = vand.u32 %v215, 4294901760
      %280 = vmatmul.f32.gmra.mxu0 %v279
      %v281 = vpop.f32.mrf.mxu0
      %v282 = vadd.f32 %v248, %v281
      %v283 = vand.u32 %v218, 4294901760
      %284 = vmatmul.f32.gmra.mxu0 %v283
      %v285 = vpop.f32.mrf.mxu0
      %v286 = vadd.f32 %v256, %v285
      %287 = vdwg.mxu0
      %288 = vmatpush.msra.mxu0 0.0
      %289 = vmatpush.msra.mxu0 0.0
      %290 = vmatpush.msra.mxu0 0.0
      %291 = vmatpush.msra.mxu0 0.0
      %292 = vmatpush.msra.mxu0 0.0
      %293 = vmatpush.msra.mxu0 0.0
      %294 = vmatpush.msra.mxu0 0.0
      %295 = vmatpush.msra.mxu0 0.0
      %296 = vmatpush.msra.mxu0 0.0
      %297 = vmatpush.msra.mxu0 0.0
      %298 = vmatpush.msra.mxu0 0.0
      %299 = vmatpush.msra.mxu0 0.0
      %300 = vmatpush.msra.mxu0 0.0
      %301 = vmatpush.msra.mxu0 0.0
      %302 = vmatpush.msra.mxu0 0.0
      %v303 = vand.u32 %v222, 4294901760
      %v304 = vsub.f32 %v222, %v303
      %305 = vmatpush.msra.mxu0 %v304
      %v306 = vand.u32 %v215, 4294901760
      %v307 = vsub.f32 %v215, %v306
      %308 = vmatmul.f32.gmra.mxu0 %v307
      %v309 = vpop.f32.mrf.mxu0
      %v310 = vadd.f32 %v282, %v309
      %v311 = vand.u32 %v218, 4294901760
      %v312 = vsub.f32 %v218, %v311
      %313 = vmatmul.f32.gmra.mxu0 %v312
      %v314 = vpop.f32.mrf.mxu0
      %v315 = vadd.f32 %v286, %v314
      %316 = vdwg.mxu0
      %317 = vmatpush.msra.mxu0 0.0
      %318 = vmatpush.msra.mxu0 0.0
      %319 = vmatpush.msra.mxu0 0.0
      %320 = vmatpush.msra.mxu0 0.0
      %321 = vmatpush.msra.mxu0 0.0
      %322 = vmatpush.msra.mxu0 0.0
      %323 = vmatpush.msra.mxu0 0.0
      %324 = vmatpush.msra.mxu0 0.0
      %325 = vmatpush.msra.mxu0 0.0
      %326 = vmatpush.msra.mxu0 0.0
      %327 = vmatpush.msra.mxu0 0.0
      %328 = vmatpush.msra.mxu0 0.0
      %329 = vmatpush.msra.mxu0 0.0
      %330 = vmatpush.msra.mxu0 0.0
      %331 = vmatpush.msra.mxu0 0.0
      %v332 = vand.u32 %v222, 4294901760
      %333 = vmatpush.msra.mxu0 %v332
      %v334 = vand.u32 %v215, 4294901760
      %v335 = vsub.f32 %v215, %v334
      %v336 = vand.u32 %v335, 4294901760
      %337 = vmatmul.f32.gmra.mxu0 %v336
      %v338 = vpop.f32.mrf.mxu0
      %v339 = vadd.f32 %v310, %v338
      %v340 = vand.u32 %v218, 4294901760
      %v341 = vsub.f32 %v218, %v340
      %v342 = vand.u32 %v341, 4294901760
      %343 = vmatmul.f32.gmra.mxu0 %v342
      %v344 = vpop.f32.mrf.mxu0
      %v345 = vadd.f32 %v315, %v344
      %346 = vdwg.mxu0
      %347 = vmatpush.msra.mxu0 0.0
      %348 = vmatpush.msra.mxu0 0.0
      %349 = vmatpush.msra.mxu0 0.0
      %350 = vmatpush.msra.mxu0 0.0
      %351 = vmatpush.msra.mxu0 0.0
      %352 = vmatpush.msra.mxu0 0.0
      %353 = vmatpush.msra.mxu0 0.0
      %354 = vmatpush.msra.mxu0 0.0
      %355 = vmatpush.msra.mxu0 0.0
      %356 = vmatpush.msra.mxu0 0.0
      %357 = vmatpush.msra.mxu0 0.0
      %358 = vmatpush.msra.mxu0 0.0
      %359 = vmatpush.msra.mxu0 0.0
      %360 = vmatpush.msra.mxu0 0.0
      %361 = vmatpush.msra.mxu0 0.0
      %v362 = vand.u32 %v222, 4294901760
      %v363 = vsub.f32 %v222, %v362
      %v364 = vand.u32 %v363, 4294901760
      %365 = vmatpush.msra.mxu0 %v364
      %v366 = vand.u32 %v215, 4294901760
      %367 = vmatmul.f32.gmra.mxu0 %v366
      %v368 = vpop.f32.mrf.mxu0
      %v369 = vadd.f32 %v339, %v368
      %v370 = vand.u32 %v218, 4294901760
      %371 = vmatmul.f32.gmra.mxu0 %v370
      %v372 = vpop.f32.mrf.mxu0
      %v373 = vadd.f32 %v345, %v372
      %374 = vdwg.mxu0
      %375 = vmatpush.msra.mxu0 0.0
      %376 = vmatpush.msra.mxu0 0.0
      %377 = vmatpush.msra.mxu0 0.0
      %378 = vmatpush.msra.mxu0 0.0
      %379 = vmatpush.msra.mxu0 0.0
      %380 = vmatpush.msra.mxu0 0.0
      %381 = vmatpush.msra.mxu0 0.0
      %382 = vmatpush.msra.mxu0 0.0
      %383 = vmatpush.msra.mxu0 0.0
      %384 = vmatpush.msra.mxu0 0.0
      %385 = vmatpush.msra.mxu0 0.0
      %386 = vmatpush.msra.mxu0 0.0
      %387 = vmatpush.msra.mxu0 0.0
      %388 = vmatpush.msra.mxu0 0.0
      %389 = vmatpush.msra.mxu0 0.0
      %v390 = vand.u32 %v222, 4294901760
      %391 = vmatpush.msra.mxu0 %v390
      %v392 = vand.u32 %v215, 4294901760
      %393 = vmatmul.f32.gmra.mxu0 %v392
      %v394 = vpop.f32.mrf.mxu0
      %v395 = vadd.f32 %v369, %v394
      %v396 = vand.u32 %v218, 4294901760
      %397 = vmatmul.f32.gmra.mxu0 %v396
      %v398 = vpop.f32.mrf.mxu0
      %v399 = vadd.f32 %v373, %v398
      %400 = vdwg.mxu0
      %v401 = vld [vmem:[%s1] sm:$0xff]
      %v403 = vsel %vm213, %v401, 0
      %v406 = vsel %vm220, %v395, 0
      %408 = vmatpush.msra.mxu0 0.0
      %409 = vmatpush.msra.mxu0 0.0
      %410 = vmatpush.msra.mxu0 0.0
      %411 = vmatpush.msra.mxu0 0.0
      %412 = vmatpush.msra.mxu0 0.0
      %413 = vmatpush.msra.mxu0 0.0
      %414 = vmatpush.msra.mxu0 0.0
      %415 = vmatpush.msra.mxu0 0.0
      %416 = vmatpush.msra.mxu0 0.0
      %417 = vmatpush.msra.mxu0 0.0
      %418 = vmatpush.msra.mxu0 0.0
      %419 = vmatpush.msra.mxu0 0.0
      %420 = vmatpush.msra.mxu0 0.0
      %421 = vmatpush.msra.mxu0 0.0
      %422 = vmatpush.msra.mxu0 0.0
      %v423 = vand.u32 %v406, 4294901760
      %424 = vmatpush.msra.mxu0 %v423
      %v425 = vand.u32 %v403, 4294901760
      %v426 = vsub.f32 %v403, %v425
      %v427 = vand.u32 %v426, 4294901760
      %v428 = vsub.f32 %v426, %v427
      %v429 = vand.u32 %v428, 4294901760
      %430 = vmatmul.f32.gmra.mxu0 %v429
      %v431 = vpop.f32.mrf.mxu0
      %v432 = vadd.f32 0.0, %v431
      %433 = vdwg.mxu0
      %434 = vmatpush.msra.mxu0 0.0
      %435 = vmatpush.msra.mxu0 0.0
      %436 = vmatpush.msra.mxu0 0.0
      %437 = vmatpush.msra.mxu0 0.0
      %438 = vmatpush.msra.mxu0 0.0
      %439 = vmatpush.msra.mxu0 0.0
      %440 = vmatpush.msra.mxu0 0.0
      %441 = vmatpush.msra.mxu0 0.0
      %442 = vmatpush.msra.mxu0 0.0
      %443 = vmatpush.msra.mxu0 0.0
      %444 = vmatpush.msra.mxu0 0.0
      %445 = vmatpush.msra.mxu0 0.0
      %446 = vmatpush.msra.mxu0 0.0
      %447 = vmatpush.msra.mxu0 0.0
      %448 = vmatpush.msra.mxu0 0.0
      %v449 = vand.u32 %v406, 4294901760
      %v450 = vsub.f32 %v406, %v449
      %v451 = vand.u32 %v450, 4294901760
      %v452 = vsub.f32 %v450, %v451
      %v453 = vand.u32 %v452, 4294901760
      %454 = vmatpush.msra.mxu0 %v453
      %v455 = vand.u32 %v403, 4294901760
      %456 = vmatmul.f32.gmra.mxu0 %v455
      %v457 = vpop.f32.mrf.mxu0
      %v458 = vadd.f32 %v432, %v457
      %459 = vdwg.mxu0
      %460 = vmatpush.msra.mxu0 0.0
      %461 = vmatpush.msra.mxu0 0.0
      %462 = vmatpush.msra.mxu0 0.0
      %463 = vmatpush.msra.mxu0 0.0
      %464 = vmatpush.msra.mxu0 0.0
      %465 = vmatpush.msra.mxu0 0.0
      %466 = vmatpush.msra.mxu0 0.0
      %467 = vmatpush.msra.mxu0 0.0
      %468 = vmatpush.msra.mxu0 0.0
      %469 = vmatpush.msra.mxu0 0.0
      %470 = vmatpush.msra.mxu0 0.0
      %471 = vmatpush.msra.mxu0 0.0
      %472 = vmatpush.msra.mxu0 0.0
      %473 = vmatpush.msra.mxu0 0.0
      %474 = vmatpush.msra.mxu0 0.0
      %v475 = vand.u32 %v406, 4294901760
      %v476 = vsub.f32 %v406, %v475
      %477 = vmatpush.msra.mxu0 %v476
      %v478 = vand.u32 %v403, 4294901760
      %v479 = vsub.f32 %v403, %v478
      %480 = vmatmul.f32.gmra.mxu0 %v479
      %v481 = vpop.f32.mrf.mxu0
      %v482 = vadd.f32 %v458, %v481
      %483 = vdwg.mxu0
      %484 = vmatpush.msra.mxu0 0.0
      %485 = vmatpush.msra.mxu0 0.0
      %486 = vmatpush.msra.mxu0 0.0
      %487 = vmatpush.msra.mxu0 0.0
      %488 = vmatpush.msra.mxu0 0.0
      %489 = vmatpush.msra.mxu0 0.0
      %490 = vmatpush.msra.mxu0 0.0
      %491 = vmatpush.msra.mxu0 0.0
      %492 = vmatpush.msra.mxu0 0.0
      %493 = vmatpush.msra.mxu0 0.0
      %494 = vmatpush.msra.mxu0 0.0
      %495 = vmatpush.msra.mxu0 0.0
      %496 = vmatpush.msra.mxu0 0.0
      %497 = vmatpush.msra.mxu0 0.0
      %498 = vmatpush.msra.mxu0 0.0
      %v499 = vand.u32 %v406, 4294901760
      %500 = vmatpush.msra.mxu0 %v499
      %v501 = vand.u32 %v403, 4294901760
      %v502 = vsub.f32 %v403, %v501
      %v503 = vand.u32 %v502, 4294901760
      %504 = vmatmul.f32.gmra.mxu0 %v503
      %v505 = vpop.f32.mrf.mxu0
      %v506 = vadd.f32 %v482, %v505
      %507 = vdwg.mxu0
      %508 = vmatpush.msra.mxu0 0.0
      %509 = vmatpush.msra.mxu0 0.0
      %510 = vmatpush.msra.mxu0 0.0
      %511 = vmatpush.msra.mxu0 0.0
      %512 = vmatpush.msra.mxu0 0.0
      %513 = vmatpush.msra.mxu0 0.0
      %514 = vmatpush.msra.mxu0 0.0
      %515 = vmatpush.msra.mxu0 0.0
      %516 = vmatpush.msra.mxu0 0.0
      %517 = vmatpush.msra.mxu0 0.0
      %518 = vmatpush.msra.mxu0 0.0
      %519 = vmatpush.msra.mxu0 0.0
      %520 = vmatpush.msra.mxu0 0.0
      %521 = vmatpush.msra.mxu0 0.0
      %522 = vmatpush.msra.mxu0 0.0
      %v523 = vand.u32 %v406, 4294901760
      %v524 = vsub.f32 %v406, %v523
      %v525 = vand.u32 %v524, 4294901760
      %526 = vmatpush.msra.mxu0 %v525
      %v527 = vand.u32 %v403, 4294901760
      %528 = vmatmul.f32.gmra.mxu0 %v527
      %v529 = vpop.f32.mrf.mxu0
      %v530 = vadd.f32 %v506, %v529
      %531 = vdwg.mxu0
      %532 = vmatpush.msra.mxu0 0.0
      %533 = vmatpush.msra.mxu0 0.0
      %534 = vmatpush.msra.mxu0 0.0
      %535 = vmatpush.msra.mxu0 0.0
      %536 = vmatpush.msra.mxu0 0.0
      %537 = vmatpush.msra.mxu0 0.0
      %538 = vmatpush.msra.mxu0 0.0
      %539 = vmatpush.msra.mxu0 0.0
      %540 = vmatpush.msra.mxu0 0.0
      %541 = vmatpush.msra.mxu0 0.0
      %542 = vmatpush.msra.mxu0 0.0
      %543 = vmatpush.msra.mxu0 0.0
      %544 = vmatpush.msra.mxu0 0.0
      %545 = vmatpush.msra.mxu0 0.0
      %546 = vmatpush.msra.mxu0 0.0
      %v547 = vand.u32 %v406, 4294901760
      %548 = vmatpush.msra.mxu0 %v547
      %v549 = vand.u32 %v403, 4294901760
      %550 = vmatmul.f32.gmra.mxu0 %v549
      %v551 = vpop.f32.mrf.mxu0
      %v552 = vadd.f32 %v530, %v551
      %553 = vdwg.mxu0
      %vm554 = vcmask 64512
      %555 = vst.msk [vmem:[%s208] sm:$0xff] %vm554, %v552
      %v556 = vrot.slane %v395, 4
      %v557 = vsel %vm220, %v556, 0
      %559 = vmatpush.msra.mxu0 0.0
      %560 = vmatpush.msra.mxu0 0.0
      %561 = vmatpush.msra.mxu0 0.0
      %562 = vmatpush.msra.mxu0 0.0
      %563 = vmatpush.msra.mxu0 0.0
      %564 = vmatpush.msra.mxu0 0.0
      %565 = vmatpush.msra.mxu0 0.0
      %566 = vmatpush.msra.mxu0 0.0
      %567 = vmatpush.msra.mxu0 0.0
      %568 = vmatpush.msra.mxu0 0.0
      %569 = vmatpush.msra.mxu0 0.0
      %570 = vmatpush.msra.mxu0 0.0
      %571 = vmatpush.msra.mxu0 0.0
      %572 = vmatpush.msra.mxu0 0.0
      %573 = vmatpush.msra.mxu0 0.0
      %v574 = vand.u32 %v557, 4294901760
      %575 = vmatpush.msra.mxu0 %v574
      %v576 = vand.u32 %v403, 4294901760
      %v577 = vsub.f32 %v403, %v576
      %v578 = vand.u32 %v577, 4294901760
      %v579 = vsub.f32 %v577, %v578
      %v580 = vand.u32 %v579, 4294901760
      %581 = vmatmul.f32.gmra.mxu0 %v580
      %v582 = vpop.f32.mrf.mxu0
      %v583 = vadd.f32 0.0, %v582
      %584 = vdwg.mxu0
      %585 = vmatpush.msra.mxu0 0.0
      %586 = vmatpush.msra.mxu0 0.0
      %587 = vmatpush.msra.mxu0 0.0
      %588 = vmatpush.msra.mxu0 0.0
      %589 = vmatpush.msra.mxu0 0.0
      %590 = vmatpush.msra.mxu0 0.0
      %591 = vmatpush.msra.mxu0 0.0
      %592 = vmatpush.msra.mxu0 0.0
      %593 = vmatpush.msra.mxu0 0.0
      %594 = vmatpush.msra.mxu0 0.0
      %595 = vmatpush.msra.mxu0 0.0
      %596 = vmatpush.msra.mxu0 0.0
      %597 = vmatpush.msra.mxu0 0.0
      %598 = vmatpush.msra.mxu0 0.0
      %599 = vmatpush.msra.mxu0 0.0
      %v600 = vand.u32 %v557, 4294901760
      %v601 = vsub.f32 %v557, %v600
      %v602 = vand.u32 %v601, 4294901760
      %v603 = vsub.f32 %v601, %v602
      %v604 = vand.u32 %v603, 4294901760
      %605 = vmatpush.msra.mxu0 %v604
      %v606 = vand.u32 %v403, 4294901760
      %607 = vmatmul.f32.gmra.mxu0 %v606
      %v608 = vpop.f32.mrf.mxu0
      %v609 = vadd.f32 %v583, %v608
      %610 = vdwg.mxu0
      %611 = vmatpush.msra.mxu0 0.0
      %612 = vmatpush.msra.mxu0 0.0
      %613 = vmatpush.msra.mxu0 0.0
      %614 = vmatpush.msra.mxu0 0.0
      %615 = vmatpush.msra.mxu0 0.0
      %616 = vmatpush.msra.mxu0 0.0
      %617 = vmatpush.msra.mxu0 0.0
      %618 = vmatpush.msra.mxu0 0.0
      %619 = vmatpush.msra.mxu0 0.0
      %620 = vmatpush.msra.mxu0 0.0
      %621 = vmatpush.msra.mxu0 0.0
      %622 = vmatpush.msra.mxu0 0.0
      %623 = vmatpush.msra.mxu0 0.0
      %624 = vmatpush.msra.mxu0 0.0
      %625 = vmatpush.msra.mxu0 0.0
      %v626 = vand.u32 %v557, 4294901760
      %v627 = vsub.f32 %v557, %v626
      %628 = vmatpush.msra.mxu0 %v627
      %v629 = vand.u32 %v403, 4294901760
      %v630 = vsub.f32 %v403, %v629
      %631 = vmatmul.f32.gmra.mxu0 %v630
      %v632 = vpop.f32.mrf.mxu0
      %v633 = vadd.f32 %v609, %v632
      %634 = vdwg.mxu0
      %635 = vmatpush.msra.mxu0 0.0
      %636 = vmatpush.msra.mxu0 0.0
      %637 = vmatpush.msra.mxu0 0.0
      %638 = vmatpush.msra.mxu0 0.0
      %639 = vmatpush.msra.mxu0 0.0
      %640 = vmatpush.msra.mxu0 0.0
      %641 = vmatpush.msra.mxu0 0.0
      %642 = vmatpush.msra.mxu0 0.0
      %643 = vmatpush.msra.mxu0 0.0
      %644 = vmatpush.msra.mxu0 0.0
      %645 = vmatpush.msra.mxu0 0.0
      %646 = vmatpush.msra.mxu0 0.0
      %647 = vmatpush.msra.mxu0 0.0
      %648 = vmatpush.msra.mxu0 0.0
      %649 = vmatpush.msra.mxu0 0.0
      %v650 = vand.u32 %v557, 4294901760
      %651 = vmatpush.msra.mxu0 %v650
      %v652 = vand.u32 %v403, 4294901760
      %v653 = vsub.f32 %v403, %v652
      %v654 = vand.u32 %v653, 4294901760
      %655 = vmatmul.f32.gmra.mxu0 %v654
      %v656 = vpop.f32.mrf.mxu0
      %v657 = vadd.f32 %v633, %v656
      %658 = vdwg.mxu0
      %659 = vmatpush.msra.mxu0 0.0
      %660 = vmatpush.msra.mxu0 0.0
      %661 = vmatpush.msra.mxu0 0.0
      %662 = vmatpush.msra.mxu0 0.0
      %663 = vmatpush.msra.mxu0 0.0
      %664 = vmatpush.msra.mxu0 0.0
      %665 = vmatpush.msra.mxu0 0.0
      %666 = vmatpush.msra.mxu0 0.0
      %667 = vmatpush.msra.mxu0 0.0
      %668 = vmatpush.msra.mxu0 0.0
      %669 = vmatpush.msra.mxu0 0.0
      %670 = vmatpush.msra.mxu0 0.0
      %671 = vmatpush.msra.mxu0 0.0
      %672 = vmatpush.msra.mxu0 0.0
      %673 = vmatpush.msra.mxu0 0.0
      %v674 = vand.u32 %v557, 4294901760
      %v675 = vsub.f32 %v557, %v674
      %v676 = vand.u32 %v675, 4294901760
      %677 = vmatpush.msra.mxu0 %v676
      %v678 = vand.u32 %v403, 4294901760
      %679 = vmatmul.f32.gmra.mxu0 %v678
      %v680 = vpop.f32.mrf.mxu0
      %v681 = vadd.f32 %v657, %v680
      %682 = vdwg.mxu0
      %683 = vmatpush.msra.mxu0 0.0
      %684 = vmatpush.msra.mxu0 0.0
      %685 = vmatpush.msra.mxu0 0.0
      %686 = vmatpush.msra.mxu0 0.0
      %687 = vmatpush.msra.mxu0 0.0
      %688 = vmatpush.msra.mxu0 0.0
      %689 = vmatpush.msra.mxu0 0.0
      %690 = vmatpush.msra.mxu0 0.0
      %691 = vmatpush.msra.mxu0 0.0
      %692 = vmatpush.msra.mxu0 0.0
      %693 = vmatpush.msra.mxu0 0.0
      %694 = vmatpush.msra.mxu0 0.0
      %695 = vmatpush.msra.mxu0 0.0
      %696 = vmatpush.msra.mxu0 0.0
      %697 = vmatpush.msra.mxu0 0.0
      %v698 = vand.u32 %v557, 4294901760
      %699 = vmatpush.msra.mxu0 %v698
      %v700 = vand.u32 %v403, 4294901760
      %701 = vmatmul.f32.gmra.mxu0 %v700
      %v702 = vpop.f32.mrf.mxu0
      %v703 = vadd.f32 %v681, %v702
      %704 = vdwg.mxu0
      %s705 = scalar_lea.vmem %s208, 8
      %706 = vst.msk [vmem:[%s705] sm:$0xff] %vm554, %v703
      %v708 = vsel %vm220, %v399, 0
      %710 = vmatpush.msra.mxu0 0.0
      %711 = vmatpush.msra.mxu0 0.0
      %712 = vmatpush.msra.mxu0 0.0
      %713 = vmatpush.msra.mxu0 0.0
      %714 = vmatpush.msra.mxu0 0.0
      %715 = vmatpush.msra.mxu0 0.0
      %716 = vmatpush.msra.mxu0 0.0
      %717 = vmatpush.msra.mxu0 0.0
      %718 = vmatpush.msra.mxu0 0.0
      %719 = vmatpush.msra.mxu0 0.0
      %720 = vmatpush.msra.mxu0 0.0
      %721 = vmatpush.msra.mxu0 0.0
      %722 = vmatpush.msra.mxu0 0.0
      %723 = vmatpush.msra.mxu0 0.0
      %724 = vmatpush.msra.mxu0 0.0
      %v725 = vand.u32 %v708, 4294901760
      %726 = vmatpush.msra.mxu0 %v725
      %v727 = vand.u32 %v403, 4294901760
      %v728 = vsub.f32 %v403, %v727
      %v729 = vand.u32 %v728, 4294901760
      %v730 = vsub.f32 %v728, %v729
      %v731 = vand.u32 %v730, 4294901760
      %732 = vmatmul.f32.gmra.mxu0 %v731
      %v733 = vpop.f32.mrf.mxu0
      %v734 = vadd.f32 0.0, %v733
      %735 = vdwg.mxu0
      %736 = vmatpush.msra.mxu0 0.0
      %737 = vmatpush.msra.mxu0 0.0
      %738 = vmatpush.msra.mxu0 0.0
      %739 = vmatpush.msra.mxu0 0.0
      %740 = vmatpush.msra.mxu0 0.0
      %741 = vmatpush.msra.mxu0 0.0
      %742 = vmatpush.msra.mxu0 0.0
      %743 = vmatpush.msra.mxu0 0.0
      %744 = vmatpush.msra.mxu0 0.0
      %745 = vmatpush.msra.mxu0 0.0
      %746 = vmatpush.msra.mxu0 0.0
      %747 = vmatpush.msra.mxu0 0.0
      %748 = vmatpush.msra.mxu0 0.0
      %749 = vmatpush.msra.mxu0 0.0
      %750 = vmatpush.msra.mxu0 0.0
      %v751 = vand.u32 %v708, 4294901760
      %v752 = vsub.f32 %v708, %v751
      %v753 = vand.u32 %v752, 4294901760
      %v754 = vsub.f32 %v752, %v753
      %v755 = vand.u32 %v754, 4294901760
      %756 = vmatpush.msra.mxu0 %v755
      %v757 = vand.u32 %v403, 4294901760
      %758 = vmatmul.f32.gmra.mxu0 %v757
      %v759 = vpop.f32.mrf.mxu0
      %v760 = vadd.f32 %v734, %v759
      %761 = vdwg.mxu0
      %762 = vmatpush.msra.mxu0 0.0
      %763 = vmatpush.msra.mxu0 0.0
      %764 = vmatpush.msra.mxu0 0.0
      %765 = vmatpush.msra.mxu0 0.0
      %766 = vmatpush.msra.mxu0 0.0
      %767 = vmatpush.msra.mxu0 0.0
      %768 = vmatpush.msra.mxu0 0.0
      %769 = vmatpush.msra.mxu0 0.0
      %770 = vmatpush.msra.mxu0 0.0
      %771 = vmatpush.msra.mxu0 0.0
      %772 = vmatpush.msra.mxu0 0.0
      %773 = vmatpush.msra.mxu0 0.0
      %774 = vmatpush.msra.mxu0 0.0
      %775 = vmatpush.msra.mxu0 0.0
      %776 = vmatpush.msra.mxu0 0.0
      %v777 = vand.u32 %v708, 4294901760
      %v778 = vsub.f32 %v708, %v777
      %779 = vmatpush.msra.mxu0 %v778
      %v780 = vand.u32 %v403, 4294901760
      %v781 = vsub.f32 %v403, %v780
      %782 = vmatmul.f32.gmra.mxu0 %v781
      %v783 = vpop.f32.mrf.mxu0
      %v784 = vadd.f32 %v760, %v783
      %785 = vdwg.mxu0
      %786 = vmatpush.msra.mxu0 0.0
      %787 = vmatpush.msra.mxu0 0.0
      %788 = vmatpush.msra.mxu0 0.0
      %789 = vmatpush.msra.mxu0 0.0
      %790 = vmatpush.msra.mxu0 0.0
      %791 = vmatpush.msra.mxu0 0.0
      %792 = vmatpush.msra.mxu0 0.0
      %793 = vmatpush.msra.mxu0 0.0
      %794 = vmatpush.msra.mxu0 0.0
      %795 = vmatpush.msra.mxu0 0.0
      %796 = vmatpush.msra.mxu0 0.0
      %797 = vmatpush.msra.mxu0 0.0
      %798 = vmatpush.msra.mxu0 0.0
      %799 = vmatpush.msra.mxu0 0.0
      %800 = vmatpush.msra.mxu0 0.0
      %v801 = vand.u32 %v708, 4294901760
      %802 = vmatpush.msra.mxu0 %v801
      %v803 = vand.u32 %v403, 4294901760
      %v804 = vsub.f32 %v403, %v803
      %v805 = vand.u32 %v804, 4294901760
      %806 = vmatmul.f32.gmra.mxu0 %v805
      %v807 = vpop.f32.mrf.mxu0
      %v808 = vadd.f32 %v784, %v807
      %809 = vdwg.mxu0
      %810 = vmatpush.msra.mxu0 0.0
      %811 = vmatpush.msra.mxu0 0.0
      %812 = vmatpush.msra.mxu0 0.0
      %813 = vmatpush.msra.mxu0 0.0
      %814 = vmatpush.msra.mxu0 0.0
      %815 = vmatpush.msra.mxu0 0.0
      %816 = vmatpush.msra.mxu0 0.0
      %817 = vmatpush.msra.mxu0 0.0
      %818 = vmatpush.msra.mxu0 0.0
      %819 = vmatpush.msra.mxu0 0.0
      %820 = vmatpush.msra.mxu0 0.0
      %821 = vmatpush.msra.mxu0 0.0
      %822 = vmatpush.msra.mxu0 0.0
      %823 = vmatpush.msra.mxu0 0.0
      %824 = vmatpush.msra.mxu0 0.0
      %v825 = vand.u32 %v708, 4294901760
      %v826 = vsub.f32 %v708, %v825
      %v827 = vand.u32 %v826, 4294901760
      %828 = vmatpush.msra.mxu0 %v827
      %v829 = vand.u32 %v403, 4294901760
      %830 = vmatmul.f32.gmra.mxu0 %v829
      %v831 = vpop.f32.mrf.mxu0
      %v832 = vadd.f32 %v808, %v831
      %833 = vdwg.mxu0
      %834 = vmatpush.msra.mxu0 0.0
      %835 = vmatpush.msra.mxu0 0.0
      %836 = vmatpush.msra.mxu0 0.0
      %837 = vmatpush.msra.mxu0 0.0
      %838 = vmatpush.msra.mxu0 0.0
      %839 = vmatpush.msra.mxu0 0.0
      %840 = vmatpush.msra.mxu0 0.0
      %841 = vmatpush.msra.mxu0 0.0
      %842 = vmatpush.msra.mxu0 0.0
      %843 = vmatpush.msra.mxu0 0.0
      %844 = vmatpush.msra.mxu0 0.0
      %845 = vmatpush.msra.mxu0 0.0
      %846 = vmatpush.msra.mxu0 0.0
      %847 = vmatpush.msra.mxu0 0.0
      %848 = vmatpush.msra.mxu0 0.0
      %v849 = vand.u32 %v708, 4294901760
      %850 = vmatpush.msra.mxu0 %v849
      %v851 = vand.u32 %v403, 4294901760
      %852 = vmatmul.f32.gmra.mxu0 %v851
      %v853 = vpop.f32.mrf.mxu0
      %v854 = vadd.f32 %v832, %v853
      %855 = vdwg.mxu0
      %s856 = scalar_lea.vmem %s208, 16
      %857 = vst.msk [vmem:[%s856] sm:$0xff] %vm554, %v854
      %v858 = vrot.slane %v399, 4
      %v859 = vsel %vm220, %v858, 0
      %861 = vmatpush.msra.mxu0 0.0
      %862 = vmatpush.msra.mxu0 0.0
      %863 = vmatpush.msra.mxu0 0.0
      %864 = vmatpush.msra.mxu0 0.0
      %865 = vmatpush.msra.mxu0 0.0
      %866 = vmatpush.msra.mxu0 0.0
      %867 = vmatpush.msra.mxu0 0.0
      %868 = vmatpush.msra.mxu0 0.0
      %869 = vmatpush.msra.mxu0 0.0
      %870 = vmatpush.msra.mxu0 0.0
      %871 = vmatpush.msra.mxu0 0.0
      %872 = vmatpush.msra.mxu0 0.0
      %873 = vmatpush.msra.mxu0 0.0
      %874 = vmatpush.msra.mxu0 0.0
      %875 = vmatpush.msra.mxu0 0.0
      %v876 = vand.u32 %v859, 4294901760
      %877 = vmatpush.msra.mxu0 %v876
      %v878 = vand.u32 %v403, 4294901760
      %v879 = vsub.f32 %v403, %v878
      %v880 = vand.u32 %v879, 4294901760
      %v881 = vsub.f32 %v879, %v880
      %v882 = vand.u32 %v881, 4294901760
      %883 = vmatmul.f32.gmra.mxu0 %v882
      %v884 = vpop.f32.mrf.mxu0
      %v885 = vadd.f32 0.0, %v884
      %886 = vdwg.mxu0
      %887 = vmatpush.msra.mxu0 0.0
      %888 = vmatpush.msra.mxu0 0.0
      %889 = vmatpush.msra.mxu0 0.0
      %890 = vmatpush.msra.mxu0 0.0
      %891 = vmatpush.msra.mxu0 0.0
      %892 = vmatpush.msra.mxu0 0.0
      %893 = vmatpush.msra.mxu0 0.0
      %894 = vmatpush.msra.mxu0 0.0
      %895 = vmatpush.msra.mxu0 0.0
      %896 = vmatpush.msra.mxu0 0.0
      %897 = vmatpush.msra.mxu0 0.0
      %898 = vmatpush.msra.mxu0 0.0
      %899 = vmatpush.msra.mxu0 0.0
      %900 = vmatpush.msra.mxu0 0.0
      %901 = vmatpush.msra.mxu0 0.0
      %v902 = vand.u32 %v859, 4294901760
      %v903 = vsub.f32 %v859, %v902
      %v904 = vand.u32 %v903, 4294901760
      %v905 = vsub.f32 %v903, %v904
      %v906 = vand.u32 %v905, 4294901760
      %907 = vmatpush.msra.mxu0 %v906
      %v908 = vand.u32 %v403, 4294901760
      %909 = vmatmul.f32.gmra.mxu0 %v908
      %v910 = vpop.f32.mrf.mxu0
      %v911 = vadd.f32 %v885, %v910
      %912 = vdwg.mxu0
      %913 = vmatpush.msra.mxu0 0.0
      %914 = vmatpush.msra.mxu0 0.0
      %915 = vmatpush.msra.mxu0 0.0
      %916 = vmatpush.msra.mxu0 0.0
      %917 = vmatpush.msra.mxu0 0.0
      %918 = vmatpush.msra.mxu0 0.0
      %919 = vmatpush.msra.mxu0 0.0
      %920 = vmatpush.msra.mxu0 0.0
      %921 = vmatpush.msra.mxu0 0.0
      %922 = vmatpush.msra.mxu0 0.0
      %923 = vmatpush.msra.mxu0 0.0
      %924 = vmatpush.msra.mxu0 0.0
      %925 = vmatpush.msra.mxu0 0.0
      %926 = vmatpush.msra.mxu0 0.0
      %927 = vmatpush.msra.mxu0 0.0
      %v928 = vand.u32 %v859, 4294901760
      %v929 = vsub.f32 %v859, %v928
      %930 = vmatpush.msra.mxu0 %v929
      %v931 = vand.u32 %v403, 4294901760
      %v932 = vsub.f32 %v403, %v931
      %933 = vmatmul.f32.gmra.mxu0 %v932
      %v934 = vpop.f32.mrf.mxu0
      %v935 = vadd.f32 %v911, %v934
      %936 = vdwg.mxu0
      %937 = vmatpush.msra.mxu0 0.0
      %938 = vmatpush.msra.mxu0 0.0
      %939 = vmatpush.msra.mxu0 0.0
      %940 = vmatpush.msra.mxu0 0.0
      %941 = vmatpush.msra.mxu0 0.0
      %942 = vmatpush.msra.mxu0 0.0
      %943 = vmatpush.msra.mxu0 0.0
      %944 = vmatpush.msra.mxu0 0.0
      %945 = vmatpush.msra.mxu0 0.0
      %946 = vmatpush.msra.mxu0 0.0
      %947 = vmatpush.msra.mxu0 0.0
      %948 = vmatpush.msra.mxu0 0.0
      %949 = vmatpush.msra.mxu0 0.0
      %950 = vmatpush.msra.mxu0 0.0
      %951 = vmatpush.msra.mxu0 0.0
      %v952 = vand.u32 %v859, 4294901760
      %953 = vmatpush.msra.mxu0 %v952
      %v954 = vand.u32 %v403, 4294901760
      %v955 = vsub.f32 %v403, %v954
      %v956 = vand.u32 %v955, 4294901760
      %957 = vmatmul.f32.gmra.mxu0 %v956
      %v958 = vpop.f32.mrf.mxu0
      %v959 = vadd.f32 %v935, %v958
      %960 = vdwg.mxu0
      %961 = vmatpush.msra.mxu0 0.0
      %962 = vmatpush.msra.mxu0 0.0
      %963 = vmatpush.msra.mxu0 0.0
      %964 = vmatpush.msra.mxu0 0.0
      %965 = vmatpush.msra.mxu0 0.0
      %966 = vmatpush.msra.mxu0 0.0
      %967 = vmatpush.msra.mxu0 0.0
      %968 = vmatpush.msra.mxu0 0.0
      %969 = vmatpush.msra.mxu0 0.0
      %970 = vmatpush.msra.mxu0 0.0
      %971 = vmatpush.msra.mxu0 0.0
      %972 = vmatpush.msra.mxu0 0.0
      %973 = vmatpush.msra.mxu0 0.0
      %974 = vmatpush.msra.mxu0 0.0
      %975 = vmatpush.msra.mxu0 0.0
      %v976 = vand.u32 %v859, 4294901760
      %v977 = vsub.f32 %v859, %v976
      %v978 = vand.u32 %v977, 4294901760
      %979 = vmatpush.msra.mxu0 %v978
      %v980 = vand.u32 %v403, 4294901760
      %981 = vmatmul.f32.gmra.mxu0 %v980
      %v982 = vpop.f32.mrf.mxu0
      %v983 = vadd.f32 %v959, %v982
      %984 = vdwg.mxu0
      %985 = vmatpush.msra.mxu0 0.0
      %986 = vmatpush.msra.mxu0 0.0
      %987 = vmatpush.msra.mxu0 0.0
      %988 = vmatpush.msra.mxu0 0.0
      %989 = vmatpush.msra.mxu0 0.0
      %990 = vmatpush.msra.mxu0 0.0
      %991 = vmatpush.msra.mxu0 0.0
      %992 = vmatpush.msra.mxu0 0.0
      %993 = vmatpush.msra.mxu0 0.0
      %994 = vmatpush.msra.mxu0 0.0
      %995 = vmatpush.msra.mxu0 0.0
      %996 = vmatpush.msra.mxu0 0.0
      %997 = vmatpush.msra.mxu0 0.0
      %998 = vmatpush.msra.mxu0 0.0
      %999 = vmatpush.msra.mxu0 0.0
      %v1000 = vand.u32 %v859, 4294901760
      %1001 = vmatpush.msra.mxu0 %v1000
      %v1002 = vand.u32 %v403, 4294901760
      %1003 = vmatmul.f32.gmra.mxu0 %v1002
      %v1004 = vpop.f32.mrf.mxu0
      %v1005 = vadd.f32 %v983, %v1004
      %1006 = vdwg.mxu0
      %s1007 = scalar_lea.vmem %s208, 24
      %1008 = vst.msk [vmem:[%s1007] sm:$0xff] %vm554, %v1005
      %s1009 = smul.u32 4, %s19
      %p1010 = scmp.lt.s32.totalorder %s18, 1
      %s1011 = scalar_select %p1010, %s18, 1
      %p1012 = scmp.lt.s32.totalorder %s1009, 3
      %s1013 = scalar_select %p1012, %s1009, 3
      %s1014 = smul.addr %s1011, 4
      %s1015 = sadd.s32 %s1013, %s1014
      %s1016 = smul.addr %s1015, 8
      %s1017 = scalar_lea.vmem %s3, %s1016
      // Predicated region
      $region33: #{attention_gate2.7} parent=31 // pred_check
        %p1018 = pneg %p116
      $region34: #{attention_gate2.7} parent=31 // pred_check_branch
        %1020 = sbr.rel (%p1018) target = $region36
      $region35: #{attention_gate2.7} parent=31 // pred_region
        %s1021 = smul.u32 4, %s19
      $region36: #{attention_gate2.7} parent=31 // pred_fallthru
        _
    $region32: #{attention_gate2.7} parent=5 // pred_fallthru
      _
    %p1022 = scmp.le.s32.totalorder 2, %s9
    // Predicated region
    $region37: #{attention_gate2.7} parent=5 // pred_check
      %p1023 = pneg %p1022
    $region38: #{attention_gate2.7} parent=5 // pred_check_branch
      %1025 = sbr.rel (%p1023) target = $region40
    $region39: #{attention_gate2.7} parent=5 // pred_region
      %s1026 = ssub.s32 %s9, 2
      // Predicated region
      $region41: #{attention_gate2.7} parent=39 // pred_check
        %p1027 = pneg %p122
      $region42: #{attention_gate2.7} parent=39 // pred_check_branch
        %1029 = sbr.rel (%p1027) target = $region44
      $region43: #{attention_gate2.7} parent=39 // pred_region
        %s1030 = smul.u32 4, %s21
        %p1031 = scmp.lt.s32.totalorder %s20, 1
        %s1032 = scalar_select %p1031, %s20, 1
        %p1033 = scmp.lt.s32.totalorder %s1030, 3
        %s1034 = scalar_select %p1033, %s1030, 3
        %s1035 = smul.addr %s1032, 4
        %s1036 = sadd.s32 %s1034, %s1035
        %s1037 = smul.addr %s1036, 8
        %s1038 = scalar_lea.vmem %s3, %s1037
      $region44: #{attention_gate2.7} parent=39 // pred_fallthru
        _
    $region40: #{attention_gate2.7} parent=5 // pred_fallthru
      _
  $region6: #{attention_gate2.7} parent=0 // loop_footer
    %s13 = sadd.s32 1, %s9
  $region7: #{attention_gate2.7} parent=0 // loop_footer_branch
    %8 = sbr.rel target = $region3
  $region8: #{attention_gate2.7} parent=0 // loop_exit
    _

// kernel: attention_gate2.8
$region0: #{attention_gate2.8}
  #allocation0 [shape = 'u32[]', space=smem, size = 0x4, offset = 0x4, fixed_abs, tag = 'smem constant byte address 0x4 - core index']
  #allocation1 [shape = 'u32[72,128]{1,0:T(1,128)}', space=vmem, size = 0x9000, scoped, tag = 'internal scratch']
  %s0 = inlined_call_operand.vmem [shape: f32[2,8,64], index: 0, kind: input, shape index: {}]
  %s1 = inlined_call_operand.vmem [shape: f32[2,4,64], index: 1, kind: input, shape index: {}]
  %s2 = inlined_call_operand.vmem [shape: f32[4,8], index: 2, kind: input, shape index: {}]
  %s3 = inlined_call_operand.vmem [shape: f32[8,8], index: 3, kind: input, shape index: {}]
  %s4 = inlined_call_operand.vmem [shape: f32[2,8,64], index: 4, kind: output, shape index: {}]
  %s5 = sld [smem:[#allocation0]]
  $region49: #{attention_gate2.8} parent=0
    _
  %s7 = ssub.s32 1, %s5
  %s8 = scalar_select 0, %s7, %s5
  loop: start=0, step=1, limit=4
  $region2: #{attention_gate2.8} parent=0 // loop_pre_header
    _
  $region3: #{attention_gate2.8} parent=0 // loop_header
    %s10 = sphi 0, %s14
    %p11 = scmp.ge.s32.totalorder %s10, 4
    %s17 = sphi 0, %s29
    %s18 = sphi 0, %s25
    %s19 = sphi 0, %s17
    %s20 = sphi 0, %s18
    %s21 = sphi 0, %s19
    %s22 = sphi 0, %s20
    %s34 = sphi 0, %s36
    %s37 = sphi 0, %s34
    %s38 = sphi 0, %s37
    %s54 = sphi 0, %s38
    %s62 = sphi 0, %s64
    %s65 = sphi 0, %s62
    %s66 = sphi 0, %s65
    %s82 = sphi 0, %s66
    %s86 = sphi 0, %s86
    %s88 = sphi 0, %s86
    %s89 = sphi 0, %s88
    %s103 = sphi 0, %s89
    %s107 = sphi 0, %s107
    %s109 = sphi 0, %s107
    %s110 = sphi 0, %s109
    %s124 = sphi 0, %s110
    %s132 = sphi 0, %s134
    %s135 = sphi 0, %s132
    %s136 = sphi 0, %s135
    %s152 = sphi 0, %s136
  $region4: #{attention_gate2.8} parent=0 // loop_header_branch
    %13 = sbr.rel (%p11) target = $region8
  $region5: #{attention_gate2.8} parent=0 // loop_body
    %s15 = ssub.s32 %s10, 1
    %s16 = ssub.s32 %s10, 2
    %s23 = sadd.s32 1, %s18
    %p24 = scmp.ge.s32.totalorder %s23, 1
    %s25 = scalar_select %p24, 0, %s23
    %s26 = sadd.s32 1, %s17
    %s27 = scalar_select %p24, %s26, %s17
    %p28 = scmp.ge.s32.totalorder %s27, 2
    %s29 = scalar_select %p28, 0, %s27
    %s30 = ssub.s32 %s17, %s29
    %s31 = ssub.s32 %s18, %s25
    %s32 = sor.u32 %s30, %s31
    %p33 = scmp.eq.s32.totalorder %s32, 0
    %s35 = sadd.s32 %s34, 1
    %s36 = scalar_select %p33, %s34, %s35
    %p39 = pneg %p33
    %p40 = scmp.eq.s32.totalorder %s10, 1
    %p41 = por %p39, %p40
    %p42 = scmp.ne.s32.totalorder %s34, %s37
    %p43 = scmp.eq.s32.totalorder %s10, 0
    %p44 = por %p42, %p43
    %p45 = scmp.ne.s32.totalorder %s34, %s37
    %p46 = scmp.eq.s32.totalorder %s15, 1
    %p47 = por %p45, %p46
    %p48 = scmp.ne.s32.totalorder %s37, %s38
    %p49 = scmp.eq.s32.totalorder %s15, 0
    %p50 = por %p48, %p49
    %p51 = scmp.ne.s32.totalorder %s37, %s38
    %p52 = scmp.eq.s32.totalorder %s16, 1
    %p53 = por %p51, %p52
    %p55 = scmp.ne.s32.totalorder %s38, %s54
    %p56 = scmp.eq.s32.totalorder %s16, 0
    %p57 = por %p55, %p56
    %s58 = ssub.s32 %s17, %s29
    %s59 = ssub.s32 %s18, %s25
    %s60 = sor.u32 %s58, %s59
    %p61 = scmp.eq.s32.totalorder %s60, 0
    %s63 = sadd.s32 %s62, 1
    %s64 = scalar_select %p61, %s62, %s63
    %p67 = pneg %p61
    %p68 = scmp.eq.s32.totalorder %s10, 1
    %p69 = por %p67, %p68
    %p70 = scmp.ne.s32.totalorder %s62, %s65
    %p71 = scmp.eq.s32.totalorder %s10, 0
    %p72 = por %p70, %p71
    %p73 = scmp.ne.s32.totalorder %s62, %s65
    %p74 = scmp.eq.s32.totalorder %s15, 1
    %p75 = por %p73, %p74
    %p76 = scmp.ne.s32.totalorder %s65, %s66
    %p77 = scmp.eq.s32.totalorder %s15, 0
    %p78 = por %p76, %p77
    %p79 = scmp.ne.s32.totalorder %s65, %s66
    %p80 = scmp.eq.s32.totalorder %s16, 1
    %p81 = por %p79, %p80
    %p83 = scmp.ne.s32.totalorder %s66, %s82
    %p84 = scmp.eq.s32.totalorder %s16, 0
    %p85 = por %p83, %p84
    %s87 = sadd.s32 %s86, 1
    %p90 = scmp.eq.s32.totalorder %s10, 1
    %p91 = scmp.ne.s32.totalorder %s86, %s88
    %p92 = scmp.eq.s32.totalorder %s10, 0
    %p93 = por %p91, %p92
    %p94 = scmp.ne.s32.totalorder %s86, %s88
    %p95 = scmp.eq.s32.totalorder %s15, 1
    %p96 = por %p94, %p95
    %p97 = scmp.ne.s32.totalorder %s88, %s89
    %p98 = scmp.eq.s32.totalorder %s15, 0
    %p99 = por %p97, %p98
    %p100 = scmp.ne.s32.totalorder %s88, %s89
    %p101 = scmp.eq.s32.totalorder %s16, 1
    %p102 = por %p100, %p101
    %p104 = scmp.ne.s32.totalorder %s89, %s103
    %p105 = scmp.eq.s32.totalorder %s16, 0
    %p106 = por %p104, %p105
    %s108 = sadd.s32 %s107, 1
    %p111 = scmp.eq.s32.totalorder %s10, 1
    %p112 = scmp.ne.s32.totalorder %s107, %s109
    %p113 = scmp.eq.s32.totalorder %s10, 0
    %p114 = por %p112, %p113
    %p115 = scmp.ne.s32.totalorder %s107, %s109
    %p116 = scmp.eq.s32.totalorder %s15, 1
    %p117 = por %p115, %p116
    %p118 = scmp.ne.s32.totalorder %s109, %s110
    %p119 = scmp.eq.s32.totalorder %s15, 0
    %p120 = por %p118, %p119
    %p121 = scmp.ne.s32.totalorder %s109, %s110
    %p122 = scmp.eq.s32.totalorder %s16, 1
    %p123 = por %p121, %p122
    %p125 = scmp.ne.s32.totalorder %s110, %s124
    %p126 = scmp.eq.s32.totalorder %s16, 0
    %p127 = por %p125, %p126
    %s128 = ssub.s32 %s17, %s29
    %s129 = ssub.s32 %s18, %s25
    %s130 = sor.u32 %s128, %s129
    %p131 = scmp.eq.s32.totalorder %s130, 0
    %s133 = sadd.s32 %s132, 1
    %s134 = scalar_select %p131, %s132, %s133
    %p137 = pneg %p131
    %p138 = scmp.eq.s32.totalorder %s10, 1
    %p139 = por %p137, %p138
    %p140 = scmp.ne.s32.totalorder %s132, %s135
    %p141 = scmp.eq.s32.totalorder %s10, 0
    %p142 = por %p140, %p141
    %p143 = scmp.ne.s32.totalorder %s132, %s135
    %p144 = scmp.eq.s32.totalorder %s15, 1
    %p145 = por %p143, %p144
    %p146 = scmp.ne.s32.totalorder %s135, %s136
    %p147 = scmp.eq.s32.totalorder %s15, 0
    %p148 = por %p146, %p147
    %p149 = scmp.ne.s32.totalorder %s135, %s136
    %p150 = scmp.eq.s32.totalorder %s16, 1
    %p151 = por %p149, %p150
    %p153 = scmp.ne.s32.totalorder %s136, %s152
    %p154 = scmp.eq.s32.totalorder %s16, 0
    %p155 = por %p153, %p154
    %p156 = scmp.le.s32.totalorder 1, %s10
    %p157 = scmp.lt.s32.totalorder %s10, 3
    %p158 = pnand %p156, %p157
    %p159 = pneg %p158
    // Predicated region
    $region9: #{attention_gate2.8} parent=5 // pred_check
      _
    $region10: #{attention_gate2.8} parent=5 // pred_check_branch
      %161 = sbr.rel (%p158) target = $region12
    $region11: #{attention_gate2.8} parent=5 // pred_region
      %s162 = ssub.s32 %s10, 1
      // Predicated region
      $region13: #{attention_gate2.8} parent=11 // pred_check
        %p163 = pneg %p99
      $region14: #{attention_gate2.8} parent=11 // pred_check_branch
        %165 = sbr.rel (%p163) target = $region16
      $region15: #{attention_gate2.8} parent=11 // pred_region
        _
      $region16: #{attention_gate2.8} parent=11 // pred_fallthru
        _
      // Predicated region
      $region17: #{attention_gate2.8} parent=11 // pred_check
        %p166 = pneg %p120
      $region18: #{attention_gate2.8} parent=11 // pred_check_branch
        %168 = sbr.rel (%p166) target = $region20
      $region19: #{attention_gate2.8} parent=11 // pred_region
        _
      $region20: #{attention_gate2.8} parent=11 // pred_fallthru
        _
    $region12: #{attention_gate2.8} parent=5 // pred_fallthru
      _
    %p169 = scmp.lt.s32.totalorder %s10, 2
    // Predicated region
    $region21: #{attention_gate2.8} parent=5 // pred_check
      %p170 = pneg %p169
    $region22: #{attention_gate2.8} parent=5 // pred_check_branch
      %172 = sbr.rel (%p170) target = $region24
    $region23: #{attention_gate2.8} parent=5 // pred_region
      // Predicated region
      $region25: #{attention_gate2.8} parent=23 // pred_check
        %p173 = pneg %p44
      $region26: #{attention_gate2.8} parent=23 // pred_check_branch
        %175 = sbr.rel (%p173) target = $region28
      $region27: #{attention_gate2.8} parent=23 // pred_region
        %p176 = scmp.lt.s32.totalorder %s17, 1
        %s177 = scalar_select %p176, %s17, 1
        %p178 = scmp.lt.s32.totalorder %s18, 0
        %s179 = scalar_select %p178, %s18, 0
        %s180 = sadd.s32 %s179, %s177
        %s181 = smul.addr %s180, 8
        %s182 = scalar_lea.vmem %s0, %s181
      $region28: #{attention_gate2.8} parent=23 // pred_fallthru
        _
      // Predicated region
      $region29: #{attention_gate2.8} parent=23 // pred_check
        %p183 = pneg %p72
      $region30: #{attention_gate2.8} parent=23 // pred_check_branch
        %185 = sbr.rel (%p183) target = $region32
      $region31: #{attention_gate2.8} parent=23 // pred_region
        %p186 = scmp.lt.s32.totalorder %s17, 1
        %s187 = scalar_select %p186, %s17, 1
        %p188 = scmp.lt.s32.totalorder %s18, 0
        %s189 = scalar_select %p188, %s18, 0
        %s190 = sadd.s32 %s189, %s187
        %s191 = smul.addr %s190, 4
        %s192 = scalar_lea.vmem %s1, %s191
      $region32: #{attention_gate2.8} parent=23 // pred_fallthru
        _
    $region24: #{attention_gate2.8} parent=5 // pred_fallthru
      _
    %p193 = scmp.le.s32.totalorder 1, %s10
    %p194 = scmp.lt.s32.totalorder %s10, 3
    %p195 = pnand %p193, %p194
    %p196 = pneg %p195
    // Predicated region
    $region33: #{attention_gate2.8} parent=5 // pred_check
      _
    $region34: #{attention_gate2.8} parent=5 // pred_check_branch
      %198 = sbr.rel (%p195) target = $region36
    $region35: #{attention_gate2.8} parent=5 // pred_region
      %s199 = ssub.s32 %s10, 1
      %p200 = scmp.lt.s32.totalorder %s19, 1
      %s201 = scalar_select %p200, %s19, 1
      %p202 = scmp.lt.s32.totalorder %s20, 0
      %s203 = scalar_select %p202, %s20, 0
      %s204 = sadd.s32 %s203, %s201
      %s205 = smul.addr %s204, 8
      %s206 = scalar_lea.vmem %s0, %s205
      %p207 = pneg %p50
      %p208 = pneg %p47
      %p209 = scmp.lt.s32.totalorder %s19, 1
      %s210 = scalar_select %p209, %s19, 1
      %p211 = scmp.lt.s32.totalorder %s20, 0
      %s212 = scalar_select %p211, %s20, 0
      %s213 = sadd.s32 %s212, %s210
      %s214 = smul.addr %s213, 4
      %s215 = scalar_lea.vmem %s1, %s214
      %p216 = pneg %p78
      %p217 = pneg %p75
      %p218 = pneg %p99
      %p219 = pneg %p96
      %p220 = pneg %p120
      %p221 = pneg %p117
      %p222 = pneg %p148
      %p223 = pneg %p145
      %p224 = scmp.lt.s32.totalorder %s19, 1
      %s225 = scalar_select %p224, %s19, 1
      %p226 = scmp.lt.s32.totalorder %s20, 0
      %s227 = scalar_select %p226, %s20, 0
      %s228 = sadd.s32 %s227, %s225
      %s229 = smul.addr %s228, 8
      %s230 = scalar_lea.vmem %s4, %s229
      %p231 = scmp.lt.s32.totalorder %s19, 1
      %s232 = scalar_select %p231, %s19, 1
      %p233 = scmp.lt.s32.totalorder %s20, 0
      %s234 = scalar_select %p233, %s20, 0
      %s235 = sadd.s32 %s234, %s232
      %s236 = smul.addr %s235, 8
      %s237 = scalar_lea.vmem %s0, %s236
      %p238 = scmp.lt.s32.totalorder %s19, 1
      %s239 = scalar_select %p238, %s19, 1
      %p240 = scmp.lt.s32.totalorder %s20, 0
      %s241 = scalar_select %p240, %s20, 0
      %s242 = sadd.s32 %s241, %s239
      %s243 = smul.addr %s242, 4
      %s244 = scalar_lea.vmem %s1, %s243
      %p245 = scmp.lt.s32.totalorder %s19, 1
      %s246 = scalar_select %p245, %s19, 1
      %p247 = scmp.lt.s32.totalorder %s20, 0
      %s248 = scalar_select %p247, %s20, 0
      %s249 = sadd.s32 %s248, %s246
      %s250 = smul.addr %s249, 8
      %s251 = scalar_lea.vmem %s4, %s250
      %v252 = vld [vmem:[%s3] sm:$0xff]
      %v253 = vld [vmem:[%s237] sm:$0xff]
      %v254 = vld [vmem:[%s2] sm:$0xf]
      %v255 = vld [vmem:[%s244] sm:$0xf]
      %vm256 = vcmask 64512
      %v258 = vsel %vm256, %v254, 0
      %260 = vmatpush.msra.mxu0 0.0
      %261 = vmatpush.msra.mxu0 0.0
      %262 = vmatpush.msra.mxu0 0.0
      %263 = vmatpush.msra.mxu0 0.0
      %264 = vmatpush.msra.mxu0 0.0
      %265 = vmatpush.msra.mxu0 0.0
      %266 = vmatpush.msra.mxu0 0.0
      %267 = vmatpush.msra.mxu0 0.0
      %268 = vmatpush.msra.mxu0 0.0
      %269 = vmatpush.msra.mxu0 0.0
      %270 = vmatpush.msra.mxu0 0.0
      %271 = vmatpush.msra.mxu0 0.0
      %272 = vmatpush.msra.mxu0 0.0
      %273 = vmatpush.msra.mxu0 0.0
      %274 = vmatpush.msra.mxu0 0.0
      %v275 = vand.u32 %v253, 4294901760
      %276 = vmatpush.msra.mxu0 %v275
      %v277 = vand.u32 %v258, 4294901760
      %v278 = vsub.f32 %v258, %v277
      %v279 = vand.u32 %v278, 4294901760
      %v280 = vsub.f32 %v278, %v279
      %v281 = vand.u32 %v280, 4294901760
      %282 = vmatmul.f32.gmra.mxu0 %v281
      %v283 = vpop.f32.mrf.mxu0
      %v284 = vadd.f32 %v255, %v283
      %285 = vdwg.mxu0
      %286 = vmatpush.msra.mxu0 0.0
      %287 = vmatpush.msra.mxu0 0.0
      %288 = vmatpush.msra.mxu0 0.0
      %289 = vmatpush.msra.mxu0 0.0
      %290 = vmatpush.msra.mxu0 0.0
      %291 = vmatpush.msra.mxu0 0.0
      %292 = vmatpush.msra.mxu0 0.0
      %293 = vmatpush.msra.mxu0 0.0
      %294 = vmatpush.msra.mxu0 0.0
      %295 = vmatpush.msra.mxu0 0.0
      %296 = vmatpush.msra.mxu0 0.0
      %297 = vmatpush.msra.mxu0 0.0
      %298 = vmatpush.msra.mxu0 0.0
      %299 = vmatpush.msra.mxu0 0.0
      %300 = vmatpush.msra.mxu0 0.0
      %v301 = vand.u32 %v253, 4294901760
      %v302 = vsub.f32 %v253, %v301
      %v303 = vand.u32 %v302, 4294901760
      %v304 = vsub.f32 %v302, %v303
      %v305 = vand.u32 %v304, 4294901760
      %306 = vmatpush.msra.mxu0 %v305
      %v307 = vand.u32 %v258, 4294901760
      %308 = vmatmul.f32.gmra.mxu0 %v307
      %v309 = vpop.f32.mrf.mxu0
      %v310 = vadd.f32 %v284, %v309
      %311 = vdwg.mxu0
      %312 = vmatpush.msra.mxu0 0.0
      %313 = vmatpush.msra.mxu0 0.0
      %314 = vmatpush.msra.mxu0 0.0
      %315 = vmatpush.msra.mxu0 0.0
      %316 = vmatpush.msra.mxu0 0.0
      %317 = vmatpush.msra.mxu0 0.0
      %318 = vmatpush.msra.mxu0 0.0
      %319 = vmatpush.msra.mxu0 0.0
      %320 = vmatpush.msra.mxu0 0.0
      %321 = vmatpush.msra.mxu0 0.0
      %322 = vmatpush.msra.mxu0 0.0
      %323 = vmatpush.msra.mxu0 0.0
      %324 = vmatpush.msra.mxu0 0.0
      %325 = vmatpush.msra.mxu0 0.0
      %326 = vmatpush.msra.mxu0 0.0
      %v327 = vand.u32 %v253, 4294901760
      %v328 = vsub.f32 %v253, %v327
      %329 = vmatpush.msra.mxu0 %v328
      %v330 = vand.u32 %v258, 4294901760
      %v331 = vsub.f32 %v258, %v330
      %332 = vmatmul.f32.gmra.mxu0 %v331
      %v333 = vpop.f32.mrf.mxu0
      %v334 = vadd.f32 %v310, %v333
      %335 = vdwg.mxu0
      %336 = vmatpush.msra.mxu0 0.0
      %337 = vmatpush.msra.mxu0 0.0
      %338 = vmatpush.msra.mxu0 0.0
      %339 = vmatpush.msra.mxu0 0.0
      %340 = vmatpush.msra.mxu0 0.0
      %341 = vmatpush.msra.mxu0 0.0
      %342 = vmatpush.msra.mxu0 0.0
      %343 = vmatpush.msra.mxu0 0.0
      %344 = vmatpush.msra.mxu0 0.0
      %345 = vmatpush.msra.mxu0 0.0
      %346 = vmatpush.msra.mxu0 0.0
      %347 = vmatpush.msra.mxu0 0.0
      %348 = vmatpush.msra.mxu0 0.0
      %349 = vmatpush.msra.mxu0 0.0
      %350 = vmatpush.msra.mxu0 0.0
      %v351 = vand.u32 %v253, 4294901760
      %352 = vmatpush.msra.mxu0 %v351
      %v353 = vand.u32 %v258, 4294901760
      %v354 = vsub.f32 %v258, %v353
      %v355 = vand.u32 %v354, 4294901760
      %356 = vmatmul.f32.gmra.mxu0 %v355
      %v357 = vpop.f32.mrf.mxu0
      %v358 = vadd.f32 %v334, %v357
      %359 = vdwg.mxu0
      %360 = vmatpush.msra.mxu0 0.0
      %361 = vmatpush.msra.mxu0 0.0
      %362 = vmatpush.msra.mxu0 0.0
      %363 = vmatpush.msra.mxu0 0.0
      %364 = vmatpush.msra.mxu0 0.0
      %365 = vmatpush.msra.mxu0 0.0
      %366 = vmatpush.msra.mxu0 0.0
      %367 = vmatpush.msra.mxu0 0.0
      %368 = vmatpush.msra.mxu0 0.0
      %369 = vmatpush.msra.mxu0 0.0
      %370 = vmatpush.msra.mxu0 0.0
      %371 = vmatpush.msra.mxu0 0.0
      %372 = vmatpush.msra.mxu0 0.0
      %373 = vmatpush.msra.mxu0 0.0
      %374 = vmatpush.msra.mxu0 0.0
      %v375 = vand.u32 %v253, 4294901760
      %v376 = vsub.f32 %v253, %v375
      %v377 = vand.u32 %v376, 4294901760
      %378 = vmatpush.msra.mxu0 %v377
      %v379 = vand.u32 %v258, 4294901760
      %380 = vmatmul.f32.gmra.mxu0 %v379
      %v381 = vpop.f32.mrf.mxu0
      %v382 = vadd.f32 %v358, %v381
      %383 = vdwg.mxu0
      %384 = vmatpush.msra.mxu0 0.0
      %385 = vmatpush.msra.mxu0 0.0
      %386 = vmatpush.msra.mxu0 0.0
      %387 = vmatpush.msra.mxu0 0.0
      %388 = vmatpush.msra.mxu0 0.0
      %389 = vmatpush.msra.mxu0 0.0
      %390 = vmatpush.msra.mxu0 0.0
      %391 = vmatpush.msra.mxu0 0.0
      %392 = vmatpush.msra.mxu0 0.0
      %393 = vmatpush.msra.mxu0 0.0
      %394 = vmatpush.msra.mxu0 0.0
      %395 = vmatpush.msra.mxu0 0.0
      %396 = vmatpush.msra.mxu0 0.0
      %397 = vmatpush.msra.mxu0 0.0
      %398 = vmatpush.msra.mxu0 0.0
      %v399 = vand.u32 %v253, 4294901760
      %400 = vmatpush.msra.mxu0 %v399
      %v401 = vand.u32 %v258, 4294901760
      %402 = vmatmul.f32.gmra.mxu0 %v401
      %v403 = vpop.f32.mrf.mxu0
      %v404 = vadd.f32 %v382, %v403
      %405 = vdwg.mxu0
      %407 = vset.pattern.permute.xlu0 0
      %408 = vperm.xlu0 %407, %v252
      %v409 = vpop.permute.xlu0 %408
      %v411 = vadd.f32 %v404, %v409
      %v412 = vmax.f32 %v411, 0.0
      %413 = vset.pattern.permute.xlu0 1
      %414 = vperm.xlu0 %413, %v252
      %v415 = vpop.permute.xlu0 %414
      %v417 = vmul.f32 %v412, %v415
      %vm418 = vcmask 519168
      %v419 = vsel %vm418, %v417, 0.0
      %v420 = vrot.slane %v419, 4
      %v421 = vadd.f32 %v419, %v420
      %v422 = vrot.slane %v421, 2
      %v423 = vadd.f32 %v421, %v422
      %v424 = vrot.slane %v423, 1
      %v425 = vadd.f32 %v423, %v424
      %426 = vset.pattern.permute.xlu0 4
      %427 = vperm.xlu0 %426, %v252
      %v428 = vpop.permute.xlu0 %427
      %v430 = vadd.f32 %v425, %v428
      %v431 = vxor.u32 %v430, 2147483648
      %v432 = vmul.f32 %v431, 1.442695
      %v433 = vpow.pop %v432
      %v434 = vadd.f32 %v433, 1.0
      %v435 = vrcp.pop %v434
      %v436 = vmul.f32 %v434, %v435
      %v437 = vsub.f32 1.0, %v436
      %v438 = vmul.f32 %v435, %v437
      %v439 = vadd.f32 %v435, %v438
      %vm440 = vweird.f32 %v434
      %vm441 = vweird.f32 %v435
      %vm442 = vmor %vm440, %vm441
      %v443 = vsel %vm442, %v435, %v439
      %v444 = vand.u32 2147483647, %v434
      %vm445 = vcmp.eq.f32.partialorder %v444, 8.507059e+37
      %v446 = vand.u32 %v434, 2147483648
      %v447 = vor.u32 1.1754944e-38, %v446
      %v448 = vsel %vm445, %v447, %v443
      %v449 = vmul.f32 1.0, %v448
      %v450 = vperm.slane %v449, 0
      %v451 = vmul.f32 %v450, %v253
      %452 = vset.pattern.permute.xlu0 2
      %453 = vperm.xlu0 %452, %v252
      %v454 = vpop.permute.xlu0 %453
      %v456 = vmul.f32 %v454, %v451
      %v457 = vadd.f32 %v253, %v456
      %458 = vset.pattern.permute.xlu0 3
      %459 = vperm.xlu0 %458, %v252
      %v460 = vpop.permute.xlu0 %459
      %v462 = vadd.f32 %v457, %v460
      %v463 = vmax.f32 %v462, 0.0
      %vm464 = vcmask 523264
      %465 = vst.msk [vmem:[%s251] sm:$0xff] %vm464, %v463
      %p466 = scmp.lt.s32.totalorder %s19, 1
      %s467 = scalar_select %p466, %s19, 1
      %p468 = scmp.lt.s32.totalorder %s20, 0
      %s469 = scalar_select %p468, %s20, 0
      %s470 = sadd.s32 %s469, %s467
      %s471 = smul.addr %s470, 8
      %s472 = scalar_lea.vmem %s4, %s471
      // Predicated region
      $region37: #{attention_gate2.8} parent=35 // pred_check
        %p473 = pneg %p145
      $region38: #{attention_gate2.8} parent=35 // pred_check_branch
        %475 = sbr.rel (%p473) target = $region40
      $region39: #{attention_gate2.8} parent=35 // pred_region
        _
      $region40: #{attention_gate2.8} parent=35 // pred_fallthru
        _
    $region36: #{attention_gate2.8} parent=5 // pred_fallthru
      _
    %p476 = scmp.le.s32.totalorder 2, %s10
    // Predicated region
    $region41: #{attention_gate2.8} parent=5 // pred_check
      %p477 = pneg %p476
    $region42: #{attention_gate2.8} parent=5 // pred_check_branch
      %479 = sbr.rel (%p477) target = $region44
    $region43: #{attention_gate2.8} parent=5 // pred_region
      %s480 = ssub.s32 %s10, 2
      // Predicated region
      $region45: #{attention_gate2.8} parent=43 // pred_check
        %p481 = pneg %p151
      $region46: #{attention_gate2.8} parent=43 // pred_check_branch
        %483 = sbr.rel (%p481) target = $region48
      $region47: #{attention_gate2.8} parent=43 // pred_region
        %p484 = scmp.lt.s32.totalorder %s21, 1
        %s485 = scalar_select %p484, %s21, 1
        %p486 = scmp.lt.s32.totalorder %s22, 0
        %s487 = scalar_select %p486, %s22, 0
        %s488 = sadd.s32 %s487, %s485
        %s489 = smul.addr %s488, 8
        %s490 = scalar_lea.vmem %s4, %s489
      $region48: #{attention_gate2.8} parent=43 // pred_fallthru
        _
    $region44: #{attention_gate2.8} parent=5 // pred_fallthru
      _
  $region6: #{attention_gate2.8} parent=0 // loop_footer
    %s14 = sadd.s32 1, %s10
  $region7: #{attention_gate2.8} parent=0 // loop_footer_branch
    %9 = sbr.rel target = $region3
  $region8: #{attention_gate2.8} parent=0 // loop_exit
    _

// kernel: attention_gate2.9
$region0: #{attention_gate2.9}
  #allocation0 [shape = 'u32[]', space=smem, size = 0x4, offset = 0x4, fixed_abs, tag = 'smem constant byte address 0x4 - core index']
  #allocation1 [shape = 'u32[72,128]{1,0:T(1,128)}', space=vmem, size = 0x9000, scoped, tag = 'internal scratch']
  %s0 = inlined_call_operand.vmem [shape: f32[2,8,64], index: 0, kind: input, shape index: {}]
  %s1 = inlined_call_operand.vmem [shape: f32[2,8], index: 1, kind: input, shape index: {}]
  %s2 = inlined_call_operand.vmem [shape: f32[2,2,64], index: 2, kind: output, shape index: {}]
  %s3 = sld [smem:[#allocation0]]
  $region41: #{attention_gate2.9} parent=0
    _
  %s5 = ssub.s32 1, %s3
  %s6 = scalar_select 0, %s5, %s3
  loop: start=0, step=1, limit=4
  $region2: #{attention_gate2.9} parent=0 // loop_pre_header
    _
  $region3: #{attention_gate2.9} parent=0 // loop_header
    %s8 = sphi 0, %s12
    %p9 = scmp.ge.s32.totalorder %s8, 4
    %s15 = sphi 0, %s27
    %s16 = sphi 0, %s23
    %s17 = sphi 0, %s15
    %s18 = sphi 0, %s16
    %s19 = sphi 0, %s17
    %s20 = sphi 0, %s18
    %s32 = sphi 0, %s34
    %s35 = sphi 0, %s32
    %s36 = sphi 0, %s35
    %s52 = sphi 0, %s36
    %s56 = sphi 0, %s56
    %s58 = sphi 0, %s56
    %s59 = sphi 0, %s58
    %s73 = sphi 0, %s59
    %s81 = sphi 0, %s83
    %s84 = sphi 0, %s81
    %s85 = sphi 0, %s84
    %s101 = sphi 0, %s85
  $region4: #{attention_gate2.9} parent=0 // loop_header_branch
    %11 = sbr.rel (%p9) target = $region8
  $region5: #{attention_gate2.9} parent=0 // loop_body
    %s13 = ssub.s32 %s8, 1
    %s14 = ssub.s32 %s8, 2
    %s21 = sadd.s32 1, %s16
    %p22 = scmp.ge.s32.totalorder %s21, 1
    %s23 = scalar_select %p22, 0, %s21
    %s24 = sadd.s32 1, %s15
    %s25 = scalar_select %p22, %s24, %s15
    %p26 = scmp.ge.s32.totalorder %s25, 2
    %s27 = scalar_select %p26, 0, %s25
    %s28 = ssub.s32 %s15, %s27
    %s29 = ssub.s32 %s16, %s23
    %s30 = sor.u32 %s28, %s29
    %p31 = scmp.eq.s32.totalorder %s30, 0
    %s33 = sadd.s32 %s32, 1
    %s34 = scalar_select %p31, %s32, %s33
    %p37 = pneg %p31
    %p38 = scmp.eq.s32.totalorder %s8, 1
    %p39 = por %p37, %p38
    %p40 = scmp.ne.s32.totalorder %s32, %s35
    %p41 = scmp.eq.s32.totalorder %s8, 0
    %p42 = por %p40, %p41
    %p43 = scmp.ne.s32.totalorder %s32, %s35
    %p44 = scmp.eq.s32.totalorder %s13, 1
    %p45 = por %p43, %p44
    %p46 = scmp.ne.s32.totalorder %s35, %s36
    %p47 = scmp.eq.s32.totalorder %s13, 0
    %p48 = por %p46, %p47
    %p49 = scmp.ne.s32.totalorder %s35, %s36
    %p50 = scmp.eq.s32.totalorder %s14, 1
    %p51 = por %p49, %p50
    %p53 = scmp.ne.s32.totalorder %s36, %s52
    %p54 = scmp.eq.s32.totalorder %s14, 0
    %p55 = por %p53, %p54
    %s57 = sadd.s32 %s56, 1
    %p60 = scmp.eq.s32.totalorder %s8, 1
    %p61 = scmp.ne.s32.totalorder %s56, %s58
    %p62 = scmp.eq.s32.totalorder %s8, 0
    %p63 = por %p61, %p62
    %p64 = scmp.ne.s32.totalorder %s56, %s58
    %p65 = scmp.eq.s32.totalorder %s13, 1
    %p66 = por %p64, %p65
    %p67 = scmp.ne.s32.totalorder %s58, %s59
    %p68 = scmp.eq.s32.totalorder %s13, 0
    %p69 = por %p67, %p68
    %p70 = scmp.ne.s32.totalorder %s58, %s59
    %p71 = scmp.eq.s32.totalorder %s14, 1
    %p72 = por %p70, %p71
    %p74 = scmp.ne.s32.totalorder %s59, %s73
    %p75 = scmp.eq.s32.totalorder %s14, 0
    %p76 = por %p74, %p75
    %s77 = ssub.s32 %s15, %s27
    %s78 = ssub.s32 %s16, %s23
    %s79 = sor.u32 %s77, %s78
    %p80 = scmp.eq.s32.totalorder %s79, 0
    %s82 = sadd.s32 %s81, 1
    %s83 = scalar_select %p80, %s81, %s82
    %p86 = pneg %p80
    %p87 = scmp.eq.s32.totalorder %s8, 1
    %p88 = por %p86, %p87
    %p89 = scmp.ne.s32.totalorder %s81, %s84
    %p90 = scmp.eq.s32.totalorder %s8, 0
    %p91 = por %p89, %p90
    %p92 = scmp.ne.s32.totalorder %s81, %s84
    %p93 = scmp.eq.s32.totalorder %s13, 1
    %p94 = por %p92, %p93
    %p95 = scmp.ne.s32.totalorder %s84, %s85
    %p96 = scmp.eq.s32.totalorder %s13, 0
    %p97 = por %p95, %p96
    %p98 = scmp.ne.s32.totalorder %s84, %s85
    %p99 = scmp.eq.s32.totalorder %s14, 1
    %p100 = por %p98, %p99
    %p102 = scmp.ne.s32.totalorder %s85, %s101
    %p103 = scmp.eq.s32.totalorder %s14, 0
    %p104 = por %p102, %p103
    %p105 = scmp.le.s32.totalorder 1, %s8
    %p106 = scmp.lt.s32.totalorder %s8, 3
    %p107 = pnand %p105, %p106
    %p108 = pneg %p107
    // Predicated region
    $region9: #{attention_gate2.9} parent=5 // pred_check
      _
    $region10: #{attention_gate2.9} parent=5 // pred_check_branch
      %110 = sbr.rel (%p107) target = $region12
    $region11: #{attention_gate2.9} parent=5 // pred_region
      %s111 = ssub.s32 %s8, 1
      // Predicated region
      $region13: #{attention_gate2.9} parent=11 // pred_check
        %p112 = pneg %p69
      $region14: #{attention_gate2.9} parent=11 // pred_check_branch
        %114 = sbr.rel (%p112) target = $region16
      $region15: #{attention_gate2.9} parent=11 // pred_region
        _
      $region16: #{attention_gate2.9} parent=11 // pred_fallthru
        _
    $region12: #{attention_gate2.9} parent=5 // pred_fallthru
      _
    %p115 = scmp.lt.s32.totalorder %s8, 2
    // Predicated region
    $region17: #{attention_gate2.9} parent=5 // pred_check
      %p116 = pneg %p115
    $region18: #{attention_gate2.9} parent=5 // pred_check_branch
      %118 = sbr.rel (%p116) target = $region20
    $region19: #{attention_gate2.9} parent=5 // pred_region
      // Predicated region
      $region21: #{attention_gate2.9} parent=19 // pred_check
        %p119 = pneg %p42
      $region22: #{attention_gate2.9} parent=19 // pred_check_branch
        %121 = sbr.rel (%p119) target = $region24
      $region23: #{attention_gate2.9} parent=19 // pred_region
        %p122 = scmp.lt.s32.totalorder %s15, 1
        %s123 = scalar_select %p122, %s15, 1
        %p124 = scmp.lt.s32.totalorder %s16, 0
        %s125 = scalar_select %p124, %s16, 0
        %s126 = sadd.s32 %s125, %s123
        %s127 = smul.addr %s126, 8
        %s128 = scalar_lea.vmem %s0, %s127
      $region24: #{attention_gate2.9} parent=19 // pred_fallthru
        _
    $region20: #{attention_gate2.9} parent=5 // pred_fallthru
      _
    %p129 = scmp.le.s32.totalorder 1, %s8
    %p130 = scmp.lt.s32.totalorder %s8, 3
    %p131 = pnand %p129, %p130
    %p132 = pneg %p131
    // Predicated region
    $region25: #{attention_gate2.9} parent=5 // pred_check
      _
    $region26: #{attention_gate2.9} parent=5 // pred_check_branch
      %134 = sbr.rel (%p131) target = $region28
    $region27: #{attention_gate2.9} parent=5 // pred_region
      %s135 = ssub.s32 %s8, 1
      %p136 = scmp.lt.s32.totalorder %s17, 1
      %s137 = scalar_select %p136, %s17, 1
      %p138 = scmp.lt.s32.totalorder %s18, 0
      %s139 = scalar_select %p138, %s18, 0
      %s140 = sadd.s32 %s139, %s137
      %s141 = smul.addr %s140, 8
      %s142 = scalar_lea.vmem %s0, %s141
      %p143 = pneg %p48
      %p144 = pneg %p45
      %p145 = pneg %p69
      %p146 = pneg %p66
      %p147 = pneg %p97
      %p148 = pneg %p94
      %p149 = scmp.lt.s32.totalorder %s17, 1
      %s150 = scalar_select %p149, %s17, 1
      %p151 = scmp.lt.s32.totalorder %s18, 0
      %s152 = scalar_select %p151, %s18, 0
      %s153 = sadd.s32 %s152, %s150
      %s154 = smul.addr %s153, 2
      %s155 = scalar_lea.vmem %s2, %s154
      %p156 = scmp.lt.s32.totalorder %s17, 1
      %s157 = scalar_select %p156, %s17, 1
      %p158 = scmp.lt.s32.totalorder %s18, 0
      %s159 = scalar_select %p158, %s18, 0
      %s160 = sadd.s32 %s159, %s157
      %s161 = smul.addr %s160, 8
      %s162 = scalar_lea.vmem %s0, %s161
      %p163 = scmp.lt.s32.totalorder %s17, 1
      %s164 = scalar_select %p163, %s17, 1
      %p165 = scmp.lt.s32.totalorder %s18, 0
      %s166 = scalar_select %p165, %s18, 0
      %s167 = sadd.s32 %s166, %s164
      %s168 = smul.addr %s167, 2
      %s169 = scalar_lea.vmem %s2, %s168
      %v170 = vld [vmem:[%s1] sm:$0x3]
      %v171 = vld [vmem:[%s162] sm:$0xff]
      %vm172 = vcmask 64512
      %v174 = vsel %vm172, %v170, 0
      %176 = vmatpush.msra.mxu0 0.0
      %177 = vmatpush.msra.mxu0 0.0
      %178 = vmatpush.msra.mxu0 0.0
      %179 = vmatpush.msra.mxu0 0.0
      %180 = vmatpush.msra.mxu0 0.0
      %181 = vmatpush.msra.mxu0 0.0
      %182 = vmatpush.msra.mxu0 0.0
      %183 = vmatpush.msra.mxu0 0.0
      %184 = vmatpush.msra.mxu0 0.0
      %185 = vmatpush.msra.mxu0 0.0
      %186 = vmatpush.msra.mxu0 0.0
      %187 = vmatpush.msra.mxu0 0.0
      %188 = vmatpush.msra.mxu0 0.0
      %189 = vmatpush.msra.mxu0 0.0
      %190 = vmatpush.msra.mxu0 0.0
      %v191 = vand.u32 %v171, 4294901760
      %192 = vmatpush.msra.mxu0 %v191
      %v193 = vand.u32 %v174, 4294901760
      %v194 = vsub.f32 %v174, %v193
      %v195 = vand.u32 %v194, 4294901760
      %v196 = vsub.f32 %v194, %v195
      %v197 = vand.u32 %v196, 4294901760
      %198 = vmatmul.f32.gmra.mxu0 %v197
      %v199 = vpop.f32.mrf.mxu0
      %v200 = vadd.f32 0.0, %v199
      %201 = vdwg.mxu0
      %202 = vmatpush.msra.mxu0 0.0
      %203 = vmatpush.msra.mxu0 0.0
      %204 = vmatpush.msra.mxu0 0.0
      %205 = vmatpush.msra.mxu0 0.0
      %206 = vmatpush.msra.mxu0 0.0
      %207 = vmatpush.msra.mxu0 0.0
      %208 = vmatpush.msra.mxu0 0.0
      %209 = vmatpush.msra.mxu0 0.0
      %210 = vmatpush.msra.mxu0 0.0
      %211 = vmatpush.msra.mxu0 0.0
      %212 = vmatpush.msra.mxu0 0.0
      %213 = vmatpush.msra.mxu0 0.0
      %214 = vmatpush.msra.mxu0 0.0
      %215 = vmatpush.msra.mxu0 0.0
      %216 = vmatpush.msra.mxu0 0.0
      %v217 = vand.u32 %v171, 4294901760
      %v218 = vsub.f32 %v171, %v217
      %v219 = vand.u32 %v218, 4294901760
      %v220 = vsub.f32 %v218, %v219
      %v221 = vand.u32 %v220, 4294901760
      %222 = vmatpush.msra.mxu0 %v221
      %v223 = vand.u32 %v174, 4294901760
      %224 = vmatmul.f32.gmra.mxu0 %v223
      %v225 = vpop.f32.mrf.mxu0
      %v226 = vadd.f32 %v200, %v225
      %227 = vdwg.mxu0
      %228 = vmatpush.msra.mxu0 0.0
      %229 = vmatpush.msra.mxu0 0.0
      %230 = vmatpush.msra.mxu0 0.0
      %231 = vmatpush.msra.mxu0 0.0
      %232 = vmatpush.msra.mxu0 0.0
      %233 = vmatpush.msra.mxu0 0.0
      %234 = vmatpush.msra.mxu0 0.0
      %235 = vmatpush.msra.mxu0 0.0
      %236 = vmatpush.msra.mxu0 0.0
      %237 = vmatpush.msra.mxu0 0.0
      %238 = vmatpush.msra.mxu0 0.0
      %239 = vmatpush.msra.mxu0 0.0
      %240 = vmatpush.msra.mxu0 0.0
      %241 = vmatpush.msra.mxu0 0.0
      %242 = vmatpush.msra.mxu0 0.0
      %v243 = vand.u32 %v171, 4294901760
      %v244 = vsub.f32 %v171, %v243
      %245 = vmatpush.msra.mxu0 %v244
      %v246 = vand.u32 %v174, 4294901760
      %v247 = vsub.f32 %v174, %v246
      %248 = vmatmul.f32.gmra.mxu0 %v247
      %v249 = vpop.f32.mrf.mxu0
      %v250 = vadd.f32 %v226, %v249
      %251 = vdwg.mxu0
      %252 = vmatpush.msra.mxu0 0.0
      %253 = vmatpush.msra.mxu0 0.0
      %254 = vmatpush.msra.mxu0 0.0
      %255 = vmatpush.msra.mxu0 0.0
      %256 = vmatpush.msra.mxu0 0.0
      %257 = vmatpush.msra.mxu0 0.0
      %258 = vmatpush.msra.mxu0 0.0
      %259 = vmatpush.msra.mxu0 0.0
      %260 = vmatpush.msra.mxu0 0.0
      %261 = vmatpush.msra.mxu0 0.0
      %262 = vmatpush.msra.mxu0 0.0
      %263 = vmatpush.msra.mxu0 0.0
      %264 = vmatpush.msra.mxu0 0.0
      %265 = vmatpush.msra.mxu0 0.0
      %266 = vmatpush.msra.mxu0 0.0
      %v267 = vand.u32 %v171, 4294901760
      %268 = vmatpush.msra.mxu0 %v267
      %v269 = vand.u32 %v174, 4294901760
      %v270 = vsub.f32 %v174, %v269
      %v271 = vand.u32 %v270, 4294901760
      %272 = vmatmul.f32.gmra.mxu0 %v271
      %v273 = vpop.f32.mrf.mxu0
      %v274 = vadd.f32 %v250, %v273
      %275 = vdwg.mxu0
      %276 = vmatpush.msra.mxu0 0.0
      %277 = vmatpush.msra.mxu0 0.0
      %278 = vmatpush.msra.mxu0 0.0
      %279 = vmatpush.msra.mxu0 0.0
      %280 = vmatpush.msra.mxu0 0.0
      %281 = vmatpush.msra.mxu0 0.0
      %282 = vmatpush.msra.mxu0 0.0
      %283 = vmatpush.msra.mxu0 0.0
      %284 = vmatpush.msra.mxu0 0.0
      %285 = vmatpush.msra.mxu0 0.0
      %286 = vmatpush.msra.mxu0 0.0
      %287 = vmatpush.msra.mxu0 0.0
      %288 = vmatpush.msra.mxu0 0.0
      %289 = vmatpush.msra.mxu0 0.0
      %290 = vmatpush.msra.mxu0 0.0
      %v291 = vand.u32 %v171, 4294901760
      %v292 = vsub.f32 %v171, %v291
      %v293 = vand.u32 %v292, 4294901760
      %294 = vmatpush.msra.mxu0 %v293
      %v295 = vand.u32 %v174, 4294901760
      %296 = vmatmul.f32.gmra.mxu0 %v295
      %v297 = vpop.f32.mrf.mxu0
      %v298 = vadd.f32 %v274, %v297
      %299 = vdwg.mxu0
      %300 = vmatpush.msra.mxu0 0.0
      %301 = vmatpush.msra.mxu0 0.0
      %302 = vmatpush.msra.mxu0 0.0
      %303 = vmatpush.msra.mxu0 0.0
      %304 = vmatpush.msra.mxu0 0.0
      %305 = vmatpush.msra.mxu0 0.0
      %306 = vmatpush.msra.mxu0 0.0
      %307 = vmatpush.msra.mxu0 0.0
      %308 = vmatpush.msra.mxu0 0.0
      %309 = vmatpush.msra.mxu0 0.0
      %310 = vmatpush.msra.mxu0 0.0
      %311 = vmatpush.msra.mxu0 0.0
      %312 = vmatpush.msra.mxu0 0.0
      %313 = vmatpush.msra.mxu0 0.0
      %314 = vmatpush.msra.mxu0 0.0
      %v315 = vand.u32 %v171, 4294901760
      %316 = vmatpush.msra.mxu0 %v315
      %v317 = vand.u32 %v174, 4294901760
      %318 = vmatmul.f32.gmra.mxu0 %v317
      %v319 = vpop.f32.mrf.mxu0
      %v320 = vadd.f32 %v298, %v319
      %321 = vdwg.mxu0
      %vm322 = vcmask 517120
      %323 = vst.msk [vmem:[%s169] sm:$0x3] %vm322, %v320
      %p324 = scmp.lt.s32.totalorder %s17, 1
      %s325 = scalar_select %p324, %s17, 1
      %p326 = scmp.lt.s32.totalorder %s18, 0
      %s327 = scalar_select %p326, %s18, 0
      %s328 = sadd.s32 %s327, %s325
      %s329 = smul.addr %s328, 2
      %s330 = scalar_lea.vmem %s2, %s329
      // Predicated region
      $region29: #{attention_gate2.9} parent=27 // pred_check
        %p331 = pneg %p94
      $region30: #{attention_gate2.9} parent=27 // pred_check_branch
        %333 = sbr.rel (%p331) target = $region32
      $region31: #{attention_gate2.9} parent=27 // pred_region
        _
      $region32: #{attention_gate2.9} parent=27 // pred_fallthru
        _
    $region28: #{attention_gate2.9} parent=5 // pred_fallthru
      _
    %p334 = scmp.le.s32.totalorder 2, %s8
    // Predicated region
    $region33: #{attention_gate2.9} parent=5 // pred_check
      %p335 = pneg %p334
    $region34: #{attention_gate2.9} parent=5 // pred_check_branch
      %337 = sbr.rel (%p335) target = $region36
    $region35: #{attention_gate2.9} parent=5 // pred_region
      %s338 = ssub.s32 %s8, 2
      // Predicated region
      $region37: #{attention_gate2.9} parent=35 // pred_check
        %p339 = pneg %p100
      $region38: #{attention_gate2.9} parent=35 // pred_check_branch
        %341 = sbr.rel (%p339) target = $region40
      $region39: #{attention_gate2.9} parent=35 // pred_region
        %p342 = scmp.lt.s32.totalorder %s19, 1
        %s343 = scalar_select %p342, %s19, 1
        %p344 = scmp.lt.s32.totalorder %s20, 0
        %s345 = scalar_select %p344, %s20, 0
        %s346 = sadd.s32 %s345, %s343
        %s347 = smul.addr %s346, 2
        %s348 = scalar_lea.vmem %s2, %s347
      $region40: #{attention_gate2.9} parent=35 // pred_fallthru
        _
    $region36: #{attention_gate2.9} parent=5 // pred_fallthru
      _
  $region6: #{attention_gate2.9} parent=0 // loop_footer
    %s12 = sadd.s32 1, %s8
  $region7: #{attention_gate2.9} parent=0 // loop_footer_branch
    %7 = sbr.rel target = $region3
  $region8: #{attention_gate2.9} parent=0 // loop_exit
    _

// kernel: attention_gate2.10
$region0: #{attention_gate2.10}
  #allocation0 [shape = 'u32[]', space=smem, size = 0x4, offset = 0x4, fixed_abs, tag = 'smem constant byte address 0x4 - core index']
  #allocation1 [shape = 'u32[72,128]{1,0:T(1,128)}', space=vmem, size = 0x9000, scoped, tag = 'internal scratch']
  %s0 = inlined_call_operand.vmem [shape: f32[2,16,8], index: 0, kind: input, shape index: {}]
  %s1 = inlined_call_operand.vmem [shape: f32[16,8], index: 1, kind: input, shape index: {}]
  %s2 = inlined_call_operand.vmem [shape: f32[8,16], index: 2, kind: input, shape index: {}]
  %s3 = inlined_call_operand.vmem [shape: f32[2,2,16,16], index: 3, kind: output, shape index: {}]
  %s4 = sld [smem:[#allocation0]]
  $region45: #{attention_gate2.10} parent=0
    _
  %s6 = ssub.s32 1, %s4
  %s7 = scalar_select 0, %s6, %s4
  loop: start=0, step=1, limit=4
  $region2: #{attention_gate2.10} parent=0 // loop_pre_header
    _
  $region3: #{attention_gate2.10} parent=0 // loop_header
    %s9 = sphi 0, %s13
    %p10 = scmp.ge.s32.totalorder %s9, 4
    %s16 = sphi 0, %s28
    %s17 = sphi 0, %s24
    %s18 = sphi 0, %s16
    %s19 = sphi 0, %s17
    %s20 = sphi 0, %s18
    %s21 = sphi 0, %s19
    %s33 = sphi 0, %s35
    %s36 = sphi 0, %s33
    %s37 = sphi 0, %s36
    %s53 = sphi 0, %s37
    %s57 = sphi 0, %s57
    %s59 = sphi 0, %s57
    %s60 = sphi 0, %s59
    %s74 = sphi 0, %s60
    %s78 = sphi 0, %s78
    %s80 = sphi 0, %s78
    %s81 = sphi 0, %s80
    %s95 = sphi 0, %s81
    %s103 = sphi 0, %s105
    %s106 = sphi 0, %s103
    %s107 = sphi 0, %s106
    %s123 = sphi 0, %s107
  $region4: #{attention_gate2.10} parent=0 // loop_header_branch
    %12 = sbr.rel (%p10) target = $region8
  $region5: #{attention_gate2.10} parent=0 // loop_body
    %s14 = ssub.s32 %s9, 1
    %s15 = ssub.s32 %s9, 2
    %s22 = sadd.s32 1, %s17
    %p23 = scmp.ge.s32.totalorder %s22, 1
    %s24 = scalar_select %p23, 0, %s22
    %s25 = sadd.s32 1, %s16
    %s26 = scalar_select %p23, %s25, %s16
    %p27 = scmp.ge.s32.totalorder %s26, 2
    %s28 = scalar_select %p27, 0, %s26
    %s29 = ssub.s32 %s16, %s28
    %s30 = ssub.s32 %s17, %s24
    %s31 = sor.u32 %s29, %s30
    %p32 = scmp.eq.s32.totalorder %s31, 0
    %s34 = sadd.s32 %s33, 1
    %s35 = scalar_select %p32, %s33, %s34
    %p38 = pneg %p32
    %p39 = scmp.eq.s32.totalorder %s9, 1
    %p40 = por %p38, %p39
    %p41 = scmp.ne.s32.totalorder %s33, %s36
    %p42 = scmp.eq.s32.totalorder %s9, 0
    %p43 = por %p41, %p42
    %p44 = scmp.ne.s32.totalorder %s33, %s36
    %p45 = scmp.eq.s32.totalorder %s14, 1
    %p46 = por %p44, %p45
    %p47 = scmp.ne.s32.totalorder %s36, %s37
    %p48 = scmp.eq.s32.totalorder %s14, 0
    %p49 = por %p47, %p48
    %p50 = scmp.ne.s32.totalorder %s36, %s37
    %p51 = scmp.eq.s32.totalorder %s15, 1
    %p52 = por %p50, %p51
    %p54 = scmp.ne.s32.totalorder %s37, %s53
    %p55 = scmp.eq.s32.totalorder %s15, 0
    %p56 = por %p54, %p55
    %s58 = sadd.s32 %s57, 1
    %p61 = scmp.eq.s32.totalorder %s9, 1
    %p62 = scmp.ne.s32.totalorder %s57, %s59
    %p63 = scmp.eq.s32.totalorder %s9, 0
    %p64 = por %p62, %p63
    %p65 = scmp.ne.s32.totalorder %s57, %s59
    %p66 = scmp.eq.s32.totalorder %s14, 1
    %p67 = por %p65, %p66
    %p68 = scmp.ne.s32.totalorder %s59, %s60
    %p69 = scmp.eq.s32.totalorder %s14, 0
    %p70 = por %p68, %p69
    %p71 = scmp.ne.s32.totalorder %s59, %s60
    %p72 = scmp.eq.s32.totalorder %s15, 1
    %p73 = por %p71, %p72
    %p75 = scmp.ne.s32.totalorder %s60, %s74
    %p76 = scmp.eq.s32.totalorder %s15, 0
    %p77 = por %p75, %p76
    %s79 = sadd.s32 %s78, 1
    %p82 = scmp.eq.s32.totalorder %s9, 1
    %p83 = scmp.ne.s32.totalorder %s78, %s80
    %p84 = scmp.eq.s32.totalorder %s9, 0
    %p85 = por %p83, %p84
    %p86 = scmp.ne.s32.totalorder %s78, %s80
    %p87 = scmp.eq.s32.totalorder %s14, 1
    %p88 = por %p86, %p87
    %p89 = scmp.ne.s32.totalorder %s80, %s81
    %p90 = scmp.eq.s32.totalorder %s14, 0
    %p91 = por %p89, %p90
    %p92 = scmp.ne.s32.totalorder %s80, %s81
    %p93 = scmp.eq.s32.totalorder %s15, 1
    %p94 = por %p92, %p93
    %p96 = scmp.ne.s32.totalorder %s81, %s95
    %p97 = scmp.eq.s32.totalorder %s15, 0
    %p98 = por %p96, %p97
    %s99 = ssub.s32 %s16, %s28
    %s100 = ssub.s32 %s17, %s24
    %s101 = sor.u32 %s99, %s100
    %p102 = scmp.eq.s32.totalorder %s101, 0
    %s104 = sadd.s32 %s103, 1
    %s105 = scalar_select %p102, %s103, %s104
    %p108 = pneg %p102
    %p109 = scmp.eq.s32.totalorder %s9, 1
    %p110 = por %p108, %p109
    %p111 = scmp.ne.s32.totalorder %s103, %s106
    %p112 = scmp.eq.s32.totalorder %s9, 0
    %p113 = por %p111, %p112
    %p114 = scmp.ne.s32.totalorder %s103, %s106
    %p115 = scmp.eq.s32.totalorder %s14, 1
    %p116 = por %p114, %p115
    %p117 = scmp.ne.s32.totalorder %s106, %s107
    %p118 = scmp.eq.s32.totalorder %s14, 0
    %p119 = por %p117, %p118
    %p120 = scmp.ne.s32.totalorder %s106, %s107
    %p121 = scmp.eq.s32.totalorder %s15, 1
    %p122 = por %p120, %p121
    %p124 = scmp.ne.s32.totalorder %s107, %s123
    %p125 = scmp.eq.s32.totalorder %s15, 0
    %p126 = por %p124, %p125
    %p127 = scmp.le.s32.totalorder 1, %s9
    %p128 = scmp.lt.s32.totalorder %s9, 3
    %p129 = pnand %p127, %p128
    %p130 = pneg %p129
    // Predicated region
    $region9: #{attention_gate2.10} parent=5 // pred_check
      _
    $region10: #{attention_gate2.10} parent=5 // pred_check_branch
      %132 = sbr.rel (%p129) target = $region12
    $region11: #{attention_gate2.10} parent=5 // pred_region
      %s133 = ssub.s32 %s9, 1
      // Predicated region
      $region13: #{attention_gate2.10} parent=11 // pred_check
        %p134 = pneg %p70
      $region14: #{attention_gate2.10} parent=11 // pred_check_branch
        %136 = sbr.rel (%p134) target = $region16
      $region15: #{attention_gate2.10} parent=11 // pred_region
        _
      $region16: #{attention_gate2.10} parent=11 // pred_fallthru
        _
      // Predicated region
      $region17: #{attention_gate2.10} parent=11 // pred_check
        %p137 = pneg %p91
      $region18: #{attention_gate2.10} parent=11 // pred_check_branch
        %139 = sbr.rel (%p137) target = $region20
      $region19: #{attention_gate2.10} parent=11 // pred_region
        _
      $region20: #{attention_gate2.10} parent=11 // pred_fallthru
        _
    $region12: #{attention_gate2.10} parent=5 // pred_fallthru
      _
    %p140 = scmp.lt.s32.totalorder %s9, 2
    // Predicated region
    $region21: #{attention_gate2.10} parent=5 // pred_check
      %p141 = pneg %p140
    $region22: #{attention_gate2.10} parent=5 // pred_check_branch
      %143 = sbr.rel (%p141) target = $region24
    $region23: #{attention_gate2.10} parent=5 // pred_region
      // Predicated region
      $region25: #{attention_gate2.10} parent=23 // pred_check
        %p144 = pneg %p43
      $region26: #{attention_gate2.10} parent=23 // pred_check_branch
        %146 = sbr.rel (%p144) target = $region28
      $region27: #{attention_gate2.10} parent=23 // pred_region
        %s147 = smul.u32 2, %s17
        %p148 = scmp.lt.s32.totalorder %s16, 1
        %s149 = scalar_select %p148, %s16, 1
        %p150 = scmp.lt.s32.totalorder %s147, 1
        %s151 = scalar_select %p150, %s147, 1
        %s152 = smul.addr %s149, 2
        %s153 = sadd.s32 %s151, %s152
        %s154 = smul.addr %s153, 8
        %s155 = scalar_lea.vmem %s0, %s154
        %s156 = smul.u32 2, %s17
      $region28: #{attention_gate2.10} parent=23 // pred_fallthru
        _
    $region24: #{attention_gate2.10} parent=5 // pred_fallthru
      _
    %p157 = scmp.le.s32.totalorder 1, %s9
    %p158 = scmp.lt.s32.totalorder %s9, 3
    %p159 = pnand %p157, %p158
    %p160 = pneg %p159
    // Predicated region
    $region29: #{attention_gate2.10} parent=5 // pred_check
      _
    $region30: #{attention_gate2.10} parent=5 // pred_check_branch
      %162 = sbr.rel (%p159) target = $region32
    $region31: #{attention_gate2.10} parent=5 // pred_region
      %s163 = ssub.s32 %s9, 1
      %s164 = smul.u32 2, %s19
      %p165 = scmp.lt.s32.totalorder %s18, 1
      %s166 = scalar_select %p165, %s18, 1
      %p167 = scmp.lt.s32.totalorder %s164, 1
      %s168 = scalar_select %p167, %s164, 1
      %s169 = smul.addr %s166, 2
      %s170 = sadd.s32 %s168, %s169
      %s171 = smul.addr %s170, 8
      %s172 = scalar_lea.vmem %s0, %s171
      %p173 = pneg %p49
      %p174 = pneg %p46
      %p175 = pneg %p70
      %p176 = pneg %p67
      %p177 = pneg %p91
      %p178 = pneg %p88
      %p179 = pneg %p119
      %p180 = pneg %p116
      %s181 = smul.u32 2, %s19
      %p182 = scmp.lt.s32.totalorder %s18, 1
      %s183 = scalar_select %p182, %s18, 1
      %p184 = scmp.lt.s32.totalorder %s181, 1
      %s185 = scalar_select %p184, %s181, 1
      %s186 = smul.addr %s185, 2
      %s187 = smul.addr %s183, 4
      %s188 = sadd.s32 %s186, %s187
      %s189 = smul.addr %s188, 8
      %s190 = scalar_lea.vmem %s3, %s189
      %s191 = smul.u32 2, %s19
      %p192 = scmp.lt.s32.totalorder %s18, 1
      %s193 = scalar_select %p192, %s18, 1
      %p194 = scmp.lt.s32.totalorder %s191, 1
      %s195 = scalar_select %p194, %s191, 1
      %s196 = smul.addr %s193, 2
      %s197 = sadd.s32 %s195, %s196
      %s198 = smul.addr %s197, 8
      %s199 = scalar_lea.vmem %s0, %s198
      %s200 = smul.u32 2, %s19
      %s201 = smul.u32 2, %s19
      %p202 = scmp.lt.s32.totalorder %s18, 1
      %s203 = scalar_select %p202, %s18, 1
      %p204 = scmp.lt.s32.totalorder %s201, 1
      %s205 = scalar_select %p204, %s201, 1
      %s206 = smul.addr %s205, 2
      %s207 = smul.addr %s203, 4
      %s208 = sadd.s32 %s206, %s207
      %s209 = smul.addr %s208, 8
      %s210 = scalar_lea.vmem %s3, %s209
      %s211 = smul.u32 2, %s19
      %v212 = vld [vmem:[%s199] sm:$0xff]
      %v213 = vld [vmem:[%s199 + $0x8] sm:$0xff]
      %v214 = vld [vmem:[%s2] sm:$0xff]
      %vm215 = vcmask 64512
      %v217 = vsel %vm215, %v212, 0
      %v220 = vsel %vm215, %v213, 0
      %222 = vmatpush.msra.mxu0 0.0
      %223 = vmatpush.msra.mxu0 0.0
      %224 = vmatpush.msra.mxu0 0.0
      %225 = vmatpush.msra.mxu0 0.0
      %226 = vmatpush.msra.mxu0 0.0
      %227 = vmatpush.msra.mxu0 0.0
      %228 = vmatpush.msra.mxu0 0.0
      %229 = vmatpush.msra.mxu0 0.0
      %230 = vmatpush.msra.mxu0 0.0
      %231 = vmatpush.msra.mxu0 0.0
      %232 = vmatpush.msra.mxu0 0.0
      %233 = vmatpush.msra.mxu0 0.0
      %234 = vmatpush.msra.mxu0 0.0
      %235 = vmatpush.msra.mxu0 0.0
      %236 = vmatpush.msra.mxu0 0.0
      %v237 = vand.u32 %v214, 4294901760
      %238 = vmatpush.msra.mxu0 %v237
      %v239 = vand.u32 %v217, 4294901760
      %v240 = vsub.f32 %v217, %v239
      %v241 = vand.u32 %v240, 4294901760
      %v242 = vsub.f32 %v240, %v241
      %v243 = vand.u32 %v242, 4294901760
      %244 = vmatmul.f32.gmra.mxu0 %v243
      %v245 = vpop.f32.mrf.mxu0
      %v246 = vadd.f32 0.0, %v245
      %v247 = vand.u32 %v220, 4294901760
      %v248 = vsub.f32 %v220, %v247
      %v249 = vand.u32 %v248, 4294901760
      %v250 = vsub.f32 %v248, %v249
      %v251 = vand.u32 %v250, 4294901760
      %252 = vmatmul.f32.gmra.mxu0 %v251
      %v253 = vpop.f32.mrf.mxu0
      %v254 = vadd.f32 0.0, %v253
      %255 = vdwg.mxu0
      %256 = vmatpush.msra.mxu0 0.0
      %257 = vmatpush.msra.mxu0 0.0
      %258 = vmatpush.msra.mxu0 0.0
      %259 = vmatpush.msra.mxu0 0.0
      %260 = vmatpush.msra.mxu0 0.0
      %261 = vmatpush.msra.mxu0 0.0
      %262 = vmatpush.msra.mxu0 0.0
      %263 = vmatpush.msra.mxu0 0.0
      %264 = vmatpush.msra.mxu0 0.0
      %265 = vmatpush.msra.mxu0 0.0
      %266 = vmatpush.msra.mxu0 0.0
      %267 = vmatpush.msra.mxu0 0.0
      %268 = vmatpush.msra.mxu0 0.0
      %269 = vmatpush.msra.mxu0 0.0
      %270 = vmatpush.msra.mxu0 0.0
      %v271 = vand.u32 %v214, 4294901760
      %v272 = vsub.f32 %v214, %v271
      %v273 = vand.u32 %v272, 4294901760
      %v274 = vsub.f32 %v272, %v273
      %v275 = vand.u32 %v274, 4294901760
      %276 = vmatpush.msra.mxu0 %v275
      %v277 = vand.u32 %v217, 4294901760
      %278 = vmatmul.f32.gmra.mxu0 %v277
      %v279 = vpop.f32.mrf.mxu0
      %v280 = vadd.f32 %v246, %v279
      %v281 = vand.u32 %v220, 4294901760
      %282 = vmatmul.f32.gmra.mxu0 %v281
      %v283 = vpop.f32.mrf.mxu0
      %v284 = vadd.f32 %v254, %v283
      %285 = vdwg.mxu0
      %286 = vmatpush.msra.mxu0 0.0
      %287 = vmatpush.msra.mxu0 0.0
      %288 = vmatpush.msra.mxu0 0.0
      %289 = vmatpush.msra.mxu0 0.0
      %290 = vmatpush.msra.mxu0 0.0
      %291 = vmatpush.msra.mxu0 0.0
      %292 = vmatpush.msra.mxu0 0.0
      %293 = vmatpush.msra.mxu0 0.0
      %294 = vmatpush.msra.mxu0 0.0
      %295 = vmatpush.msra.mxu0 0.0
      %296 = vmatpush.msra.mxu0 0.0
      %297 = vmatpush.msra.mxu0 0.0
      %298 = vmatpush.msra.mxu0 0.0
      %299 = vmatpush.msra.mxu0 0.0
      %300 = vmatpush.msra.mxu0 0.0
      %v301 = vand.u32 %v214, 4294901760
      %v302 = vsub.f32 %v214, %v301
      %303 = vmatpush.msra.mxu0 %v302
      %v304 = vand.u32 %v217, 4294901760
      %v305 = vsub.f32 %v217, %v304
      %306 = vmatmul.f32.gmra.mxu0 %v305
      %v307 = vpop.f32.mrf.mxu0
      %v308 = vadd.f32 %v280, %v307
      %v309 = vand.u32 %v220, 4294901760
      %v310 = vsub.f32 %v220, %v309
      %311 = vmatmul.f32.gmra.mxu0 %v310
      %v312 = vpop.f32.mrf.mxu0
      %v313 = vadd.f32 %v284, %v312
      %314 = vdwg.mxu0
      %315 = vmatpush.msra.mxu0 0.0
      %316 = vmatpush.msra.mxu0 0.0
      %317 = vmatpush.msra.mxu0 0.0
      %318 = vmatpush.msra.mxu0 0.0
      %319 = vmatpush.msra.mxu0 0.0
      %320 = vmatpush.msra.mxu0 0.0
      %321 = vmatpush.msra.mxu0 0.0
      %322 = vmatpush.msra.mxu0 0.0
      %323 = vmatpush.msra.mxu0 0.0
      %324 = vmatpush.msra.mxu0 0.0
      %325 = vmatpush.msra.mxu0 0.0
      %326 = vmatpush.msra.mxu0 0.0
      %327 = vmatpush.msra.mxu0 0.0
      %328 = vmatpush.msra.mxu0 0.0
      %329 = vmatpush.msra.mxu0 0.0
      %v330 = vand.u32 %v214, 4294901760
      %331 = vmatpush.msra.mxu0 %v330
      %v332 = vand.u32 %v217, 4294901760
      %v333 = vsub.f32 %v217, %v332
      %v334 = vand.u32 %v333, 4294901760
      %335 = vmatmul.f32.gmra.mxu0 %v334
      %v336 = vpop.f32.mrf.mxu0
      %v337 = vadd.f32 %v308, %v336
      %v338 = vand.u32 %v220, 4294901760
      %v339 = vsub.f32 %v220, %v338
      %v340 = vand.u32 %v339, 4294901760
      %341 = vmatmul.f32.gmra.mxu0 %v340
      %v342 = vpop.f32.mrf.mxu0
      %v343 = vadd.f32 %v313, %v342
      %344 = vdwg.mxu0
      %345 = vmatpush.msra.mxu0 0.0
      %346 = vmatpush.msra.mxu0 0.0
      %347 = vmatpush.msra.mxu0 0.0
      %348 = vmatpush.msra.mxu0 0.0
      %349 = vmatpush.msra.mxu0 0.0
      %350 = vmatpush.msra.mxu0 0.0
      %351 = vmatpush.msra.mxu0 0.0
      %352 = vmatpush.msra.mxu0 0.0
      %353 = vmatpush.msra.mxu0 0.0
      %354 = vmatpush.msra.mxu0 0.0
      %355 = vmatpush.msra.mxu0 0.0
      %356 = vmatpush.msra.mxu0 0.0
      %357 = vmatpush.msra.mxu0 0.0
      %358 = vmatpush.msra.mxu0 0.0
      %359 = vmatpush.msra.mxu0 0.0
      %v360 = vand.u32 %v214, 4294901760
      %v361 = vsub.f32 %v214, %v360
      %v362 = vand.u32 %v361, 4294901760
      %363 = vmatpush.msra.mxu0 %v362
      %v364 = vand.u32 %v217, 4294901760
      %365 = vmatmul.f32.gmra.mxu0 %v364
      %v366 = vpop.f32.mrf.mxu0
      %v367 = vadd.f32 %v337, %v366
      %v368 = vand.u32 %v220, 4294901760
      %369 = vmatmul.f32.gmra.mxu0 %v368
      %v370 = vpop.f32.mrf.mxu0
      %v371 = vadd.f32 %v343, %v370
      %372 = vdwg.mxu0
      %373 = vmatpush.msra.mxu0 0.0
      %374 = vmatpush.msra.mxu0 0.0
      %375 = vmatpush.msra.mxu0 0.0
      %376 = vmatpush.msra.mxu0 0.0
      %377 = vmatpush.msra.mxu0 0.0
      %378 = vmatpush.msra.mxu0 0.0
      %379 = vmatpush.msra.mxu0 0.0
      %380 = vmatpush.msra.mxu0 0.0
      %381 = vmatpush.msra.mxu0 0.0
      %382 = vmatpush.msra.mxu0 0.0
      %383 = vmatpush.msra.mxu0 0.0
      %384 = vmatpush.msra.mxu0 0.0
      %385 = vmatpush.msra.mxu0 0.0
      %386 = vmatpush.msra.mxu0 0.0
      %387 = vmatpush.msra.mxu0 0.0
      %v388 = vand.u32 %v214, 4294901760
      %389 = vmatpush.msra.mxu0 %v388
      %v390 = vand.u32 %v217, 4294901760
      %391 = vmatmul.f32.gmra.mxu0 %v390
      %v392 = vpop.f32.mrf.mxu0
      %v393 = vadd.f32 %v367, %v392
      %v394 = vand.u32 %v220, 4294901760
      %395 = vmatmul.f32.gmra.mxu0 %v394
      %v396 = vpop.f32.mrf.mxu0
      %v397 = vadd.f32 %v371, %v396
      %398 = vdwg.mxu0
      %v399 = vld [vmem:[%s1] sm:$0xff]
      %v400 = vld [vmem:[%s1 + $0x8] sm:$0xff]
      %v402 = vsel %vm215, %v399, 0
      %v405 = vsel %vm215, %v400, 0
      %407 = vmatpush.msra.mxu0 0.0
      %408 = vmatpush.msra.mxu0 0.0
      %409 = vmatpush.msra.mxu0 0.0
      %410 = vmatpush.msra.mxu0 0.0
      %411 = vmatpush.msra.mxu0 0.0
      %412 = vmatpush.msra.mxu0 0.0
      %413 = vmatpush.msra.mxu0 0.0
      %414 = vmatpush.msra.mxu0 0.0
      %415 = vmatpush.msra.mxu0 0.0
      %416 = vmatpush.msra.mxu0 0.0
      %417 = vmatpush.msra.mxu0 0.0
      %418 = vmatpush.msra.mxu0 0.0
      %419 = vmatpush.msra.mxu0 0.0
      %420 = vmatpush.msra.mxu0 0.0
      %421 = vmatpush.msra.mxu0 0.0
      %v422 = vand.u32 %v393, 4294901760
      %423 = vmatpush.msra.mxu0 %v422
      %v424 = vand.u32 %v402, 4294901760
      %v425 = vsub.f32 %v402, %v424
      %v426 = vand.u32 %v425, 4294901760
      %v427 = vsub.f32 %v425, %v426
      %v428 = vand.u32 %v427, 4294901760
      %429 = vmatmul.f32.gmra.mxu0 %v428
      %v430 = vpop.f32.mrf.mxu0
      %v431 = vadd.f32 0.0, %v430
      %v432 = vand.u32 %v405, 4294901760
      %v433 = vsub.f32 %v405, %v432
      %v434 = vand.u32 %v433, 4294901760
      %v435 = vsub.f32 %v433, %v434
      %v436 = vand.u32 %v435, 4294901760
      %437 = vmatmul.f32.gmra.mxu0 %v436
      %v438 = vpop.f32.mrf.mxu0
      %v439 = vadd.f32 0.0, %v438
      %440 = vdwg.mxu0
      %441 = vmatpush.msra.mxu0 0.0
      %442 = vmatpush.msra.mxu0 0.0
      %443 = vmatpush.msra.mxu0 0.0
      %444 = vmatpush.msra.mxu0 0.0
      %445 = vmatpush.msra.mxu0 0.0
      %446 = vmatpush.msra.mxu0 0.0
      %447 = vmatpush.msra.mxu0 0.0
      %448 = vmatpush.msra.mxu0 0.0
      %449 = vmatpush.msra.mxu0 0.0
      %450 = vmatpush.msra.mxu0 0.0
      %451 = vmatpush.msra.mxu0 0.0
      %452 = vmatpush.msra.mxu0 0.0
      %453 = vmatpush.msra.mxu0 0.0
      %454 = vmatpush.msra.mxu0 0.0
      %455 = vmatpush.msra.mxu0 0.0
      %v456 = vand.u32 %v393, 4294901760
      %v457 = vsub.f32 %v393, %v456
      %v458 = vand.u32 %v457, 4294901760
      %v459 = vsub.f32 %v457, %v458
      %v460 = vand.u32 %v459, 4294901760
      %461 = vmatpush.msra.mxu0 %v460
      %v462 = vand.u32 %v402, 4294901760
      %463 = vmatmul.f32.gmra.mxu0 %v462
      %v464 = vpop.f32.mrf.mxu0
      %v465 = vadd.f32 %v431, %v464
      %v466 = vand.u32 %v405, 4294901760
      %467 = vmatmul.f32.gmra.mxu0 %v466
      %v468 = vpop.f32.mrf.mxu0
      %v469 = vadd.f32 %v439, %v468
      %470 = vdwg.mxu0
      %471 = vmatpush.msra.mxu0 0.0
      %472 = vmatpush.msra.mxu0 0.0
      %473 = vmatpush.msra.mxu0 0.0
      %474 = vmatpush.msra.mxu0 0.0
      %475 = vmatpush.msra.mxu0 0.0
      %476 = vmatpush.msra.mxu0 0.0
      %477 = vmatpush.msra.mxu0 0.0
      %478 = vmatpush.msra.mxu0 0.0
      %479 = vmatpush.msra.mxu0 0.0
      %480 = vmatpush.msra.mxu0 0.0
      %481 = vmatpush.msra.mxu0 0.0
      %482 = vmatpush.msra.mxu0 0.0
      %483 = vmatpush.msra.mxu0 0.0
      %484 = vmatpush.msra.mxu0 0.0
      %485 = vmatpush.msra.mxu0 0.0
      %v486 = vand.u32 %v393, 4294901760
      %v487 = vsub.f32 %v393, %v486
      %488 = vmatpush.msra.mxu0 %v487
      %v489 = vand.u32 %v402, 4294901760
      %v490 = vsub.f32 %v402, %v489
      %491 = vmatmul.f32.gmra.mxu0 %v490
      %v492 = vpop.f32.mrf.mxu0
      %v493 = vadd.f32 %v465, %v492
      %v494 = vand.u32 %v405, 4294901760
      %v495 = vsub.f32 %v405, %v494
      %496 = vmatmul.f32.gmra.mxu0 %v495
      %v497 = vpop.f32.mrf.mxu0
      %v498 = vadd.f32 %v469, %v497
      %499 = vdwg.mxu0
      %500 = vmatpush.msra.mxu0 0.0
      %501 = vmatpush.msra.mxu0 0.0
      %502 = vmatpush.msra.mxu0 0.0
      %503 = vmatpush.msra.mxu0 0.0
      %504 = vmatpush.msra.mxu0 0.0
      %505 = vmatpush.msra.mxu0 0.0
      %506 = vmatpush.msra.mxu0 0.0
      %507 = vmatpush.msra.mxu0 0.0
      %508 = vmatpush.msra.mxu0 0.0
      %509 = vmatpush.msra.mxu0 0.0
      %510 = vmatpush.msra.mxu0 0.0
      %511 = vmatpush.msra.mxu0 0.0
      %512 = vmatpush.msra.mxu0 0.0
      %513 = vmatpush.msra.mxu0 0.0
      %514 = vmatpush.msra.mxu0 0.0
      %v515 = vand.u32 %v393, 4294901760
      %516 = vmatpush.msra.mxu0 %v515
      %v517 = vand.u32 %v402, 4294901760
      %v518 = vsub.f32 %v402, %v517
      %v519 = vand.u32 %v518, 4294901760
      %520 = vmatmul.f32.gmra.mxu0 %v519
      %v521 = vpop.f32.mrf.mxu0
      %v522 = vadd.f32 %v493, %v521
      %v523 = vand.u32 %v405, 4294901760
      %v524 = vsub.f32 %v405, %v523
      %v525 = vand.u32 %v524, 4294901760
      %526 = vmatmul.f32.gmra.mxu0 %v525
      %v527 = vpop.f32.mrf.mxu0
      %v528 = vadd.f32 %v498, %v527
      %529 = vdwg.mxu0
      %530 = vmatpush.msra.mxu0 0.0
      %531 = vmatpush.msra.mxu0 0.0
      %532 = vmatpush.msra.mxu0 0.0
      %533 = vmatpush.msra.mxu0 0.0
      %534 = vmatpush.msra.mxu0 0.0
      %535 = vmatpush.msra.mxu0 0.0
      %536 = vmatpush.msra.mxu0 0.0
      %537 = vmatpush.msra.mxu0 0.0
      %538 = vmatpush.msra.mxu0 0.0
      %539 = vmatpush.msra.mxu0 0.0
      %540 = vmatpush.msra.mxu0 0.0
      %541 = vmatpush.msra.mxu0 0.0
      %542 = vmatpush.msra.mxu0 0.0
      %543 = vmatpush.msra.mxu0 0.0
      %544 = vmatpush.msra.mxu0 0.0
      %v545 = vand.u32 %v393, 4294901760
      %v546 = vsub.f32 %v393, %v545
      %v547 = vand.u32 %v546, 4294901760
      %548 = vmatpush.msra.mxu0 %v547
      %v549 = vand.u32 %v402, 4294901760
      %550 = vmatmul.f32.gmra.mxu0 %v549
      %v551 = vpop.f32.mrf.mxu0
      %v552 = vadd.f32 %v522, %v551
      %v553 = vand.u32 %v405, 4294901760
      %554 = vmatmul.f32.gmra.mxu0 %v553
      %v555 = vpop.f32.mrf.mxu0
      %v556 = vadd.f32 %v528, %v555
      %557 = vdwg.mxu0
      %558 = vmatpush.msra.mxu0 0.0
      %559 = vmatpush.msra.mxu0 0.0
      %560 = vmatpush.msra.mxu0 0.0
      %561 = vmatpush.msra.mxu0 0.0
      %562 = vmatpush.msra.mxu0 0.0
      %563 = vmatpush.msra.mxu0 0.0
      %564 = vmatpush.msra.mxu0 0.0
      %565 = vmatpush.msra.mxu0 0.0
      %566 = vmatpush.msra.mxu0 0.0
      %567 = vmatpush.msra.mxu0 0.0
      %568 = vmatpush.msra.mxu0 0.0
      %569 = vmatpush.msra.mxu0 0.0
      %570 = vmatpush.msra.mxu0 0.0
      %571 = vmatpush.msra.mxu0 0.0
      %572 = vmatpush.msra.mxu0 0.0
      %v573 = vand.u32 %v393, 4294901760
      %574 = vmatpush.msra.mxu0 %v573
      %v575 = vand.u32 %v402, 4294901760
      %576 = vmatmul.f32.gmra.mxu0 %v575
      %v577 = vpop.f32.mrf.mxu0
      %v578 = vadd.f32 %v552, %v577
      %v579 = vand.u32 %v405, 4294901760
      %580 = vmatmul.f32.gmra.mxu0 %v579
      %v581 = vpop.f32.mrf.mxu0
      %v582 = vadd.f32 %v556, %v581
      %583 = vdwg.mxu0
      %vm584 = vcmask 130048
      %585 = vst.msk [vmem:[%s210] sm:$0xff] %vm584, %v578
      %586 = vst.msk [vmem:[%s210 + $0x8] sm:$0xff] %vm584, %v582
      %587 = vmatpush.msra.mxu0 0.0
      %588 = vmatpush.msra.mxu0 0.0
      %589 = vmatpush.msra.mxu0 0.0
      %590 = vmatpush.msra.mxu0 0.0
      %591 = vmatpush.msra.mxu0 0.0
      %592 = vmatpush.msra.mxu0 0.0
      %593 = vmatpush.msra.mxu0 0.0
      %594 = vmatpush.msra.mxu0 0.0
      %595 = vmatpush.msra.mxu0 0.0
      %596 = vmatpush.msra.mxu0 0.0
      %597 = vmatpush.msra.mxu0 0.0
      %598 = vmatpush.msra.mxu0 0.0
      %599 = vmatpush.msra.mxu0 0.0
      %600 = vmatpush.msra.mxu0 0.0
      %601 = vmatpush.msra.mxu0 0.0
      %v602 = vand.u32 %v397, 4294901760
      %603 = vmatpush.msra.mxu0 %v602
      %v604 = vand.u32 %v402, 4294901760
      %v605 = vsub.f32 %v402, %v604
      %v606 = vand.u32 %v605, 4294901760
      %v607 = vsub.f32 %v605, %v606
      %v608 = vand.u32 %v607, 4294901760
      %609 = vmatmul.f32.gmra.mxu0 %v608
      %v610 = vpop.f32.mrf.mxu0
      %v611 = vadd.f32 0.0, %v610
      %v612 = vand.u32 %v405, 4294901760
      %v613 = vsub.f32 %v405, %v612
      %v614 = vand.u32 %v613, 4294901760
      %v615 = vsub.f32 %v613, %v614
      %v616 = vand.u32 %v615, 4294901760
      %617 = vmatmul.f32.gmra.mxu0 %v616
      %v618 = vpop.f32.mrf.mxu0
      %v619 = vadd.f32 0.0, %v618
      %620 = vdwg.mxu0
      %621 = vmatpush.msra.mxu0 0.0
      %622 = vmatpush.msra.mxu0 0.0
      %623 = vmatpush.msra.mxu0 0.0
      %624 = vmatpush.msra.mxu0 0.0
      %625 = vmatpush.msra.mxu0 0.0
      %626 = vmatpush.msra.mxu0 0.0
      %627 = vmatpush.msra.mxu0 0.0
      %628 = vmatpush.msra.mxu0 0.0
      %629 = vmatpush.msra.mxu0 0.0
      %630 = vmatpush.msra.mxu0 0.0
      %631 = vmatpush.msra.mxu0 0.0
      %632 = vmatpush.msra.mxu0 0.0
      %633 = vmatpush.msra.mxu0 0.0
      %634 = vmatpush.msra.mxu0 0.0
      %635 = vmatpush.msra.mxu0 0.0
      %v636 = vand.u32 %v397, 4294901760
      %v637 = vsub.f32 %v397, %v636
      %v638 = vand.u32 %v637, 4294901760
      %v639 = vsub.f32 %v637, %v638
      %v640 = vand.u32 %v639, 4294901760
      %641 = vmatpush.msra.mxu0 %v640
      %v642 = vand.u32 %v402, 4294901760
      %643 = vmatmul.f32.gmra.mxu0 %v642
      %v644 = vpop.f32.mrf.mxu0
      %v645 = vadd.f32 %v611, %v644
      %v646 = vand.u32 %v405, 4294901760
      %647 = vmatmul.f32.gmra.mxu0 %v646
      %v648 = vpop.f32.mrf.mxu0
      %v649 = vadd.f32 %v619, %v648
      %650 = vdwg.mxu0
      %651 = vmatpush.msra.mxu0 0.0
      %652 = vmatpush.msra.mxu0 0.0
      %653 = vmatpush.msra.mxu0 0.0
      %654 = vmatpush.msra.mxu0 0.0
      %655 = vmatpush.msra.mxu0 0.0
      %656 = vmatpush.msra.mxu0 0.0
      %657 = vmatpush.msra.mxu0 0.0
      %658 = vmatpush.msra.mxu0 0.0
      %659 = vmatpush.msra.mxu0 0.0
      %660 = vmatpush.msra.mxu0 0.0
      %661 = vmatpush.msra.mxu0 0.0
      %662 = vmatpush.msra.mxu0 0.0
      %663 = vmatpush.msra.mxu0 0.0
      %664 = vmatpush.msra.mxu0 0.0
      %665 = vmatpush.msra.mxu0 0.0
      %v666 = vand.u32 %v397, 4294901760
      %v667 = vsub.f32 %v397, %v666
      %668 = vmatpush.msra.mxu0 %v667
      %v669 = vand.u32 %v402, 4294901760
      %v670 = vsub.f32 %v402, %v669
      %671 = vmatmul.f32.gmra.mxu0 %v670
      %v672 = vpop.f32.mrf.mxu0
      %v673 = vadd.f32 %v645, %v672
      %v674 = vand.u32 %v405, 4294901760
      %v675 = vsub.f32 %v405, %v674
      %676 = vmatmul.f32.gmra.mxu0 %v675
      %v677 = vpop.f32.mrf.mxu0
      %v678 = vadd.f32 %v649, %v677
      %679 = vdwg.mxu0
      %680 = vmatpush.msra.mxu0 0.0
      %681 = vmatpush.msra.mxu0 0.0
      %682 = vmatpush.msra.mxu0 0.0
      %683 = vmatpush.msra.mxu0 0.0
      %684 = vmatpush.msra.mxu0 0.0
      %685 = vmatpush.msra.mxu0 0.0
      %686 = vmatpush.msra.mxu0 0.0
      %687 = vmatpush.msra.mxu0 0.0
      %688 = vmatpush.msra.mxu0 0.0
      %689 = vmatpush.msra.mxu0 0.0
      %690 = vmatpush.msra.mxu0 0.0
      %691 = vmatpush.msra.mxu0 0.0
      %692 = vmatpush.msra.mxu0 0.0
      %693 = vmatpush.msra.mxu0 0.0
      %694 = vmatpush.msra.mxu0 0.0
      %v695 = vand.u32 %v397, 4294901760
      %696 = vmatpush.msra.mxu0 %v695
      %v697 = vand.u32 %v402, 4294901760
      %v698 = vsub.f32 %v402, %v697
      %v699 = vand.u32 %v698, 4294901760
      %700 = vmatmul.f32.gmra.mxu0 %v699
      %v701 = vpop.f32.mrf.mxu0
      %v702 = vadd.f32 %v673, %v701
      %v703 = vand.u32 %v405, 4294901760
      %v704 = vsub.f32 %v405, %v703
      %v705 = vand.u32 %v704, 4294901760
      %706 = vmatmul.f32.gmra.mxu0 %v705
      %v707 = vpop.f32.mrf.mxu0
      %v708 = vadd.f32 %v678, %v707
      %709 = vdwg.mxu0
      %710 = vmatpush.msra.mxu0 0.0
      %711 = vmatpush.msra.mxu0 0.0
      %712 = vmatpush.msra.mxu0 0.0
      %713 = vmatpush.msra.mxu0 0.0
      %714 = vmatpush.msra.mxu0 0.0
      %715 = vmatpush.msra.mxu0 0.0
      %716 = vmatpush.msra.mxu0 0.0
      %717 = vmatpush.msra.mxu0 0.0
      %718 = vmatpush.msra.mxu0 0.0
      %719 = vmatpush.msra.mxu0 0.0
      %720 = vmatpush.msra.mxu0 0.0
      %721 = vmatpush.msra.mxu0 0.0
      %722 = vmatpush.msra.mxu0 0.0
      %723 = vmatpush.msra.mxu0 0.0
      %724 = vmatpush.msra.mxu0 0.0
      %v725 = vand.u32 %v397, 4294901760
      %v726 = vsub.f32 %v397, %v725
      %v727 = vand.u32 %v726, 4294901760
      %728 = vmatpush.msra.mxu0 %v727
      %v729 = vand.u32 %v402, 4294901760
      %730 = vmatmul.f32.gmra.mxu0 %v729
      %v731 = vpop.f32.mrf.mxu0
      %v732 = vadd.f32 %v702, %v731
      %v733 = vand.u32 %v405, 4294901760
      %734 = vmatmul.f32.gmra.mxu0 %v733
      %v735 = vpop.f32.mrf.mxu0
      %v736 = vadd.f32 %v708, %v735
      %737 = vdwg.mxu0
      %738 = vmatpush.msra.mxu0 0.0
      %739 = vmatpush.msra.mxu0 0.0
      %740 = vmatpush.msra.mxu0 0.0
      %741 = vmatpush.msra.mxu0 0.0
      %742 = vmatpush.msra.mxu0 0.0
      %743 = vmatpush.msra.mxu0 0.0
      %744 = vmatpush.msra.mxu0 0.0
      %745 = vmatpush.msra.mxu0 0.0
      %746 = vmatpush.msra.mxu0 0.0
      %747 = vmatpush.msra.mxu0 0.0
      %748 = vmatpush.msra.mxu0 0.0
      %749 = vmatpush.msra.mxu0 0.0
      %750 = vmatpush.msra.mxu0 0.0
      %751 = vmatpush.msra.mxu0 0.0
      %752 = vmatpush.msra.mxu0 0.0
      %v753 = vand.u32 %v397, 4294901760
      %754 = vmatpush.msra.mxu0 %v753
      %v755 = vand.u32 %v402, 4294901760
      %756 = vmatmul.f32.gmra.mxu0 %v755
      %v757 = vpop.f32.mrf.mxu0
      %v758 = vadd.f32 %v732, %v757
      %v759 = vand.u32 %v405, 4294901760
      %760 = vmatmul.f32.gmra.mxu0 %v759
      %v761 = vpop.f32.mrf.mxu0
      %v762 = vadd.f32 %v736, %v761
      %763 = vdwg.mxu0
      %s764 = scalar_lea.vmem %s210, 16
      %765 = vst.msk [vmem:[%s764] sm:$0xff] %vm584, %v758
      %766 = vst.msk [vmem:[%s764 + $0x8] sm:$0xff] %vm584, %v762
      %s767 = smul.u32 2, %s19
      %p768 = scmp.lt.s32.totalorder %s18, 1
      %s769 = scalar_select %p768, %s18, 1
      %p770 = scmp.lt.s32.totalorder %s767, 1
      %s771 = scalar_select %p770, %s767, 1
      %s772 = smul.addr %s771, 2
      %s773 = smul.addr %s769, 4
      %s774 = sadd.s32 %s772, %s773
      %s775 = smul.addr %s774, 8
      %s776 = scalar_lea.vmem %s3, %s775
      // Predicated region
      $region33: #{attention_gate2.10} parent=31 // pred_check
        %p777 = pneg %p116
      $region34: #{attention_gate2.10} parent=31 // pred_check_branch
        %779 = sbr.rel (%p777) target = $region36
      $region35: #{attention_gate2.10} parent=31 // pred_region
        %s780 = smul.u32 2, %s19
      $region36: #{attention_gate2.10} parent=31 // pred_fallthru
        _
    $region32: #{attention_gate2.10} parent=5 // pred_fallthru
      _
    %p781 = scmp.le.s32.totalorder 2, %s9
    // Predicated region
    $region37: #{attention_gate2.10} parent=5 // pred_check
      %p782 = pneg %p781
    $region38: #{attention_gate2.10} parent=5 // pred_check_branch
      %784 = sbr.rel (%p782) target = $region40
    $region39: #{attention_gate2.10} parent=5 // pred_region
      %s785 = ssub.s32 %s9, 2
      // Predicated region
      $region41: #{attention_gate2.10} parent=39 // pred_check
        %p786 = pneg %p122
      $region42: #{attention_gate2.10} parent=39 // pred_check_branch
        %788 = sbr.rel (%p786) target = $region44
      $region43: #{attention_gate2.10} parent=39 // pred_region
        %s789 = smul.u32 2, %s21
        %p790 = scmp.lt.s32.totalorder %s20, 1
        %s791 = scalar_select %p790, %s20, 1
        %p792 = scmp.lt.s32.totalorder %s789, 1
        %s793 = scalar_select %p792, %s789, 1
        %s794 = smul.addr %s793, 2
        %s795 = smul.addr %s791, 4
        %s796 = sadd.s32 %s794, %s795
        %s797 = smul.addr %s796, 8
        %s798 = scalar_lea.vmem %s3, %s797
      $region44: #{attention_gate2.10} parent=39 // pred_fallthru
        _
    $region40: #{attention_gate2.10} parent=5 // pred_fallthru
      _
  $region6: #{attention_gate2.10} parent=0 // loop_footer
    %s13 = sadd.s32 1, %s9
  $region7: #{attention_gate2.10} parent=0 // loop_footer_branch
    %8 = sbr.rel target = $region3
  $region8: #{attention_gate2.10} parent=0 // loop_exit
    _

// kernel: attention_gate2.11
$region0: #{attention_gate2.11}
  #allocation0 [shape = 'u32[]', space=smem, size = 0x4, offset = 0x4, fixed_abs, tag = 'smem constant byte address 0x4 - core index']
  #allocation1 [shape = 'u32[72,128]{1,0:T(1,128)}', space=vmem, size = 0x9000, scoped, tag = 'internal scratch']
  %s0 = inlined_call_operand.vmem [shape: f32[2,4,256], index: 0, kind: input, shape index: {}]
  %s1 = inlined_call_operand.vmem [shape: f32[2,2,256], index: 1, kind: input, shape index: {}]
  %s2 = inlined_call_operand.vmem [shape: f32[2,4], index: 2, kind: input, shape index: {}]
  %s3 = inlined_call_operand.vmem [shape: f32[4,8], index: 3, kind: input, shape index: {}]
  %s4 = inlined_call_operand.vmem [shape: f32[2,4,256], index: 4, kind: output, shape index: {}]
  %s5 = sld [smem:[#allocation0]]
  $region49: #{attention_gate2.11} parent=0
    _
  %s7 = ssub.s32 1, %s5
  %s8 = scalar_select 0, %s7, %s5
  loop: start=0, step=1, limit=6
  $region2: #{attention_gate2.11} parent=0 // loop_pre_header
    _
  $region3: #{attention_gate2.11} parent=0 // loop_header
    %s10 = sphi 0, %s14
    %p11 = scmp.ge.s32.totalorder %s10, 6
    %s17 = sphi 0, %s29
    %s18 = sphi 0, %s25
    %s19 = sphi 0, %s17
    %s20 = sphi 0, %s18
    %s21 = sphi 0, %s19
    %s22 = sphi 0, %s20
    %s34 = sphi 0, %s36
    %s37 = sphi 0, %s34
    %s38 = sphi 0, %s37
    %s54 = sphi 0, %s38
    %s62 = sphi 0, %s64
    %s65 = sphi 0, %s62
    %s66 = sphi 0, %s65
    %s82 = sphi 0, %s66
    %s86 = sphi 0, %s86
    %s88 = sphi 0, %s86
    %s89 = sphi 0, %s88
    %s103 = sphi 0, %s89
    %s107 = sphi 0, %s107
    %s109 = sphi 0, %s107
    %s110 = sphi 0, %s109
    %s124 = sphi 0, %s110
    %s132 = sphi 0, %s134
    %s135 = sphi 0, %s132
    %s136 = sphi 0, %s135
    %s152 = sphi 0, %s136
  $region4: #{attention_gate2.11} parent=0 // loop_header_branch
    %13 = sbr.rel (%p11) target = $region8
  $region5: #{attention_gate2.11} parent=0 // loop_body
    %s15 = ssub.s32 %s10, 1
    %s16 = ssub.s32 %s10, 2
    %s23 = sadd.s32 1, %s18
    %p24 = scmp.ge.s32.totalorder %s23, 2
    %s25 = scalar_select %p24, 0, %s23
    %s26 = sadd.s32 1, %s17
    %s27 = scalar_select %p24, %s26, %s17
    %p28 = scmp.ge.s32.totalorder %s27, 2
    %s29 = scalar_select %p28, 0, %s27
    %s30 = ssub.s32 %s17, %s29
    %s31 = ssub.s32 %s18, %s25
    %s32 = sor.u32 %s30, %s31
    %p33 = scmp.eq.s32.totalorder %s32, 0
    %s35 = sadd.s32 %s34, 1
    %s36 = scalar_select %p33, %s34, %s35
    %p39 = pneg %p33
    %p40 = scmp.eq.s32.totalorder %s10, 3
    %p41 = por %p39, %p40
    %p42 = scmp.ne.s32.totalorder %s34, %s37
    %p43 = scmp.eq.s32.totalorder %s10, 0
    %p44 = por %p42, %p43
    %p45 = scmp.ne.s32.totalorder %s34, %s37
    %p46 = scmp.eq.s32.totalorder %s15, 3
    %p47 = por %p45, %p46
    %p48 = scmp.ne.s32.totalorder %s37, %s38
    %p49 = scmp.eq.s32.totalorder %s15, 0
    %p50 = por %p48, %p49
    %p51 = scmp.ne.s32.totalorder %s37, %s38
    %p52 = scmp.eq.s32.totalorder %s16, 3
    %p53 = por %p51, %p52
    %p55 = scmp.ne.s32.totalorder %s38, %s54
    %p56 = scmp.eq.s32.totalorder %s16, 0
    %p57 = por %p55, %p56
    %s58 = ssub.s32 %s17, %s29
    %s59 = ssub.s32 %s18, %s25
    %s60 = sor.u32 %s58, %s59
    %p61 = scmp.eq.s32.totalorder %s60, 0
    %s63 = sadd.s32 %s62, 1
    %s64 = scalar_select %p61, %s62, %s63
    %p67 = pneg %p61
    %p68 = scmp.eq.s32.totalorder %s10, 3
    %p69 = por %p67, %p68
    %p70 = scmp.ne.s32.totalorder %s62, %s65
    %p71 = scmp.eq.s32.totalorder %s10, 0
    %p72 = por %p70, %p71
    %p73 = scmp.ne.s32.totalorder %s62, %s65
    %p74 = scmp.eq.s32.totalorder %s15, 3
    %p75 = por %p73, %p74
    %p76 = scmp.ne.s32.totalorder %s65, %s66
    %p77 = scmp.eq.s32.totalorder %s15, 0
    %p78 = por %p76, %p77
    %p79 = scmp.ne.s32.totalorder %s65, %s66
    %p80 = scmp.eq.s32.totalorder %s16, 3
    %p81 = por %p79, %p80
    %p83 = scmp.ne.s32.totalorder %s66, %s82
    %p84 = scmp.eq.s32.totalorder %s16, 0
    %p85 = por %p83, %p84
    %s87 = sadd.s32 %s86, 1
    %p90 = scmp.eq.s32.totalorder %s10, 3
    %p91 = scmp.ne.s32.totalorder %s86, %s88
    %p92 = scmp.eq.s32.totalorder %s10, 0
    %p93 = por %p91, %p92
    %p94 = scmp.ne.s32.totalorder %s86, %s88
    %p95 = scmp.eq.s32.totalorder %s15, 3
    %p96 = por %p94, %p95
    %p97 = scmp.ne.s32.totalorder %s88, %s89
    %p98 = scmp.eq.s32.totalorder %s15, 0
    %p99 = por %p97, %p98
    %p100 = scmp.ne.s32.totalorder %s88, %s89
    %p101 = scmp.eq.s32.totalorder %s16, 3
    %p102 = por %p100, %p101
    %p104 = scmp.ne.s32.totalorder %s89, %s103
    %p105 = scmp.eq.s32.totalorder %s16, 0
    %p106 = por %p104, %p105
    %s108 = sadd.s32 %s107, 1
    %p111 = scmp.eq.s32.totalorder %s10, 3
    %p112 = scmp.ne.s32.totalorder %s107, %s109
    %p113 = scmp.eq.s32.totalorder %s10, 0
    %p114 = por %p112, %p113
    %p115 = scmp.ne.s32.totalorder %s107, %s109
    %p116 = scmp.eq.s32.totalorder %s15, 3
    %p117 = por %p115, %p116
    %p118 = scmp.ne.s32.totalorder %s109, %s110
    %p119 = scmp.eq.s32.totalorder %s15, 0
    %p120 = por %p118, %p119
    %p121 = scmp.ne.s32.totalorder %s109, %s110
    %p122 = scmp.eq.s32.totalorder %s16, 3
    %p123 = por %p121, %p122
    %p125 = scmp.ne.s32.totalorder %s110, %s124
    %p126 = scmp.eq.s32.totalorder %s16, 0
    %p127 = por %p125, %p126
    %s128 = ssub.s32 %s17, %s29
    %s129 = ssub.s32 %s18, %s25
    %s130 = sor.u32 %s128, %s129
    %p131 = scmp.eq.s32.totalorder %s130, 0
    %s133 = sadd.s32 %s132, 1
    %s134 = scalar_select %p131, %s132, %s133
    %p137 = pneg %p131
    %p138 = scmp.eq.s32.totalorder %s10, 3
    %p139 = por %p137, %p138
    %p140 = scmp.ne.s32.totalorder %s132, %s135
    %p141 = scmp.eq.s32.totalorder %s10, 0
    %p142 = por %p140, %p141
    %p143 = scmp.ne.s32.totalorder %s132, %s135
    %p144 = scmp.eq.s32.totalorder %s15, 3
    %p145 = por %p143, %p144
    %p146 = scmp.ne.s32.totalorder %s135, %s136
    %p147 = scmp.eq.s32.totalorder %s15, 0
    %p148 = por %p146, %p147
    %p149 = scmp.ne.s32.totalorder %s135, %s136
    %p150 = scmp.eq.s32.totalorder %s16, 3
    %p151 = por %p149, %p150
    %p153 = scmp.ne.s32.totalorder %s136, %s152
    %p154 = scmp.eq.s32.totalorder %s16, 0
    %p155 = por %p153, %p154
    %p156 = scmp.le.s32.totalorder 1, %s10
    %p157 = scmp.lt.s32.totalorder %s10, 5
    %p158 = pnand %p156, %p157
    %p159 = pneg %p158
    // Predicated region
    $region9: #{attention_gate2.11} parent=5 // pred_check
      _
    $region10: #{attention_gate2.11} parent=5 // pred_check_branch
      %161 = sbr.rel (%p158) target = $region12
    $region11: #{attention_gate2.11} parent=5 // pred_region
      %s162 = ssub.s32 %s10, 1
      // Predicated region
      $region13: #{attention_gate2.11} parent=11 // pred_check
        %p163 = pneg %p99
      $region14: #{attention_gate2.11} parent=11 // pred_check_branch
        %165 = sbr.rel (%p163) target = $region16
      $region15: #{attention_gate2.11} parent=11 // pred_region
        _
      $region16: #{attention_gate2.11} parent=11 // pred_fallthru
        _
      // Predicated region
      $region17: #{attention_gate2.11} parent=11 // pred_check
        %p166 = pneg %p120
      $region18: #{attention_gate2.11} parent=11 // pred_check_branch
        %168 = sbr.rel (%p166) target = $region20
      $region19: #{attention_gate2.11} parent=11 // pred_region
        _
      $region20: #{attention_gate2.11} parent=11 // pred_fallthru
        _
    $region12: #{attention_gate2.11} parent=5 // pred_fallthru
      _
    %p169 = scmp.lt.s32.totalorder %s10, 4
    // Predicated region
    $region21: #{attention_gate2.11} parent=5 // pred_check
      %p170 = pneg %p169
    $region22: #{attention_gate2.11} parent=5 // pred_check_branch
      %172 = sbr.rel (%p170) target = $region24
    $region23: #{attention_gate2.11} parent=5 // pred_region
      // Predicated region
      $region25: #{attention_gate2.11} parent=23 // pred_check
        %p173 = pneg %p44
      $region26: #{attention_gate2.11} parent=23 // pred_check_branch
        %175 = sbr.rel (%p173) target = $region28
      $region27: #{attention_gate2.11} parent=23 // pred_region
        %p176 = scmp.lt.s32.totalorder %s17, 1
        %s177 = scalar_select %p176, %s17, 1
        %p178 = scmp.lt.s32.totalorder %s18, 1
        %s179 = scalar_select %p178, %s18, 1
        %s180 = smul.addr %s177, 2
        %s181 = sadd.s32 %s179, %s180
        %s182 = smul.addr %s181, 4
        %s183 = scalar_lea.vmem %s0, %s182
      $region28: #{attention_gate2.11} parent=23 // pred_fallthru
        _
      // Predicated region
      $region29: #{attention_gate2.11} parent=23 // pred_check
        %p184 = pneg %p72
      $region30: #{attention_gate2.11} parent=23 // pred_check_branch
        %186 = sbr.rel (%p184) target = $region32
      $region31: #{attention_gate2.11} parent=23 // pred_region
        %p187 = scmp.lt.s32.totalorder %s17, 1
        %s188 = scalar_select %p187, %s17, 1
        %p189 = scmp.lt.s32.totalorder %s18, 1
        %s190 = scalar_select %p189, %s18, 1
        %s191 = smul.addr %s188, 2
        %s192 = sadd.s32 %s190, %s191
        %s193 = smul.addr %s192, 2
        %s194 = scalar_lea.vmem %s1, %s193
      $region32: #{attention_gate2.11} parent=23 // pred_fallthru
        _
    $region24: #{attention_gate2.11} parent=5 // pred_fallthru
      _
    %p195 = scmp.le.s32.totalorder 1, %s10
    %p196 = scmp.lt.s32.totalorder %s10, 5
    %p197 = pnand %p195, %p196
    %p198 = pneg %p197
    // Predicated region
    $region33: #{attention_gate2.11} parent=5 // pred_check
      _
    $region34: #{attention_gate2.11} parent=5 // pred_check_branch
      %200 = sbr.rel (%p197) target = $region36
    $region35: #{attention_gate2.11} parent=5 // pred_region
      %s201 = ssub.s32 %s10, 1
      %p202 = scmp.lt.s32.totalorder %s19, 1
      %s203 = scalar_select %p202, %s19, 1
      %p204 = scmp.lt.s32.totalorder %s20, 1
      %s205 = scalar_select %p204, %s20, 1
      %s206 = smul.addr %s203, 2
      %s207 = sadd.s32 %s205, %s206
      %s208 = smul.addr %s207, 4
      %s209 = scalar_lea.vmem %s0, %s208
      %p210 = pneg %p50
      %p211 = pneg %p47
      %p212 = scmp.lt.s32.totalorder %s19, 1
      %s213 = scalar_select %p212, %s19, 1
      %p214 = scmp.lt.s32.totalorder %s20, 1
      %s215 = scalar_select %p214, %s20, 1
      %s216 = smul.addr %s213, 2
      %s217 = sadd.s32 %s215, %s216
      %s218 = smul.addr %s217, 2
      %s219 = scalar_lea.vmem %s1, %s218
      %p220 = pneg %p78
      %p221 = pneg %p75
      %p222 = pneg %p99
      %p223 = pneg %p96
      %p224 = pneg %p120
      %p225 = pneg %p117
      %p226 = pneg %p148
      %p227 = pneg %p145
      %p228 = scmp.lt.s32.totalorder %s19, 1
      %s229 = scalar_select %p228, %s19, 1
      %p230 = scmp.lt.s32.totalorder %s20, 1
      %s231 = scalar_select %p230, %s20, 1
      %s232 = smul.addr %s229, 2
      %s233 = sadd.s32 %s231, %s232
      %s234 = smul.addr %s233, 4
      %s235 = scalar_lea.vmem %s4, %s234
      %p236 = scmp.lt.s32.totalorder %s19, 1
      %s237 = scalar_select %p236, %s19, 1
      %p238 = scmp.lt.s32.totalorder %s20, 1
      %s239 = scalar_select %p238, %s20, 1
      %s240 = smul.addr %s237, 2
      %s241 = sadd.s32 %s239, %s240
      %s242 = smul.addr %s241, 4
      %s243 = scalar_lea.vmem %s0, %s242
      %p244 = scmp.lt.s32.totalorder %s19, 1
      %s245 = scalar_select %p244, %s19, 1
      %p246 = scmp.lt.s32.totalorder %s20, 1
      %s247 = scalar_select %p246, %s20, 1
      %s248 = smul.addr %s245, 2
      %s249 = sadd.s32 %s247, %s248
      %s250 = smul.addr %s249, 2
      %s251 = scalar_lea.vmem %s1, %s250
      %p252 = scmp.lt.s32.totalorder %s19, 1
      %s253 = scalar_select %p252, %s19, 1
      %p254 = scmp.lt.s32.totalorder %s20, 1
      %s255 = scalar_select %p254, %s20, 1
      %s256 = smul.addr %s253, 2
      %s257 = sadd.s32 %s255, %s256
      %s258 = smul.addr %s257, 4
      %s259 = scalar_lea.vmem %s4, %s258
      %v260 = vld [vmem:[%s3] sm:$0xf]
      %v261 = vld [vmem:[%s243] sm:$0xf]
      %v262 = vld [vmem:[%s2] sm:$0x3]
      %v263 = vld [vmem:[%s251] sm:$0x3]
      %vm264 = vcmask 31744
      %v266 = vsel %vm264, %v262, 0
      %vm268 = vcmask 1043456
      %v270 = vsel %vm268, %v261, 0
      %272 = vmatpush.msra.mxu0 0.0
      %273 = vmatpush.msra.mxu0 0.0
      %274 = vmatpush.msra.mxu0 0.0
      %275 = vmatpush.msra.mxu0 0.0
      %276 = vmatpush.msra.mxu0 0.0
      %277 = vmatpush.msra.mxu0 0.0
      %278 = vmatpush.msra.mxu0 0.0
      %279 = vmatpush.msra.mxu0 0.0
      %280 = vmatpush.msra.mxu0 0.0
      %281 = vmatpush.msra.mxu0 0.0
      %282 = vmatpush.msra.mxu0 0.0
      %283 = vmatpush.msra.mxu0 0.0
      %284 = vmatpush.msra.mxu0 0.0
      %285 = vmatpush.msra.mxu0 0.0
      %286 = vmatpush.msra.mxu0 0.0
      %v287 = vand.u32 %v270, 4294901760
      %288 = vmatpush.msra.mxu0 %v287
      %v289 = vand.u32 %v266, 4294901760
      %v290 = vsub.f32 %v266, %v289
      %v291 = vand.u32 %v290, 4294901760
      %v292 = vsub.f32 %v290, %v291
      %v293 = vand.u32 %v292, 4294901760
      %294 = vmatmul.f32.gmra.mxu0 %v293
      %v295 = vpop.f32.mrf.mxu0
      %v296 = vadd.f32 %v263, %v295
      %297 = vdwg.mxu0
      %298 = vmatpush.msra.mxu0 0.0
      %299 = vmatpush.msra.mxu0 0.0
      %300 = vmatpush.msra.mxu0 0.0
      %301 = vmatpush.msra.mxu0 0.0
      %302 = vmatpush.msra.mxu0 0.0
      %303 = vmatpush.msra.mxu0 0.0
      %304 = vmatpush.msra.mxu0 0.0
      %305 = vmatpush.msra.mxu0 0.0
      %306 = vmatpush.msra.mxu0 0.0
      %307 = vmatpush.msra.mxu0 0.0
      %308 = vmatpush.msra.mxu0 0.0
      %309 = vmatpush.msra.mxu0 0.0
      %310 = vmatpush.msra.mxu0 0.0
      %311 = vmatpush.msra.mxu0 0.0
      %312 = vmatpush.msra.mxu0 0.0
      %v313 = vand.u32 %v270, 4294901760
      %v314 = vsub.f32 %v270, %v313
      %v315 = vand.u32 %v314, 4294901760
      %v316 = vsub.f32 %v314, %v315
      %v317 = vand.u32 %v316, 4294901760
      %318 = vmatpush.msra.mxu0 %v317
      %v319 = vand.u32 %v266, 4294901760
      %320 = vmatmul.f32.gmra.mxu0 %v319
      %v321 = vpop.f32.mrf.mxu0
      %v322 = vadd.f32 %v296, %v321
      %323 = vdwg.mxu0
      %324 = vmatpush.msra.mxu0 0.0
      %325 = vmatpush.msra.mxu0 0.0
      %326 = vmatpush.msra.mxu0 0.0
      %327 = vmatpush.msra.mxu0 0.0
      %328 = vmatpush.msra.mxu0 0.0
      %329 = vmatpush.msra.mxu0 0.0
      %330 = vmatpush.msra.mxu0 0.0
      %331 = vmatpush.msra.mxu0 0.0
      %332 = vmatpush.msra.mxu0 0.0
      %333 = vmatpush.msra.mxu0 0.0
      %334 = vmatpush.msra.mxu0 0.0
      %335 = vmatpush.msra.mxu0 0.0
      %336 = vmatpush.msra.mxu0 0.0
      %337 = vmatpush.msra.mxu0 0.0
      %338 = vmatpush.msra.mxu0 0.0
      %v339 = vand.u32 %v270, 4294901760
      %v340 = vsub.f32 %v270, %v339
      %341 = vmatpush.msra.mxu0 %v340
      %v342 = vand.u32 %v266, 4294901760
      %v343 = vsub.f32 %v266, %v342
      %344 = vmatmul.f32.gmra.mxu0 %v343
      %v345 = vpop.f32.mrf.mxu0
      %v346 = vadd.f32 %v322, %v345
      %347 = vdwg.mxu0
      %348 = vmatpush.msra.mxu0 0.0
      %349 = vmatpush.msra.mxu0 0.0
      %350 = vmatpush.msra.mxu0 0.0
      %351 = vmatpush.msra.mxu0 0.0
      %352 = vmatpush.msra.mxu0 0.0
      %353 = vmatpush.msra.mxu0 0.0
      %354 = vmatpush.msra.mxu0 0.0
      %355 = vmatpush.msra.mxu0 0.0
      %356 = vmatpush.msra.mxu0 0.0
      %357 = vmatpush.msra.mxu0 0.0
      %358 = vmatpush.msra.mxu0 0.0
      %359 = vmatpush.msra.mxu0 0.0
      %360 = vmatpush.msra.mxu0 0.0
      %361 = vmatpush.msra.mxu0 0.0
      %362 = vmatpush.msra.mxu0 0.0
      %v363 = vand.u32 %v270, 4294901760
      %364 = vmatpush.msra.mxu0 %v363
      %v365 = vand.u32 %v266, 4294901760
      %v366 = vsub.f32 %v266, %v365
      %v367 = vand.u32 %v366, 4294901760
      %368 = vmatmul.f32.gmra.mxu0 %v367
      %v369 = vpop.f32.mrf.mxu0
      %v370 = vadd.f32 %v346, %v369
      %371 = vdwg.mxu0
      %372 = vmatpush.msra.mxu0 0.0
      %373 = vmatpush.msra.mxu0 0.0
      %374 = vmatpush.msra.mxu0 0.0
      %375 = vmatpush.msra.mxu0 0.0
      %376 = vmatpush.msra.mxu0 0.0
      %377 = vmatpush.msra.mxu0 0.0
      %378 = vmatpush.msra.mxu0 0.0
      %379 = vmatpush.msra.mxu0 0.0
      %380 = vmatpush.msra.mxu0 0.0
      %381 = vmatpush.msra.mxu0 0.0
      %382 = vmatpush.msra.mxu0 0.0
      %383 = vmatpush.msra.mxu0 0.0
      %384 = vmatpush.msra.mxu0 0.0
      %385 = vmatpush.msra.mxu0 0.0
      %386 = vmatpush.msra.mxu0 0.0
      %v387 = vand.u32 %v270, 4294901760
      %v388 = vsub.f32 %v270, %v387
      %v389 = vand.u32 %v388, 4294901760
      %390 = vmatpush.msra.mxu0 %v389
      %v391 = vand.u32 %v266, 4294901760
      %392 = vmatmul.f32.gmra.mxu0 %v391
      %v393 = vpop.f32.mrf.mxu0
      %v394 = vadd.f32 %v370, %v393
      %395 = vdwg.mxu0
      %396 = vmatpush.msra.mxu0 0.0
      %397 = vmatpush.msra.mxu0 0.0
      %398 = vmatpush.msra.mxu0 0.0
      %399 = vmatpush.msra.mxu0 0.0
      %400 = vmatpush.msra.mxu0 0.0
      %401 = vmatpush.msra.mxu0 0.0
      %402 = vmatpush.msra.mxu0 0.0
      %403 = vmatpush.msra.mxu0 0.0
      %404 = vmatpush.msra.mxu0 0.0
      %405 = vmatpush.msra.mxu0 0.0
      %406 = vmatpush.msra.mxu0 0.0
      %407 = vmatpush.msra.mxu0 0.0
      %408 = vmatpush.msra.mxu0 0.0
      %409 = vmatpush.msra.mxu0 0.0
      %410 = vmatpush.msra.mxu0 0.0
      %v411 = vand.u32 %v270, 4294901760
      %412 = vmatpush.msra.mxu0 %v411
      %v413 = vand.u32 %v266, 4294901760
      %414 = vmatmul.f32.gmra.mxu0 %v413
      %v415 = vpop.f32.mrf.mxu0
      %v416 = vadd.f32 %v394, %v415
      %417 = vdwg.mxu0
      %419 = vset.pattern.permute.xlu0 0
      %420 = vperm.xlu0 %419, %v260
      %v421 = vpop.permute.xlu0 %420
      %v423 = vadd.f32 %v416, %v421
      %v424 = vmax.f32 %v423, 0.0
      %425 = vset.pattern.permute.xlu0 1
      %426 = vperm.xlu0 %425, %v260
      %v427 = vpop.permute.xlu0 %426
      %v429 = vmul.f32 %v424, %v427
      %vm430 = vcmask 1041408
      %v431 = vsel %vm430, %v429, 0.0
      %v432 = vrot.slane %v431, 4
      %v433 = vadd.f32 %v431, %v432
      %v434 = vrot.slane %v433, 2
      %v435 = vadd.f32 %v433, %v434
      %v436 = vrot.slane %v435, 1
      %v437 = vadd.f32 %v435, %v436
      %438 = vset.pattern.permute.xlu0 4
      %439 = vperm.xlu0 %438, %v260
      %v440 = vpop.permute.xlu0 %439
      %v442 = vadd.f32 %v437, %v440
      %v443 = vxor.u32 %v442, 2147483648
      %v444 = vmul.f32 %v443, 1.442695
      %v445 = vpow.pop %v444
      %v446 = vadd.f32 %v445, 1.0
      %v447 = vrcp.pop %v446
      %v448 = vmul.f32 %v446, %v447
      %v449 = vsub.f32 1.0, %v448
      %v450 = vmul.f32 %v447, %v449
      %v451 = vadd.f32 %v447, %v450
      %vm452 = vweird.f32 %v446
      %vm453 = vweird.f32 %v447
      %vm454 = vmor %vm452, %vm453
      %v455 = vsel %vm454, %v447, %v451
      %v456 = vand.u32 2147483647, %v446
      %vm457 = vcmp.eq.f32.partialorder %v456, 8.507059e+37
      %v458 = vand.u32 %v446, 2147483648
      %v459 = vor.u32 1.1754944e-38, %v458
      %v460 = vsel %vm457, %v459, %v455
      %v461 = vmul.f32 1.0, %v460
      %v462 = vperm.slane %v461, 0
      %v463 = vmul.f32 %v462, %v261
      %464 = vset.pattern.permute.xlu0 2
      %465 = vperm.xlu0 %464, %v260
      %v466 = vpop.permute.xlu0 %465
      %v468 = vmul.f32 %v466, %v463
      %v469 = vadd.f32 %v261, %v468
      %470 = vset.pattern.permute.xlu0 3
      %471 = vperm.xlu0 %470, %v260
      %v472 = vpop.permute.xlu0 %471
      %v474 = vadd.f32 %v469, %v472
      %v475 = vmax.f32 %v474, 0.0
      %476 = vst [vmem:[%s259] sm:$0xf] %v475
      %p477 = scmp.lt.s32.totalorder %s19, 1
      %s478 = scalar_select %p477, %s19, 1
      %p479 = scmp.lt.s32.totalorder %s20, 1
      %s480 = scalar_select %p479, %s20, 1
      %s481 = smul.addr %s478, 2
      %s482 = sadd.s32 %s480, %s481
      %s483 = smul.addr %s482, 4
      %s484 = scalar_lea.vmem %s4, %s483
      // Predicated region
      $region37: #{attention_gate2.11} parent=35 // pred_check
        %p485 = pneg %p145
      $region38: #{attention_gate2.11} parent=35 // pred_check_branch
        %487 = sbr.rel (%p485) target = $region40
      $region39: #{attention_gate2.11} parent=35 // pred_region
        _
      $region40: #{attention_gate2.11} parent=35 // pred_fallthru
        _
    $region36: #{attention_gate2.11} parent=5 // pred_fallthru
      _
    %p488 = scmp.le.s32.totalorder 2, %s10
    // Predicated region
    $region41: #{attention_gate2.11} parent=5 // pred_check
      %p489 = pneg %p488
    $region42: #{attention_gate2.11} parent=5 // pred_check_branch
      %491 = sbr.rel (%p489) target = $region44
    $region43: #{attention_gate2.11} parent=5 // pred_region
      %s492 = ssub.s32 %s10, 2
      // Predicated region
      $region45: #{attention_gate2.11} parent=43 // pred_check
        %p493 = pneg %p151
      $region46: #{attention_gate2.11} parent=43 // pred_check_branch
        %495 = sbr.rel (%p493) target = $region48
      $region47: #{attention_gate2.11} parent=43 // pred_region
        %p496 = scmp.lt.s32.totalorder %s21, 1
        %s497 = scalar_select %p496, %s21, 1
        %p498 = scmp.lt.s32.totalorder %s22, 1
        %s499 = scalar_select %p498, %s22, 1
        %s500 = smul.addr %s497, 2
        %s501 = sadd.s32 %s499, %s500
        %s502 = smul.addr %s501, 4
        %s503 = scalar_lea.vmem %s4, %s502
      $region48: #{attention_gate2.11} parent=43 // pred_fallthru
        _
    $region44: #{attention_gate2.11} parent=5 // pred_fallthru
      _
  $region6: #{attention_gate2.11} parent=0 // loop_footer
    %s14 = sadd.s32 1, %s10
  $region7: #{attention_gate2.11} parent=0 // loop_footer_branch
    %9 = sbr.rel target = $region3
  $region8: #{attention_gate2.11} parent=0 // loop_exit
    _

</llo_original>
